<compile_context>
chip_gen: v6e
topology: v6e:2x2x1
jax: 0.10.0
libtpu: 0.0.40
codegen_flags: <defaults>
</compile_context>

<pallas_src>
import numpy as np
import jax
import jax.numpy as jnp
from jax.experimental import pallas as pl
from jax.experimental.pallas import tpu as pltpu

EPS = 1e-5


def _down_kernel(x_ref, w1_ref, b1_ref, g1_ref, be1_ref,
                 w2_ref, b2_ref, g2_ref, be2_ref,
                 o_ref, pad1_ref, pad2_ref):
    # x_ref: (4, Hp, Wp, Cin) -- one batch element, 2x2 pool window on the leading dim.
    Hp, Wp = x_ref.shape[1], x_ref.shape[2]
    Cmid = w1_ref.shape[2]          # w1_ref: (9, Cin,  Cmid) bf16
    Cout = w2_ref.shape[2]          # w2_ref: (9, Cmid, Cout) bf16

    # ---- MaxPool2d(2): elementwise max over the 4 unrolled window positions ----
    pooled = jnp.maximum(jnp.maximum(x_ref[0], x_ref[1]),
                         jnp.maximum(x_ref[2], x_ref[3]))        # (Hp, Wp, Cin) f32

    def conv3x3(pad_ref, inp_hwc, w_ref, b_ref):
        """3x3 'same' conv = 9 shifted bf16 matmuls accumulated in f32 on the MXU."""
        c_in = pad_ref.shape[2]
        # re-zero the whole (small) padded scratch each step (keeps the 1-px border 0
        # and stays correct under megacore sharding of the batch axis), then write the
        # interior in bf16 (the MXU operand dtype).
        pad_ref[...] = jnp.zeros_like(pad_ref)
        pad_ref[1:Hp + 1, 1:Wp + 1, :] = inp_hwc.astype(jnp.bfloat16)

        acc = None
        for k in range(9):                       # static unroll: 9 taps
            dy, dx = k // 3, k % 3
            tap = pad_ref[dy:dy + Hp, dx:dx + Wp, :].reshape(Hp * Wp, c_in)
            d = jnp.dot(tap, w_ref[k], preferred_element_type=jnp.float32)
            acc = d if acc is None else acc + d
        return acc + b_ref[...]                  # (Hp*Wp, c_out) f32

    def inorm_relu(h, g_ref, be_ref):
        """InstanceNorm2d(affine=True) + ReLU, single-pass biased variance, f32."""
        m = jnp.mean(h, axis=0, keepdims=True)
        ex2 = jnp.mean(h * h, axis=0, keepdims=True)
        v = jnp.maximum(ex2 - m * m, 0.0)
        h = (h - m) * jax.lax.rsqrt(v + EPS)
        h = h * g_ref[...] + be_ref[...]
        return jnp.maximum(h, 0.0)

    h1 = inorm_relu(conv3x3(pad1_ref, pooled, w1_ref, b1_ref), g1_ref, be1_ref)
    h2 = inorm_relu(conv3x3(pad2_ref, h1.reshape(Hp, Wp, Cmid), w2_ref, b2_ref),
                    g2_ref, be2_ref)

    o_ref[0] = h2.reshape(Hp, Wp, Cout)


def down_pallas(x_nchw, p):
    """x_nchw: (N, Cin, H, W) float32 (PyTorch layout). Returns (N, Cout, H/2, W/2)."""
    N, Cin, H, W = x_nchw.shape
    Hp, Wp = H // 2, W // 2
    Cmid = p["w1"].shape[2]
    Cout = p["w2"].shape[2]

    # Glue (layout plumbing only): NCHW -> NHWC, unroll the 2x2 pooling window onto a
    # leading dim so the in-kernel pool is pure elementwise max.
    x = jnp.transpose(x_nchw, (0, 2, 3, 1))                       # (N, H, W, Cin)
    x = x.reshape(N, Hp, 2, Wp, 2, Cin)
    x = jnp.transpose(x, (0, 2, 4, 1, 3, 5)).reshape(N * 4, Hp, Wp, Cin)

    # Per-tap weight layout: (9, C_in, C_out), cast to bf16 for the MXU.
    w1 = p["w1"].astype(jnp.bfloat16)                             # (9, Cin,  Cmid)
    w2 = p["w2"].astype(jnp.bfloat16)                             # (9, Cmid, Cout)

    def full(shape):
        return pl.BlockSpec(shape, lambda n, _r=len(shape): (0,) * _r)

    out = pl.pallas_call(
        _down_kernel,
        out_shape=jax.ShapeDtypeStruct((N, Hp, Wp, Cout), jnp.float32),
        grid_spec=pltpu.PrefetchScalarGridSpec(
            num_scalar_prefetch=0,
            grid=(N,),
            in_specs=[
                pl.BlockSpec((4, Hp, Wp, Cin), lambda n: (n, 0, 0, 0)),
                full((9, Cin, Cmid)), full((1, Cmid)), full((1, Cmid)), full((1, Cmid)),
                full((9, Cmid, Cout)), full((1, Cout)), full((1, Cout)), full((1, Cout)),
            ],
            out_specs=pl.BlockSpec((1, Hp, Wp, Cout), lambda n: (n, 0, 0, 0)),
            scratch_shapes=[
                # bf16 padded-input scratches (conv1 / conv2), 1-pixel zero border.
                pltpu.VMEM((Hp + 2, Wp + 2, Cin), jnp.bfloat16),
                pltpu.VMEM((Hp + 2, Wp + 2, Cmid), jnp.bfloat16),
            ],
        ),
        compiler_params=pltpu.CompilerParams(
            dimension_semantics=("parallel",),     # batch elements are independent
            vmem_limit_bytes=48 * 1024 * 1024,
        ),
    )(x, w1, p["b1"], p["g1"], p["be1"], w2, p["b2"], p["g2"], p["be2"])

    return jnp.transpose(out, (0, 3, 1, 2))                       # back to NCHW


def init_params(key, in_channels, out_channels):
    """Deterministic synthetic parameters (shapes follow Down.__init__, ada=False)."""
    mid = out_channels
    ks = jax.random.split(key, 8)
    w1 = 0.2 * jax.random.normal(ks[0], (3, 3, in_channels, mid), jnp.float32)
    b1 = 0.1 * jax.random.normal(ks[1], (1, mid), jnp.float32)
    g1 = 1.0 + 0.1 * jax.random.normal(ks[2], (1, mid), jnp.float32)
    be1 = 0.1 * jax.random.normal(ks[3], (1, mid), jnp.float32)
    w2 = 0.2 * jax.random.normal(ks[4], (3, 3, mid, out_channels), jnp.float32)
    b2 = 0.1 * jax.random.normal(ks[5], (1, out_channels), jnp.float32)
    g2 = 1.0 + 0.1 * jax.random.normal(ks[6], (1, out_channels), jnp.float32)
    be2 = 0.1 * jax.random.normal(ks[7], (1, out_channels), jnp.float32)
    return dict(w1=w1.reshape(9, in_channels, mid), b1=b1, g1=g1, be1=be1,
                w2=w2.reshape(9, mid, out_channels), b2=b2, g2=g2, be2=be2)


def down_reference(x, p):
    """Pure-JAX f32 reference mirroring PyTorch semantics (for verification)."""
    N, Cin, H, W = x.shape
    xp = x.reshape(N, Cin, H // 2, 2, W // 2, 2).max(axis=(3, 5))

    def conv(inp, w_kio, b):
        i, o = w_kio.shape[1], w_kio.shape[2]
        w = jnp.transpose(w_kio.reshape(3, 3, i, o), (3, 2, 0, 1))   # OIHW
        y = jax.lax.conv_general_dilated(
            inp, w, (1, 1), ((1, 1), (1, 1)),
            dimension_numbers=("NCHW", "OIHW", "NCHW"))
        return y + b.reshape(1, -1, 1, 1)

    def inorm(y, g, b):
        m = y.mean(axis=(2, 3), keepdims=True)
        v = ((y - m) ** 2).mean(axis=(2, 3), keepdims=True)
        return (y - m) * jax.lax.rsqrt(v + EPS) * g.reshape(1, -1, 1, 1) + b.reshape(1, -1, 1, 1)

    h = jax.nn.relu(inorm(conv(xp, p["w1"], p["b1"][0]), p["g1"][0], p["be1"][0]))
    h = jax.nn.relu(inorm(conv(h, p["w2"], p["b2"][0]), p["g2"][0], p["be2"][0]))
    return h


if __name__ == "__main__":
    key = jax.random.PRNGKey(0)
    kx, kp = jax.random.split(key)

    N, Cin, H, W = 2, 4, 16, 16
    Cout = 8

    x = jax.random.normal(kx, (N, Cin, H, W), jnp.float32)
    params = init_params(kp, Cin, Cout)

    out = jax.jit(down_pallas)(x, params)
    out = jax.block_until_ready(out)

    ref = down_reference(x, params)
    # bf16 MXU operands (f32 accumulation) vs f32 reference -> loosened tolerance.
    np.testing.assert_allclose(np.asarray(out), np.asarray(ref), rtol=5e-2, atol=1e-1)

    print("KERNEL_OK")
</pallas_src>

<mosaic_0001>
module attributes {stable_mosaic.version = 11 : i64} {
  func.func @_down_kernel(%arg0: i32, %arg1: memref<4x8x8x4xf32, #tpu.memory_space<vmem>>, %arg2: memref<9x4x8xbf16, #tpu.memory_space<vmem>>, %arg3: memref<1x8xf32, #tpu.memory_space<vmem>>, %arg4: memref<1x8xf32, #tpu.memory_space<vmem>>, %arg5: memref<1x8xf32, #tpu.memory_space<vmem>>, %arg6: memref<9x8x8xbf16, #tpu.memory_space<vmem>>, %arg7: memref<1x8xf32, #tpu.memory_space<vmem>>, %arg8: memref<1x8xf32, #tpu.memory_space<vmem>>, %arg9: memref<1x8xf32, #tpu.memory_space<vmem>>, %arg10: memref<1x8x8x8xf32, #tpu.memory_space<vmem>>, %arg11: memref<10x10x4xbf16, #tpu.memory_space<vmem>>, %arg12: memref<10x10x8xbf16, #tpu.memory_space<vmem>>) attributes {dimension_semantics = [#tpu.dimension_semantics<parallel>], iteration_bounds = array<i64: 2>, scalar_prefetch = 0 : i64, scratch_operands = 2 : i64, tpu.core_type = #tpu.core_type<tc>, window_params = [{transform_indices = @transform_0, window_bounds = array<i64: 4, 8, 8, 4>}, {pipeline_mode = #tpu.pipeline_mode<synchronous>, transform_indices = @transform_1, window_bounds = array<i64: 9, 4, 8>}, {pipeline_mode = #tpu.pipeline_mode<synchronous>, transform_indices = @transform_2, window_bounds = array<i64: 1, 8>}, {pipeline_mode = #tpu.pipeline_mode<synchronous>, transform_indices = @transform_3, window_bounds = array<i64: 1, 8>}, {pipeline_mode = #tpu.pipeline_mode<synchronous>, transform_indices = @transform_4, window_bounds = array<i64: 1, 8>}, {pipeline_mode = #tpu.pipeline_mode<synchronous>, transform_indices = @transform_5, window_bounds = array<i64: 9, 8, 8>}, {pipeline_mode = #tpu.pipeline_mode<synchronous>, transform_indices = @transform_6, window_bounds = array<i64: 1, 8>}, {pipeline_mode = #tpu.pipeline_mode<synchronous>, transform_indices = @transform_7, window_bounds = array<i64: 1, 8>}, {pipeline_mode = #tpu.pipeline_mode<synchronous>, transform_indices = @transform_8, window_bounds = array<i64: 1, 8>}, {transform_indices = @transform_9, window_bounds = array<i64: 1, 8, 8, 8>}]} {
    %c0 = arith.constant 0 : index
    %c0_0 = arith.constant 0 : index
    %c0_1 = arith.constant 0 : index
    %c0_2 = arith.constant 0 : index
    %0 = vector.load %arg1[%c0, %c0_0, %c0_1, %c0_2] : memref<4x8x8x4xf32, #tpu.memory_space<vmem>>, vector<1x8x8x4xf32>
    %1 = vector.shape_cast %0 : vector<1x8x8x4xf32> to vector<8x8x4xf32>
    %c1 = arith.constant 1 : index
    %c0_3 = arith.constant 0 : index
    %c0_4 = arith.constant 0 : index
    %c0_5 = arith.constant 0 : index
    %2 = vector.load %arg1[%c1, %c0_3, %c0_4, %c0_5] : memref<4x8x8x4xf32, #tpu.memory_space<vmem>>, vector<1x8x8x4xf32>
    %3 = vector.shape_cast %2 : vector<1x8x8x4xf32> to vector<8x8x4xf32>
    %4 = arith.maximumf %1, %3 : vector<8x8x4xf32>
    %c2 = arith.constant 2 : index
    %c0_6 = arith.constant 0 : index
    %c0_7 = arith.constant 0 : index
    %c0_8 = arith.constant 0 : index
    %5 = vector.load %arg1[%c2, %c0_6, %c0_7, %c0_8] : memref<4x8x8x4xf32, #tpu.memory_space<vmem>>, vector<1x8x8x4xf32>
    %6 = vector.shape_cast %5 : vector<1x8x8x4xf32> to vector<8x8x4xf32>
    %c3 = arith.constant 3 : index
    %c0_9 = arith.constant 0 : index
    %c0_10 = arith.constant 0 : index
    %c0_11 = arith.constant 0 : index
    %7 = vector.load %arg1[%c3, %c0_9, %c0_10, %c0_11] : memref<4x8x8x4xf32, #tpu.memory_space<vmem>>, vector<1x8x8x4xf32>
    %8 = vector.shape_cast %7 : vector<1x8x8x4xf32> to vector<8x8x4xf32>
    %9 = arith.maximumf %6, %8 : vector<8x8x4xf32>
    %10 = arith.maximumf %4, %9 : vector<8x8x4xf32>
    %cst = arith.constant 0.000000e+00 : bf16
    %11 = vector.broadcast %cst : bf16 to vector<10x10x4xbf16>
    %c0_12 = arith.constant 0 : index
    %c0_13 = arith.constant 0 : index
    %c0_14 = arith.constant 0 : index
    %12 = vector.load %arg11[%c0_12, %c0_13, %c0_14] : memref<10x10x4xbf16, #tpu.memory_space<vmem>>, vector<10x10x4xbf16>
    tpu.vector_store %arg11[%c0_12, %c0_13, %c0_14], %11 {strides = array<i32>} : memref<10x10x4xbf16, #tpu.memory_space<vmem>>, vector<10x10x4xbf16>,
    %13 = arith.truncf %10 : vector<8x8x4xf32> to vector<8x8x4xbf16>
    %c1_15 = arith.constant 1 : index
    %c1_16 = arith.constant 1 : index
    %c0_17 = arith.constant 0 : index
    %14 = vector.load %arg11[%c1_15, %c1_16, %c0_17] : memref<10x10x4xbf16, #tpu.memory_space<vmem>>, vector<8x8x4xbf16>
    tpu.vector_store %arg11[%c1_15, %c1_16, %c0_17], %13 {strides = array<i32>} : memref<10x10x4xbf16, #tpu.memory_space<vmem>>, vector<8x8x4xbf16>,
    %c0_18 = arith.constant 0 : index
    %c0_19 = arith.constant 0 : index
    %c0_20 = arith.constant 0 : index
    %15 = vector.load %arg11[%c0_18, %c0_19, %c0_20] : memref<10x10x4xbf16, #tpu.memory_space<vmem>>, vector<8x8x4xbf16>
    %16 = vector.shape_cast %15 : vector<8x8x4xbf16> to vector<64x4xbf16>
    %c0_21 = arith.constant 0 : index
    %c0_22 = arith.constant 0 : index
    %c0_23 = arith.constant 0 : index
    %17 = vector.load %arg2[%c0_21, %c0_22, %c0_23] : memref<9x4x8xbf16, #tpu.memory_space<vmem>>, vector<1x4x8xbf16>
    %18 = vector.shape_cast %17 : vector<1x4x8xbf16> to vector<4x8xbf16>
    %cst_24 = arith.constant dense<0.000000e+00> : vector<64x8xf32>
    %19 = tpu.matmul %16, %18, %cst_24 {dimension_numbers = #tpu.dot_dimension_numbers<[1], [0], [0], [1], [0, 0, 1, 1], [], []>} : vector<64x4xbf16>, vector<4x8xbf16>, vector<64x8xf32> -> vector<64x8xf32>
    %c0_25 = arith.constant 0 : index
    %c1_26 = arith.constant 1 : index
    %c0_27 = arith.constant 0 : index
    %20 = vector.load %arg11[%c0_25, %c1_26, %c0_27] : memref<10x10x4xbf16, #tpu.memory_space<vmem>>, vector<8x8x4xbf16>
    %21 = vector.shape_cast %20 : vector<8x8x4xbf16> to vector<64x4xbf16>
    %c1_28 = arith.constant 1 : index
    %c0_29 = arith.constant 0 : index
    %c0_30 = arith.constant 0 : index
    %22 = vector.load %arg2[%c1_28, %c0_29, %c0_30] : memref<9x4x8xbf16, #tpu.memory_space<vmem>>, vector<1x4x8xbf16>
    %23 = vector.shape_cast %22 : vector<1x4x8xbf16> to vector<4x8xbf16>
    %cst_31 = arith.constant dense<0.000000e+00> : vector<64x8xf32>
    %24 = tpu.matmul %21, %23, %cst_31 {dimension_numbers = #tpu.dot_dimension_numbers<[1], [0], [0], [1], [0, 0, 1, 1], [], []>} : vector<64x4xbf16>, vector<4x8xbf16>, vector<64x8xf32> -> vector<64x8xf32>
    %25 = arith.addf %19, %24 : vector<64x8xf32>
    %c0_32 = arith.constant 0 : index
    %c2_33 = arith.constant 2 : index
    %c0_34 = arith.constant 0 : index
    %26 = vector.load %arg11[%c0_32, %c2_33, %c0_34] : memref<10x10x4xbf16, #tpu.memory_space<vmem>>, vector<8x8x4xbf16>
    %27 = vector.shape_cast %26 : vector<8x8x4xbf16> to vector<64x4xbf16>
    %c2_35 = arith.constant 2 : index
    %c0_36 = arith.constant 0 : index
    %c0_37 = arith.constant 0 : index
    %28 = vector.load %arg2[%c2_35, %c0_36, %c0_37] : memref<9x4x8xbf16, #tpu.memory_space<vmem>>, vector<1x4x8xbf16>
    %29 = vector.shape_cast %28 : vector<1x4x8xbf16> to vector<4x8xbf16>
    %cst_38 = arith.constant dense<0.000000e+00> : vector<64x8xf32>
    %30 = tpu.matmul %27, %29, %cst_38 {dimension_numbers = #tpu.dot_dimension_numbers<[1], [0], [0], [1], [0, 0, 1, 1], [], []>} : vector<64x4xbf16>, vector<4x8xbf16>, vector<64x8xf32> -> vector<64x8xf32>
    %31 = arith.addf %25, %30 : vector<64x8xf32>
    %c1_39 = arith.constant 1 : index
    %c0_40 = arith.constant 0 : index
    %c0_41 = arith.constant 0 : index
    %32 = vector.load %arg11[%c1_39, %c0_40, %c0_41] : memref<10x10x4xbf16, #tpu.memory_space<vmem>>, vector<8x8x4xbf16>
    %33 = vector.shape_cast %32 : vector<8x8x4xbf16> to vector<64x4xbf16>
    %c3_42 = arith.constant 3 : index
    %c0_43 = arith.constant 0 : index
    %c0_44 = arith.constant 0 : index
    %34 = vector.load %arg2[%c3_42, %c0_43, %c0_44] : memref<9x4x8xbf16, #tpu.memory_space<vmem>>, vector<1x4x8xbf16>
    %35 = vector.shape_cast %34 : vector<1x4x8xbf16> to vector<4x8xbf16>
    %cst_45 = arith.constant dense<0.000000e+00> : vector<64x8xf32>
    %36 = tpu.matmul %33, %35, %cst_45 {dimension_numbers = #tpu.dot_dimension_numbers<[1], [0], [0], [1], [0, 0, 1, 1], [], []>} : vector<64x4xbf16>, vector<4x8xbf16>, vector<64x8xf32> -> vector<64x8xf32>
    %37 = arith.addf %31, %36 : vector<64x8xf32>
    %c1_46 = arith.constant 1 : index
    %c1_47 = arith.constant 1 : index
    %c0_48 = arith.constant 0 : index
    %38 = vector.load %arg11[%c1_46, %c1_47, %c0_48] : memref<10x10x4xbf16, #tpu.memory_space<vmem>>, vector<8x8x4xbf16>
    %39 = vector.shape_cast %38 : vector<8x8x4xbf16> to vector<64x4xbf16>
    %c4 = arith.constant 4 : index
    %c0_49 = arith.constant 0 : index
    %c0_50 = arith.constant 0 : index
    %40 = vector.load %arg2[%c4, %c0_49, %c0_50] : memref<9x4x8xbf16, #tpu.memory_space<vmem>>, vector<1x4x8xbf16>
    %41 = vector.shape_cast %40 : vector<1x4x8xbf16> to vector<4x8xbf16>
    %cst_51 = arith.constant dense<0.000000e+00> : vector<64x8xf32>
    %42 = tpu.matmul %39, %41, %cst_51 {dimension_numbers = #tpu.dot_dimension_numbers<[1], [0], [0], [1], [0, 0, 1, 1], [], []>} : vector<64x4xbf16>, vector<4x8xbf16>, vector<64x8xf32> -> vector<64x8xf32>
    %43 = arith.addf %37, %42 : vector<64x8xf32>
    %c1_52 = arith.constant 1 : index
    %c2_53 = arith.constant 2 : index
    %c0_54 = arith.constant 0 : index
    %44 = vector.load %arg11[%c1_52, %c2_53, %c0_54] : memref<10x10x4xbf16, #tpu.memory_space<vmem>>, vector<8x8x4xbf16>
    %45 = vector.shape_cast %44 : vector<8x8x4xbf16> to vector<64x4xbf16>
    %c5 = arith.constant 5 : index
    %c0_55 = arith.constant 0 : index
    %c0_56 = arith.constant 0 : index
    %46 = vector.load %arg2[%c5, %c0_55, %c0_56] : memref<9x4x8xbf16, #tpu.memory_space<vmem>>, vector<1x4x8xbf16>
    %47 = vector.shape_cast %46 : vector<1x4x8xbf16> to vector<4x8xbf16>
    %cst_57 = arith.constant dense<0.000000e+00> : vector<64x8xf32>
    %48 = tpu.matmul %45, %47, %cst_57 {dimension_numbers = #tpu.dot_dimension_numbers<[1], [0], [0], [1], [0, 0, 1, 1], [], []>} : vector<64x4xbf16>, vector<4x8xbf16>, vector<64x8xf32> -> vector<64x8xf32>
    %49 = arith.addf %43, %48 : vector<64x8xf32>
    %c2_58 = arith.constant 2 : index
    %c0_59 = arith.constant 0 : index
    %c0_60 = arith.constant 0 : index
    %50 = vector.load %arg11[%c2_58, %c0_59, %c0_60] : memref<10x10x4xbf16, #tpu.memory_space<vmem>>, vector<8x8x4xbf16>
    %51 = vector.shape_cast %50 : vector<8x8x4xbf16> to vector<64x4xbf16>
    %c6 = arith.constant 6 : index
    %c0_61 = arith.constant 0 : index
    %c0_62 = arith.constant 0 : index
    %52 = vector.load %arg2[%c6, %c0_61, %c0_62] : memref<9x4x8xbf16, #tpu.memory_space<vmem>>, vector<1x4x8xbf16>
    %53 = vector.shape_cast %52 : vector<1x4x8xbf16> to vector<4x8xbf16>
    %cst_63 = arith.constant dense<0.000000e+00> : vector<64x8xf32>
    %54 = tpu.matmul %51, %53, %cst_63 {dimension_numbers = #tpu.dot_dimension_numbers<[1], [0], [0], [1], [0, 0, 1, 1], [], []>} : vector<64x4xbf16>, vector<4x8xbf16>, vector<64x8xf32> -> vector<64x8xf32>
    %55 = arith.addf %49, %54 : vector<64x8xf32>
    %c2_64 = arith.constant 2 : index
    %c1_65 = arith.constant 1 : index
    %c0_66 = arith.constant 0 : index
    %56 = vector.load %arg11[%c2_64, %c1_65, %c0_66] : memref<10x10x4xbf16, #tpu.memory_space<vmem>>, vector<8x8x4xbf16>
    %57 = vector.shape_cast %56 : vector<8x8x4xbf16> to vector<64x4xbf16>
    %c7 = arith.constant 7 : index
    %c0_67 = arith.constant 0 : index
    %c0_68 = arith.constant 0 : index
    %58 = vector.load %arg2[%c7, %c0_67, %c0_68] : memref<9x4x8xbf16, #tpu.memory_space<vmem>>, vector<1x4x8xbf16>
    %59 = vector.shape_cast %58 : vector<1x4x8xbf16> to vector<4x8xbf16>
    %cst_69 = arith.constant dense<0.000000e+00> : vector<64x8xf32>
    %60 = tpu.matmul %57, %59, %cst_69 {dimension_numbers = #tpu.dot_dimension_numbers<[1], [0], [0], [1], [0, 0, 1, 1], [], []>} : vector<64x4xbf16>, vector<4x8xbf16>, vector<64x8xf32> -> vector<64x8xf32>
    %61 = arith.addf %55, %60 : vector<64x8xf32>
    %c2_70 = arith.constant 2 : index
    %c2_71 = arith.constant 2 : index
    %c0_72 = arith.constant 0 : index
    %62 = vector.load %arg11[%c2_70, %c2_71, %c0_72] : memref<10x10x4xbf16, #tpu.memory_space<vmem>>, vector<8x8x4xbf16>
    %63 = vector.shape_cast %62 : vector<8x8x4xbf16> to vector<64x4xbf16>
    %c8 = arith.constant 8 : index
    %c0_73 = arith.constant 0 : index
    %c0_74 = arith.constant 0 : index
    %64 = vector.load %arg2[%c8, %c0_73, %c0_74] : memref<9x4x8xbf16, #tpu.memory_space<vmem>>, vector<1x4x8xbf16>
    %65 = vector.shape_cast %64 : vector<1x4x8xbf16> to vector<4x8xbf16>
    %cst_75 = arith.constant dense<0.000000e+00> : vector<64x8xf32>
    %66 = tpu.matmul %63, %65, %cst_75 {dimension_numbers = #tpu.dot_dimension_numbers<[1], [0], [0], [1], [0, 0, 1, 1], [], []>} : vector<64x4xbf16>, vector<4x8xbf16>, vector<64x8xf32> -> vector<64x8xf32>
    %67 = arith.addf %61, %66 : vector<64x8xf32>
    %c0_76 = arith.constant 0 : index
    %c0_77 = arith.constant 0 : index
    %68 = vector.load %arg3[%c0_76, %c0_77] : memref<1x8xf32, #tpu.memory_space<vmem>>, vector<1x8xf32>
    %69 = vector.broadcast %68 : vector<1x8xf32> to vector<64x8xf32>
    %70 = arith.addf %67, %69 : vector<64x8xf32>
    %cst_78 = arith.constant dense<0.000000e+00> : vector<8xf32>
    %71 = vector.multi_reduction <add>, %70, %cst_78 [0] : vector<64x8xf32> to vector<8xf32>
    %72 = vector.shape_cast %71 : vector<8xf32> to vector<1x8xf32>
    %cst_79 = arith.constant 6.400000e+01 : f32
    %73 = vector.broadcast %cst_79 : f32 to vector<1x8xf32>
    %74 = arith.divf %72, %73 : vector<1x8xf32>
    %75 = arith.mulf %70, %70 : vector<64x8xf32>
    %cst_80 = arith.constant dense<0.000000e+00> : vector<8xf32>
    %76 = vector.multi_reduction <add>, %75, %cst_80 [0] : vector<64x8xf32> to vector<8xf32>
    %77 = vector.shape_cast %76 : vector<8xf32> to vector<1x8xf32>
    %cst_81 = arith.constant 6.400000e+01 : f32
    %78 = vector.broadcast %cst_81 : f32 to vector<1x8xf32>
    %79 = arith.divf %77, %78 : vector<1x8xf32>
    %80 = arith.mulf %74, %74 : vector<1x8xf32>
    %81 = arith.subf %79, %80 : vector<1x8xf32>
    %cst_82 = arith.constant 0.000000e+00 : f32
    %82 = vector.broadcast %cst_82 : f32 to vector<1x8xf32>
    %83 = arith.maximumf %81, %82 : vector<1x8xf32>
    %84 = vector.broadcast %74 : vector<1x8xf32> to vector<64x8xf32>
    %85 = arith.subf %70, %84 : vector<64x8xf32>
    %cst_83 = arith.constant 9.99999974E-6 : f32
    %86 = vector.broadcast %cst_83 : f32 to vector<1x8xf32>
    %87 = arith.addf %83, %86 : vector<1x8xf32>
    %88 = math.rsqrt %87 : vector<1x8xf32>
    %89 = vector.broadcast %88 : vector<1x8xf32> to vector<64x8xf32>
    %90 = arith.mulf %85, %89 : vector<64x8xf32>
    %c0_84 = arith.constant 0 : index
    %c0_85 = arith.constant 0 : index
    %91 = vector.load %arg4[%c0_84, %c0_85] : memref<1x8xf32, #tpu.memory_space<vmem>>, vector<1x8xf32>
    %92 = vector.broadcast %91 : vector<1x8xf32> to vector<64x8xf32>
    %93 = arith.mulf %90, %92 : vector<64x8xf32>
    %c0_86 = arith.constant 0 : index
    %c0_87 = arith.constant 0 : index
    %94 = vector.load %arg5[%c0_86, %c0_87] : memref<1x8xf32, #tpu.memory_space<vmem>>, vector<1x8xf32>
    %95 = vector.broadcast %94 : vector<1x8xf32> to vector<64x8xf32>
    %96 = arith.addf %93, %95 : vector<64x8xf32>
    %cst_88 = arith.constant 0.000000e+00 : f32
    %97 = vector.broadcast %cst_88 : f32 to vector<64x8xf32>
    %98 = arith.maximumf %96, %97 : vector<64x8xf32>
    %99 = vector.shape_cast %98 : vector<64x8xf32> to vector<8x8x8xf32>
    %cst_89 = arith.constant 0.000000e+00 : bf16
    %100 = vector.broadcast %cst_89 : bf16 to vector<10x10x8xbf16>
    %c0_90 = arith.constant 0 : index
    %c0_91 = arith.constant 0 : index
    %c0_92 = arith.constant 0 : index
    %101 = vector.load %arg12[%c0_90, %c0_91, %c0_92] : memref<10x10x8xbf16, #tpu.memory_space<vmem>>, vector<10x10x8xbf16>
    tpu.vector_store %arg12[%c0_90, %c0_91, %c0_92], %100 {strides = array<i32>} : memref<10x10x8xbf16, #tpu.memory_space<vmem>>, vector<10x10x8xbf16>,
    %102 = arith.truncf %99 : vector<8x8x8xf32> to vector<8x8x8xbf16>
    %c1_93 = arith.constant 1 : index
    %c1_94 = arith.constant 1 : index
    %c0_95 = arith.constant 0 : index
    %103 = vector.load %arg12[%c1_93, %c1_94, %c0_95] : memref<10x10x8xbf16, #tpu.memory_space<vmem>>, vector<8x8x8xbf16>
    tpu.vector_store %arg12[%c1_93, %c1_94, %c0_95], %102 {strides = array<i32>} : memref<10x10x8xbf16, #tpu.memory_space<vmem>>, vector<8x8x8xbf16>,
    %c0_96 = arith.constant 0 : index
    %c0_97 = arith.constant 0 : index
    %c0_98 = arith.constant 0 : index
    %104 = vector.load %arg12[%c0_96, %c0_97, %c0_98] : memref<10x10x8xbf16, #tpu.memory_space<vmem>>, vector<8x8x8xbf16>
    %105 = vector.shape_cast %104 : vector<8x8x8xbf16> to vector<64x8xbf16>
    %c0_99 = arith.constant 0 : index
    %c0_100 = arith.constant 0 : index
    %c0_101 = arith.constant 0 : index
    %106 = vector.load %arg6[%c0_99, %c0_100, %c0_101] : memref<9x8x8xbf16, #tpu.memory_space<vmem>>, vector<1x8x8xbf16>
    %107 = vector.shape_cast %106 : vector<1x8x8xbf16> to vector<8x8xbf16>
    %cst_102 = arith.constant dense<0.000000e+00> : vector<64x8xf32>
    %108 = tpu.matmul %105, %107, %cst_102 {dimension_numbers = #tpu.dot_dimension_numbers<[1], [0], [0], [1], [0, 0, 1, 1], [], []>} : vector<64x8xbf16>, vector<8x8xbf16>, vector<64x8xf32> -> vector<64x8xf32>
    %c0_103 = arith.constant 0 : index
    %c1_104 = arith.constant 1 : index
    %c0_105 = arith.constant 0 : index
    %109 = vector.load %arg12[%c0_103, %c1_104, %c0_105] : memref<10x10x8xbf16, #tpu.memory_space<vmem>>, vector<8x8x8xbf16>
    %110 = vector.shape_cast %109 : vector<8x8x8xbf16> to vector<64x8xbf16>
    %c1_106 = arith.constant 1 : index
    %c0_107 = arith.constant 0 : index
    %c0_108 = arith.constant 0 : index
    %111 = vector.load %arg6[%c1_106, %c0_107, %c0_108] : memref<9x8x8xbf16, #tpu.memory_space<vmem>>, vector<1x8x8xbf16>
    %112 = vector.shape_cast %111 : vector<1x8x8xbf16> to vector<8x8xbf16>
    %cst_109 = arith.constant dense<0.000000e+00> : vector<64x8xf32>
    %113 = tpu.matmul %110, %112, %cst_109 {dimension_numbers = #tpu.dot_dimension_numbers<[1], [0], [0], [1], [0, 0, 1, 1], [], []>} : vector<64x8xbf16>, vector<8x8xbf16>, vector<64x8xf32> -> vector<64x8xf32>
    %114 = arith.addf %108, %113 : vector<64x8xf32>
    %c0_110 = arith.constant 0 : index
    %c2_111 = arith.constant 2 : index
    %c0_112 = arith.constant 0 : index
    %115 = vector.load %arg12[%c0_110, %c2_111, %c0_112] : memref<10x10x8xbf16, #tpu.memory_space<vmem>>, vector<8x8x8xbf16>
    %116 = vector.shape_cast %115 : vector<8x8x8xbf16> to vector<64x8xbf16>
    %c2_113 = arith.constant 2 : index
    %c0_114 = arith.constant 0 : index
    %c0_115 = arith.constant 0 : index
    %117 = vector.load %arg6[%c2_113, %c0_114, %c0_115] : memref<9x8x8xbf16, #tpu.memory_space<vmem>>, vector<1x8x8xbf16>
    %118 = vector.shape_cast %117 : vector<1x8x8xbf16> to vector<8x8xbf16>
    %cst_116 = arith.constant dense<0.000000e+00> : vector<64x8xf32>
    %119 = tpu.matmul %116, %118, %cst_116 {dimension_numbers = #tpu.dot_dimension_numbers<[1], [0], [0], [1], [0, 0, 1, 1], [], []>} : vector<64x8xbf16>, vector<8x8xbf16>, vector<64x8xf32> -> vector<64x8xf32>
    %120 = arith.addf %114, %119 : vector<64x8xf32>
    %c1_117 = arith.constant 1 : index
    %c0_118 = arith.constant 0 : index
    %c0_119 = arith.constant 0 : index
    %121 = vector.load %arg12[%c1_117, %c0_118, %c0_119] : memref<10x10x8xbf16, #tpu.memory_space<vmem>>, vector<8x8x8xbf16>
    %122 = vector.shape_cast %121 : vector<8x8x8xbf16> to vector<64x8xbf16>
    %c3_120 = arith.constant 3 : index
    %c0_121 = arith.constant 0 : index
    %c0_122 = arith.constant 0 : index
    %123 = vector.load %arg6[%c3_120, %c0_121, %c0_122] : memref<9x8x8xbf16, #tpu.memory_space<vmem>>, vector<1x8x8xbf16>
    %124 = vector.shape_cast %123 : vector<1x8x8xbf16> to vector<8x8xbf16>
    %cst_123 = arith.constant dense<0.000000e+00> : vector<64x8xf32>
    %125 = tpu.matmul %122, %124, %cst_123 {dimension_numbers = #tpu.dot_dimension_numbers<[1], [0], [0], [1], [0, 0, 1, 1], [], []>} : vector<64x8xbf16>, vector<8x8xbf16>, vector<64x8xf32> -> vector<64x8xf32>
    %126 = arith.addf %120, %125 : vector<64x8xf32>
    %c1_124 = arith.constant 1 : index
    %c1_125 = arith.constant 1 : index
    %c0_126 = arith.constant 0 : index
    %127 = vector.load %arg12[%c1_124, %c1_125, %c0_126] : memref<10x10x8xbf16, #tpu.memory_space<vmem>>, vector<8x8x8xbf16>
    %128 = vector.shape_cast %127 : vector<8x8x8xbf16> to vector<64x8xbf16>
    %c4_127 = arith.constant 4 : index
    %c0_128 = arith.constant 0 : index
    %c0_129 = arith.constant 0 : index
    %129 = vector.load %arg6[%c4_127, %c0_128, %c0_129] : memref<9x8x8xbf16, #tpu.memory_space<vmem>>, vector<1x8x8xbf16>
    %130 = vector.shape_cast %129 : vector<1x8x8xbf16> to vector<8x8xbf16>
    %cst_130 = arith.constant dense<0.000000e+00> : vector<64x8xf32>
    %131 = tpu.matmul %128, %130, %cst_130 {dimension_numbers = #tpu.dot_dimension_numbers<[1], [0], [0], [1], [0, 0, 1, 1], [], []>} : vector<64x8xbf16>, vector<8x8xbf16>, vector<64x8xf32> -> vector<64x8xf32>
    %132 = arith.addf %126, %131 : vector<64x8xf32>
    %c1_131 = arith.constant 1 : index
    %c2_132 = arith.constant 2 : index
    %c0_133 = arith.constant 0 : index
    %133 = vector.load %arg12[%c1_131, %c2_132, %c0_133] : memref<10x10x8xbf16, #tpu.memory_space<vmem>>, vector<8x8x8xbf16>
    %134 = vector.shape_cast %133 : vector<8x8x8xbf16> to vector<64x8xbf16>
    %c5_134 = arith.constant 5 : index
    %c0_135 = arith.constant 0 : index
    %c0_136 = arith.constant 0 : index
    %135 = vector.load %arg6[%c5_134, %c0_135, %c0_136] : memref<9x8x8xbf16, #tpu.memory_space<vmem>>, vector<1x8x8xbf16>
    %136 = vector.shape_cast %135 : vector<1x8x8xbf16> to vector<8x8xbf16>
    %cst_137 = arith.constant dense<0.000000e+00> : vector<64x8xf32>
    %137 = tpu.matmul %134, %136, %cst_137 {dimension_numbers = #tpu.dot_dimension_numbers<[1], [0], [0], [1], [0, 0, 1, 1], [], []>} : vector<64x8xbf16>, vector<8x8xbf16>, vector<64x8xf32> -> vector<64x8xf32>
    %138 = arith.addf %132, %137 : vector<64x8xf32>
    %c2_138 = arith.constant 2 : index
    %c0_139 = arith.constant 0 : index
    %c0_140 = arith.constant 0 : index
    %139 = vector.load %arg12[%c2_138, %c0_139, %c0_140] : memref<10x10x8xbf16, #tpu.memory_space<vmem>>, vector<8x8x8xbf16>
    %140 = vector.shape_cast %139 : vector<8x8x8xbf16> to vector<64x8xbf16>
    %c6_141 = arith.constant 6 : index
    %c0_142 = arith.constant 0 : index
    %c0_143 = arith.constant 0 : index
    %141 = vector.load %arg6[%c6_141, %c0_142, %c0_143] : memref<9x8x8xbf16, #tpu.memory_space<vmem>>, vector<1x8x8xbf16>
    %142 = vector.shape_cast %141 : vector<1x8x8xbf16> to vector<8x8xbf16>
    %cst_144 = arith.constant dense<0.000000e+00> : vector<64x8xf32>
    %143 = tpu.matmul %140, %142, %cst_144 {dimension_numbers = #tpu.dot_dimension_numbers<[1], [0], [0], [1], [0, 0, 1, 1], [], []>} : vector<64x8xbf16>, vector<8x8xbf16>, vector<64x8xf32> -> vector<64x8xf32>
    %144 = arith.addf %138, %143 : vector<64x8xf32>
    %c2_145 = arith.constant 2 : index
    %c1_146 = arith.constant 1 : index
    %c0_147 = arith.constant 0 : index
    %145 = vector.load %arg12[%c2_145, %c1_146, %c0_147] : memref<10x10x8xbf16, #tpu.memory_space<vmem>>, vector<8x8x8xbf16>
    %146 = vector.shape_cast %145 : vector<8x8x8xbf16> to vector<64x8xbf16>
    %c7_148 = arith.constant 7 : index
    %c0_149 = arith.constant 0 : index
    %c0_150 = arith.constant 0 : index
    %147 = vector.load %arg6[%c7_148, %c0_149, %c0_150] : memref<9x8x8xbf16, #tpu.memory_space<vmem>>, vector<1x8x8xbf16>
    %148 = vector.shape_cast %147 : vector<1x8x8xbf16> to vector<8x8xbf16>
    %cst_151 = arith.constant dense<0.000000e+00> : vector<64x8xf32>
    %149 = tpu.matmul %146, %148, %cst_151 {dimension_numbers = #tpu.dot_dimension_numbers<[1], [0], [0], [1], [0, 0, 1, 1], [], []>} : vector<64x8xbf16>, vector<8x8xbf16>, vector<64x8xf32> -> vector<64x8xf32>
    %150 = arith.addf %144, %149 : vector<64x8xf32>
    %c2_152 = arith.constant 2 : index
    %c2_153 = arith.constant 2 : index
    %c0_154 = arith.constant 0 : index
    %151 = vector.load %arg12[%c2_152, %c2_153, %c0_154] : memref<10x10x8xbf16, #tpu.memory_space<vmem>>, vector<8x8x8xbf16>
    %152 = vector.shape_cast %151 : vector<8x8x8xbf16> to vector<64x8xbf16>
    %c8_155 = arith.constant 8 : index
    %c0_156 = arith.constant 0 : index
    %c0_157 = arith.constant 0 : index
    %153 = vector.load %arg6[%c8_155, %c0_156, %c0_157] : memref<9x8x8xbf16, #tpu.memory_space<vmem>>, vector<1x8x8xbf16>
    %154 = vector.shape_cast %153 : vector<1x8x8xbf16> to vector<8x8xbf16>
    %cst_158 = arith.constant dense<0.000000e+00> : vector<64x8xf32>
    %155 = tpu.matmul %152, %154, %cst_158 {dimension_numbers = #tpu.dot_dimension_numbers<[1], [0], [0], [1], [0, 0, 1, 1], [], []>} : vector<64x8xbf16>, vector<8x8xbf16>, vector<64x8xf32> -> vector<64x8xf32>
    %156 = arith.addf %150, %155 : vector<64x8xf32>
    %c0_159 = arith.constant 0 : index
    %c0_160 = arith.constant 0 : index
    %157 = vector.load %arg7[%c0_159, %c0_160] : memref<1x8xf32, #tpu.memory_space<vmem>>, vector<1x8xf32>
    %158 = vector.broadcast %157 : vector<1x8xf32> to vector<64x8xf32>
    %159 = arith.addf %156, %158 : vector<64x8xf32>
    %cst_161 = arith.constant dense<0.000000e+00> : vector<8xf32>
    %160 = vector.multi_reduction <add>, %159, %cst_161 [0] : vector<64x8xf32> to vector<8xf32>
    %161 = vector.shape_cast %160 : vector<8xf32> to vector<1x8xf32>
    %cst_162 = arith.constant 6.400000e+01 : f32
    %162 = vector.broadcast %cst_162 : f32 to vector<1x8xf32>
    %163 = arith.divf %161, %162 : vector<1x8xf32>
    %164 = arith.mulf %159, %159 : vector<64x8xf32>
    %cst_163 = arith.constant dense<0.000000e+00> : vector<8xf32>
    %165 = vector.multi_reduction <add>, %164, %cst_163 [0] : vector<64x8xf32> to vector<8xf32>
    %166 = vector.shape_cast %165 : vector<8xf32> to vector<1x8xf32>
    %cst_164 = arith.constant 6.400000e+01 : f32
    %167 = vector.broadcast %cst_164 : f32 to vector<1x8xf32>
    %168 = arith.divf %166, %167 : vector<1x8xf32>
    %169 = arith.mulf %163, %163 : vector<1x8xf32>
    %170 = arith.subf %168, %169 : vector<1x8xf32>
    %cst_165 = arith.constant 0.000000e+00 : f32
    %171 = vector.broadcast %cst_165 : f32 to vector<1x8xf32>
    %172 = arith.maximumf %170, %171 : vector<1x8xf32>
    %173 = vector.broadcast %163 : vector<1x8xf32> to vector<64x8xf32>
    %174 = arith.subf %159, %173 : vector<64x8xf32>
    %cst_166 = arith.constant 9.99999974E-6 : f32
    %175 = vector.broadcast %cst_166 : f32 to vector<1x8xf32>
    %176 = arith.addf %172, %175 : vector<1x8xf32>
    %177 = math.rsqrt %176 : vector<1x8xf32>
    %178 = vector.broadcast %177 : vector<1x8xf32> to vector<64x8xf32>
    %179 = arith.mulf %174, %178 : vector<64x8xf32>
    %c0_167 = arith.constant 0 : index
    %c0_168 = arith.constant 0 : index
    %180 = vector.load %arg8[%c0_167, %c0_168] : memref<1x8xf32, #tpu.memory_space<vmem>>, vector<1x8xf32>
    %181 = vector.broadcast %180 : vector<1x8xf32> to vector<64x8xf32>
    %182 = arith.mulf %179, %181 : vector<64x8xf32>
    %c0_169 = arith.constant 0 : index
    %c0_170 = arith.constant 0 : index
    %183 = vector.load %arg9[%c0_169, %c0_170] : memref<1x8xf32, #tpu.memory_space<vmem>>, vector<1x8xf32>
    %184 = vector.broadcast %183 : vector<1x8xf32> to vector<64x8xf32>
    %185 = arith.addf %182, %184 : vector<64x8xf32>
    %cst_171 = arith.constant 0.000000e+00 : f32
    %186 = vector.broadcast %cst_171 : f32 to vector<64x8xf32>
    %187 = arith.maximumf %185, %186 : vector<64x8xf32>
    %188 = vector.shape_cast %187 : vector<64x8xf32> to vector<8x8x8xf32>
    %c0_172 = arith.constant 0 : index
    %c0_173 = arith.constant 0 : index
    %c0_174 = arith.constant 0 : index
    %c0_175 = arith.constant 0 : index
    %189 = vector.load %arg10[%c0_172, %c0_173, %c0_174, %c0_175] : memref<1x8x8x8xf32, #tpu.memory_space<vmem>>, vector<1x8x8x8xf32>
    %190 = vector.shape_cast %189 : vector<1x8x8x8xf32> to vector<8x8x8xf32>
    %191 = vector.shape_cast %188 : vector<8x8x8xf32> to vector<1x8x8x8xf32>
    tpu.vector_store %arg10[%c0_172, %c0_173, %c0_174, %c0_175], %191 {strides = array<i32>} : memref<1x8x8x8xf32, #tpu.memory_space<vmem>>, vector<1x8x8x8xf32>,
    return
  }
  func.func @transform_0(%arg0: i32) -> (i32, i32, i32, i32) {
    %c0_i32 = arith.constant 0 : i32
    %c0_i32_0 = arith.constant 0 : i32
    %c0_i32_1 = arith.constant 0 : i32
    %c0_i32_2 = arith.constant 0 : i32
    return %arg0, %c0_i32, %c0_i32_0, %c0_i32_1 : i32, i32, i32, i32
  }
  func.func @transform_1(%arg0: i32) -> (i32, i32, i32) {
    %c0_i32 = arith.constant 0 : i32
    %c0_i32_0 = arith.constant 0 : i32
    %c0_i32_1 = arith.constant 0 : i32
    %c0_i32_2 = arith.constant 0 : i32
    return %c0_i32, %c0_i32_0, %c0_i32_1 : i32, i32, i32
  }
  func.func @transform_2(%arg0: i32) -> (i32, i32) {
    %c0_i32 = arith.constant 0 : i32
    %c0_i32_0 = arith.constant 0 : i32
    %c0_i32_1 = arith.constant 0 : i32
    return %c0_i32, %c0_i32_0 : i32, i32
  }
  func.func @transform_3(%arg0: i32) -> (i32, i32) {
    %c0_i32 = arith.constant 0 : i32
    %c0_i32_0 = arith.constant 0 : i32
    %c0_i32_1 = arith.constant 0 : i32
    return %c0_i32, %c0_i32_0 : i32, i32
  }
  func.func @transform_4(%arg0: i32) -> (i32, i32) {
    %c0_i32 = arith.constant 0 : i32
    %c0_i32_0 = arith.constant 0 : i32
    %c0_i32_1 = arith.constant 0 : i32
    return %c0_i32, %c0_i32_0 : i32, i32
  }
  func.func @transform_5(%arg0: i32) -> (i32, i32, i32) {
    %c0_i32 = arith.constant 0 : i32
    %c0_i32_0 = arith.constant 0 : i32
    %c0_i32_1 = arith.constant 0 : i32
    %c0_i32_2 = arith.constant 0 : i32
    return %c0_i32, %c0_i32_0, %c0_i32_1 : i32, i32, i32
  }
  func.func @transform_6(%arg0: i32) -> (i32, i32) {
    %c0_i32 = arith.constant 0 : i32
    %c0_i32_0 = arith.constant 0 : i32
    %c0_i32_1 = arith.constant 0 : i32
    return %c0_i32, %c0_i32_0 : i32, i32
  }
  func.func @transform_7(%arg0: i32) -> (i32, i32) {
    %c0_i32 = arith.constant 0 : i32
    %c0_i32_0 = arith.constant 0 : i32
    %c0_i32_1 = arith.constant 0 : i32
    return %c0_i32, %c0_i32_0 : i32, i32
  }
  func.func @transform_8(%arg0: i32) -> (i32, i32) {
    %c0_i32 = arith.constant 0 : i32
    %c0_i32_0 = arith.constant 0 : i32
    %c0_i32_1 = arith.constant 0 : i32
    return %c0_i32, %c0_i32_0 : i32, i32
  }
  func.func @transform_9(%arg0: i32) -> (i32, i32, i32, i32) {
    %c0_i32 = arith.constant 0 : i32
    %c0_i32_0 = arith.constant 0 : i32
    %c0_i32_1 = arith.constant 0 : i32
    %c0_i32_2 = arith.constant 0 : i32
    return %arg0, %c0_i32, %c0_i32_0, %c0_i32_1 : i32, i32, i32, i32
  }
}

</mosaic_0001>

<llo_original>
// kernel: down_pallas.1
$region0: #{down_pallas.1}
  #allocation0 [shape = 'u32[]', space=smem, size = 0x4, offset = 0x4, fixed_abs, tag = 'smem constant byte address 0x4 - core index']
  #allocation1 [shape = 'u32[144,128]{1,0:T(1,128)}', space=vmem, size = 0x12000, scoped, tag = 'internal scratch']
  #allocation2 [shape = 'bf16[10,10,4]{2,1,0:T(8,128)(2,1)}', space=vmem, size = 0xa000, scoped, tag = 'scratch operand']
  #allocation3 [shape = 'bf16[10,10,8]{2,1,0:T(8,128)(2,1)}', space=vmem, size = 0xa000, scoped, tag = 'scratch operand']
  %s0 = inlined_call_operand.vmem [shape: f32[8,8,8,4], index: 0, kind: input, shape index: {}]
  %s1 = inlined_call_operand.vmem [shape: bf16[9,4,8], index: 1, kind: input, shape index: {}]
  %s2 = inlined_call_operand.vmem [shape: f32[1,8], index: 2, kind: input, shape index: {}]
  %s3 = inlined_call_operand.vmem [shape: f32[1,8], index: 3, kind: input, shape index: {}]
  %s4 = inlined_call_operand.vmem [shape: f32[1,8], index: 4, kind: input, shape index: {}]
  %s5 = inlined_call_operand.vmem [shape: bf16[9,8,8], index: 5, kind: input, shape index: {}]
  %s6 = inlined_call_operand.vmem [shape: f32[1,8], index: 6, kind: input, shape index: {}]
  %s7 = inlined_call_operand.vmem [shape: f32[1,8], index: 7, kind: input, shape index: {}]
  %s8 = inlined_call_operand.vmem [shape: f32[1,8], index: 8, kind: input, shape index: {}]
  %s9 = inlined_call_operand.vmem [shape: f32[2,8,8,8], index: 9, kind: output, shape index: {}]
  %s10 = sld [smem:[#allocation0]]
  $region69: #{down_pallas.1} parent=0
    _
  %s12 = ssub.s32 1, %s10
  %s13 = scalar_select 0, %s12, %s10
  loop: start=0, step=1, limit=4
  $region2: #{down_pallas.1} parent=0 // loop_pre_header
    _
  $region3: #{down_pallas.1} parent=0 // loop_header
    %s15 = sphi 0, %s19
    %p16 = scmp.ge.s32.totalorder %s15, 4
    %s25 = sphi 0, %s27
    %s28 = sphi 0, %s25
    %s29 = sphi 0, %s28
    %s45 = sphi 0, %s29
    %s49 = sphi 0, %s49
    %s51 = sphi 0, %s49
    %s52 = sphi 0, %s51
    %s66 = sphi 0, %s52
    %s70 = sphi 0, %s70
    %s72 = sphi 0, %s70
    %s73 = sphi 0, %s72
    %s87 = sphi 0, %s73
    %s91 = sphi 0, %s91
    %s93 = sphi 0, %s91
    %s94 = sphi 0, %s93
    %s108 = sphi 0, %s94
    %s112 = sphi 0, %s112
    %s114 = sphi 0, %s112
    %s115 = sphi 0, %s114
    %s129 = sphi 0, %s115
    %s133 = sphi 0, %s133
    %s135 = sphi 0, %s133
    %s136 = sphi 0, %s135
    %s150 = sphi 0, %s136
    %s154 = sphi 0, %s154
    %s156 = sphi 0, %s154
    %s157 = sphi 0, %s156
    %s171 = sphi 0, %s157
    %s175 = sphi 0, %s175
    %s177 = sphi 0, %s175
    %s178 = sphi 0, %s177
    %s192 = sphi 0, %s178
    %s196 = sphi 0, %s196
    %s198 = sphi 0, %s196
    %s199 = sphi 0, %s198
    %s213 = sphi 0, %s199
    %s219 = sphi 0, %s221
    %s222 = sphi 0, %s219
    %s223 = sphi 0, %s222
    %s239 = sphi 0, %s223
  $region4: #{down_pallas.1} parent=0 // loop_header_branch
    %18 = sbr.rel (%p16) target = $region8
  $region5: #{down_pallas.1} parent=0 // loop_body
    %s20 = ssub.s32 %s15, 1
    %s21 = ssub.s32 %s15, 2
    %s22 = sadd.s32 %s15, 1
    %s23 = ssub.s32 %s15, %s22
    %p24 = scmp.eq.s32.totalorder %s23, 0
    %s26 = sadd.s32 %s25, 1
    %s27 = scalar_select %p24, %s25, %s26
    %p30 = pneg %p24
    %p31 = scmp.eq.s32.totalorder %s15, 1
    %p32 = por %p30, %p31
    %p33 = scmp.ne.s32.totalorder %s25, %s28
    %p34 = scmp.eq.s32.totalorder %s15, 0
    %p35 = por %p33, %p34
    %p36 = scmp.ne.s32.totalorder %s25, %s28
    %p37 = scmp.eq.s32.totalorder %s20, 1
    %p38 = por %p36, %p37
    %p39 = scmp.ne.s32.totalorder %s28, %s29
    %p40 = scmp.eq.s32.totalorder %s20, 0
    %p41 = por %p39, %p40
    %p42 = scmp.ne.s32.totalorder %s28, %s29
    %p43 = scmp.eq.s32.totalorder %s21, 1
    %p44 = por %p42, %p43
    %p46 = scmp.ne.s32.totalorder %s29, %s45
    %p47 = scmp.eq.s32.totalorder %s21, 0
    %p48 = por %p46, %p47
    %s50 = sadd.s32 %s49, 1
    %p53 = scmp.eq.s32.totalorder %s15, 1
    %p54 = scmp.ne.s32.totalorder %s49, %s51
    %p55 = scmp.eq.s32.totalorder %s15, 0
    %p56 = por %p54, %p55
    %p57 = scmp.ne.s32.totalorder %s49, %s51
    %p58 = scmp.eq.s32.totalorder %s20, 1
    %p59 = por %p57, %p58
    %p60 = scmp.ne.s32.totalorder %s51, %s52
    %p61 = scmp.eq.s32.totalorder %s20, 0
    %p62 = por %p60, %p61
    %p63 = scmp.ne.s32.totalorder %s51, %s52
    %p64 = scmp.eq.s32.totalorder %s21, 1
    %p65 = por %p63, %p64
    %p67 = scmp.ne.s32.totalorder %s52, %s66
    %p68 = scmp.eq.s32.totalorder %s21, 0
    %p69 = por %p67, %p68
    %s71 = sadd.s32 %s70, 1
    %p74 = scmp.eq.s32.totalorder %s15, 1
    %p75 = scmp.ne.s32.totalorder %s70, %s72
    %p76 = scmp.eq.s32.totalorder %s15, 0
    %p77 = por %p75, %p76
    %p78 = scmp.ne.s32.totalorder %s70, %s72
    %p79 = scmp.eq.s32.totalorder %s20, 1
    %p80 = por %p78, %p79
    %p81 = scmp.ne.s32.totalorder %s72, %s73
    %p82 = scmp.eq.s32.totalorder %s20, 0
    %p83 = por %p81, %p82
    %p84 = scmp.ne.s32.totalorder %s72, %s73
    %p85 = scmp.eq.s32.totalorder %s21, 1
    %p86 = por %p84, %p85
    %p88 = scmp.ne.s32.totalorder %s73, %s87
    %p89 = scmp.eq.s32.totalorder %s21, 0
    %p90 = por %p88, %p89
    %s92 = sadd.s32 %s91, 1
    %p95 = scmp.eq.s32.totalorder %s15, 1
    %p96 = scmp.ne.s32.totalorder %s91, %s93
    %p97 = scmp.eq.s32.totalorder %s15, 0
    %p98 = por %p96, %p97
    %p99 = scmp.ne.s32.totalorder %s91, %s93
    %p100 = scmp.eq.s32.totalorder %s20, 1
    %p101 = por %p99, %p100
    %p102 = scmp.ne.s32.totalorder %s93, %s94
    %p103 = scmp.eq.s32.totalorder %s20, 0
    %p104 = por %p102, %p103
    %p105 = scmp.ne.s32.totalorder %s93, %s94
    %p106 = scmp.eq.s32.totalorder %s21, 1
    %p107 = por %p105, %p106
    %p109 = scmp.ne.s32.totalorder %s94, %s108
    %p110 = scmp.eq.s32.totalorder %s21, 0
    %p111 = por %p109, %p110
    %s113 = sadd.s32 %s112, 1
    %p116 = scmp.eq.s32.totalorder %s15, 1
    %p117 = scmp.ne.s32.totalorder %s112, %s114
    %p118 = scmp.eq.s32.totalorder %s15, 0
    %p119 = por %p117, %p118
    %p120 = scmp.ne.s32.totalorder %s112, %s114
    %p121 = scmp.eq.s32.totalorder %s20, 1
    %p122 = por %p120, %p121
    %p123 = scmp.ne.s32.totalorder %s114, %s115
    %p124 = scmp.eq.s32.totalorder %s20, 0
    %p125 = por %p123, %p124
    %p126 = scmp.ne.s32.totalorder %s114, %s115
    %p127 = scmp.eq.s32.totalorder %s21, 1
    %p128 = por %p126, %p127
    %p130 = scmp.ne.s32.totalorder %s115, %s129
    %p131 = scmp.eq.s32.totalorder %s21, 0
    %p132 = por %p130, %p131
    %s134 = sadd.s32 %s133, 1
    %p137 = scmp.eq.s32.totalorder %s15, 1
    %p138 = scmp.ne.s32.totalorder %s133, %s135
    %p139 = scmp.eq.s32.totalorder %s15, 0
    %p140 = por %p138, %p139
    %p141 = scmp.ne.s32.totalorder %s133, %s135
    %p142 = scmp.eq.s32.totalorder %s20, 1
    %p143 = por %p141, %p142
    %p144 = scmp.ne.s32.totalorder %s135, %s136
    %p145 = scmp.eq.s32.totalorder %s20, 0
    %p146 = por %p144, %p145
    %p147 = scmp.ne.s32.totalorder %s135, %s136
    %p148 = scmp.eq.s32.totalorder %s21, 1
    %p149 = por %p147, %p148
    %p151 = scmp.ne.s32.totalorder %s136, %s150
    %p152 = scmp.eq.s32.totalorder %s21, 0
    %p153 = por %p151, %p152
    %s155 = sadd.s32 %s154, 1
    %p158 = scmp.eq.s32.totalorder %s15, 1
    %p159 = scmp.ne.s32.totalorder %s154, %s156
    %p160 = scmp.eq.s32.totalorder %s15, 0
    %p161 = por %p159, %p160
    %p162 = scmp.ne.s32.totalorder %s154, %s156
    %p163 = scmp.eq.s32.totalorder %s20, 1
    %p164 = por %p162, %p163
    %p165 = scmp.ne.s32.totalorder %s156, %s157
    %p166 = scmp.eq.s32.totalorder %s20, 0
    %p167 = por %p165, %p166
    %p168 = scmp.ne.s32.totalorder %s156, %s157
    %p169 = scmp.eq.s32.totalorder %s21, 1
    %p170 = por %p168, %p169
    %p172 = scmp.ne.s32.totalorder %s157, %s171
    %p173 = scmp.eq.s32.totalorder %s21, 0
    %p174 = por %p172, %p173
    %s176 = sadd.s32 %s175, 1
    %p179 = scmp.eq.s32.totalorder %s15, 1
    %p180 = scmp.ne.s32.totalorder %s175, %s177
    %p181 = scmp.eq.s32.totalorder %s15, 0
    %p182 = por %p180, %p181
    %p183 = scmp.ne.s32.totalorder %s175, %s177
    %p184 = scmp.eq.s32.totalorder %s20, 1
    %p185 = por %p183, %p184
    %p186 = scmp.ne.s32.totalorder %s177, %s178
    %p187 = scmp.eq.s32.totalorder %s20, 0
    %p188 = por %p186, %p187
    %p189 = scmp.ne.s32.totalorder %s177, %s178
    %p190 = scmp.eq.s32.totalorder %s21, 1
    %p191 = por %p189, %p190
    %p193 = scmp.ne.s32.totalorder %s178, %s192
    %p194 = scmp.eq.s32.totalorder %s21, 0
    %p195 = por %p193, %p194
    %s197 = sadd.s32 %s196, 1
    %p200 = scmp.eq.s32.totalorder %s15, 1
    %p201 = scmp.ne.s32.totalorder %s196, %s198
    %p202 = scmp.eq.s32.totalorder %s15, 0
    %p203 = por %p201, %p202
    %p204 = scmp.ne.s32.totalorder %s196, %s198
    %p205 = scmp.eq.s32.totalorder %s20, 1
    %p206 = por %p204, %p205
    %p207 = scmp.ne.s32.totalorder %s198, %s199
    %p208 = scmp.eq.s32.totalorder %s20, 0
    %p209 = por %p207, %p208
    %p210 = scmp.ne.s32.totalorder %s198, %s199
    %p211 = scmp.eq.s32.totalorder %s21, 1
    %p212 = por %p210, %p211
    %p214 = scmp.ne.s32.totalorder %s199, %s213
    %p215 = scmp.eq.s32.totalorder %s21, 0
    %p216 = por %p214, %p215
    %s217 = ssub.s32 %s15, %s22
    %p218 = scmp.eq.s32.totalorder %s217, 0
    %s220 = sadd.s32 %s219, 1
    %s221 = scalar_select %p218, %s219, %s220
    %p224 = pneg %p218
    %p225 = scmp.eq.s32.totalorder %s15, 1
    %p226 = por %p224, %p225
    %p227 = scmp.ne.s32.totalorder %s219, %s222
    %p228 = scmp.eq.s32.totalorder %s15, 0
    %p229 = por %p227, %p228
    %p230 = scmp.ne.s32.totalorder %s219, %s222
    %p231 = scmp.eq.s32.totalorder %s20, 1
    %p232 = por %p230, %p231
    %p233 = scmp.ne.s32.totalorder %s222, %s223
    %p234 = scmp.eq.s32.totalorder %s20, 0
    %p235 = por %p233, %p234
    %p236 = scmp.ne.s32.totalorder %s222, %s223
    %p237 = scmp.eq.s32.totalorder %s21, 1
    %p238 = por %p236, %p237
    %p240 = scmp.ne.s32.totalorder %s223, %s239
    %p241 = scmp.eq.s32.totalorder %s21, 0
    %p242 = por %p240, %p241
    %p243 = scmp.le.s32.totalorder 1, %s15
    %p244 = scmp.lt.s32.totalorder %s15, 3
    %p245 = pnand %p243, %p244
    %p246 = pneg %p245
    // Predicated region
    $region9: #{down_pallas.1} parent=5 // pred_check
      _
    $region10: #{down_pallas.1} parent=5 // pred_check_branch
      %248 = sbr.rel (%p245) target = $region12
    $region11: #{down_pallas.1} parent=5 // pred_region
      %s249 = ssub.s32 %s15, 1
      // Predicated region
      $region13: #{down_pallas.1} parent=11 // pred_check
        %p250 = pneg %p62
      $region14: #{down_pallas.1} parent=11 // pred_check_branch
        %252 = sbr.rel (%p250) target = $region16
      $region15: #{down_pallas.1} parent=11 // pred_region
        _
      $region16: #{down_pallas.1} parent=11 // pred_fallthru
        _
      // Predicated region
      $region17: #{down_pallas.1} parent=11 // pred_check
        %p253 = pneg %p83
      $region18: #{down_pallas.1} parent=11 // pred_check_branch
        %255 = sbr.rel (%p253) target = $region20
      $region19: #{down_pallas.1} parent=11 // pred_region
        _
      $region20: #{down_pallas.1} parent=11 // pred_fallthru
        _
      // Predicated region
      $region21: #{down_pallas.1} parent=11 // pred_check
        %p256 = pneg %p104
      $region22: #{down_pallas.1} parent=11 // pred_check_branch
        %258 = sbr.rel (%p256) target = $region24
      $region23: #{down_pallas.1} parent=11 // pred_region
        _
      $region24: #{down_pallas.1} parent=11 // pred_fallthru
        _
      // Predicated region
      $region25: #{down_pallas.1} parent=11 // pred_check
        %p259 = pneg %p125
      $region26: #{down_pallas.1} parent=11 // pred_check_branch
        %261 = sbr.rel (%p259) target = $region28
      $region27: #{down_pallas.1} parent=11 // pred_region
        _
      $region28: #{down_pallas.1} parent=11 // pred_fallthru
        _
      // Predicated region
      $region29: #{down_pallas.1} parent=11 // pred_check
        %p262 = pneg %p146
      $region30: #{down_pallas.1} parent=11 // pred_check_branch
        %264 = sbr.rel (%p262) target = $region32
      $region31: #{down_pallas.1} parent=11 // pred_region
        _
      $region32: #{down_pallas.1} parent=11 // pred_fallthru
        _
      // Predicated region
      $region33: #{down_pallas.1} parent=11 // pred_check
        %p265 = pneg %p167
      $region34: #{down_pallas.1} parent=11 // pred_check_branch
        %267 = sbr.rel (%p265) target = $region36
      $region35: #{down_pallas.1} parent=11 // pred_region
        _
      $region36: #{down_pallas.1} parent=11 // pred_fallthru
        _
      // Predicated region
      $region37: #{down_pallas.1} parent=11 // pred_check
        %p268 = pneg %p188
      $region38: #{down_pallas.1} parent=11 // pred_check_branch
        %270 = sbr.rel (%p268) target = $region40
      $region39: #{down_pallas.1} parent=11 // pred_region
        _
      $region40: #{down_pallas.1} parent=11 // pred_fallthru
        _
      // Predicated region
      $region41: #{down_pallas.1} parent=11 // pred_check
        %p271 = pneg %p209
      $region42: #{down_pallas.1} parent=11 // pred_check_branch
        %273 = sbr.rel (%p271) target = $region44
      $region43: #{down_pallas.1} parent=11 // pred_region
        _
      $region44: #{down_pallas.1} parent=11 // pred_fallthru
        _
    $region12: #{down_pallas.1} parent=5 // pred_fallthru
      _
    %p274 = scmp.lt.s32.totalorder %s15, 2
    // Predicated region
    $region45: #{down_pallas.1} parent=5 // pred_check
      %p275 = pneg %p274
    $region46: #{down_pallas.1} parent=5 // pred_check_branch
      %277 = sbr.rel (%p275) target = $region48
    $region47: #{down_pallas.1} parent=5 // pred_region
      // Predicated region
      $region49: #{down_pallas.1} parent=47 // pred_check
        %p278 = pneg %p35
      $region50: #{down_pallas.1} parent=47 // pred_check_branch
        %280 = sbr.rel (%p278) target = $region52
      $region51: #{down_pallas.1} parent=47 // pred_region
        %s281 = smul.u32 4, %s15
        %p282 = scmp.lt.s32.totalorder %s281, 7
        %s283 = scalar_select %p282, %s281, 7
        %s284 = smul.addr %s283, 8
        %s285 = smul.addr %s284, 8
        %s286 = scalar_lea.vmem %s0, %s285
        %s287 = smul.u32 4, %s15
      $region52: #{down_pallas.1} parent=47 // pred_fallthru
        _
    $region48: #{down_pallas.1} parent=5 // pred_fallthru
      _
    %p288 = scmp.le.s32.totalorder 1, %s15
    %p289 = scmp.lt.s32.totalorder %s15, 3
    %p290 = pnand %p288, %p289
    %p291 = pneg %p290
    // Predicated region
    $region53: #{down_pallas.1} parent=5 // pred_check
      _
    $region54: #{down_pallas.1} parent=5 // pred_check_branch
      %293 = sbr.rel (%p290) target = $region56
    $region55: #{down_pallas.1} parent=5 // pred_region
      %s294 = ssub.s32 %s15, 1
      %s295 = smul.u32 4, %s20
      %p296 = scmp.lt.s32.totalorder %s295, 7
      %s297 = scalar_select %p296, %s295, 7
      %s298 = smul.addr %s297, 8
      %s299 = smul.addr %s298, 8
      %s300 = scalar_lea.vmem %s0, %s299
      %p301 = pneg %p41
      %p302 = pneg %p38
      %p303 = pneg %p62
      %p304 = pneg %p59
      %p305 = pneg %p83
      %p306 = pneg %p80
      %p307 = pneg %p104
      %p308 = pneg %p101
      %p309 = pneg %p125
      %p310 = pneg %p122
      %p311 = pneg %p146
      %p312 = pneg %p143
      %p313 = pneg %p167
      %p314 = pneg %p164
      %p315 = pneg %p188
      %p316 = pneg %p185
      %p317 = pneg %p209
      %p318 = pneg %p206
      %p319 = pneg %p235
      %p320 = pneg %p232
      %p321 = scmp.lt.s32.totalorder %s20, 1
      %s322 = scalar_select %p321, %s20, 1
      %s323 = smul.addr %s322, 8
      %s324 = smul.addr %s323, 8
      %s325 = scalar_lea.vmem %s9, %s324
      %s326 = smul.u32 4, %s20
      %p327 = scmp.lt.s32.totalorder %s326, 7
      %s328 = scalar_select %p327, %s326, 7
      %s329 = smul.addr %s328, 8
      %s330 = smul.addr %s329, 8
      %s331 = scalar_lea.vmem %s0, %s330
      %s332 = smul.u32 4, %s20
      %p333 = scmp.lt.s32.totalorder %s20, 1
      %s334 = scalar_select %p333, %s20, 1
      %s335 = smul.addr %s334, 8
      %s336 = smul.addr %s335, 8
      %s337 = scalar_lea.vmem %s9, %s336
      %v339 = vld [vmem:[%s331] sm:$0xff]
      %v340 = vld [vmem:[%s331 + $0x8] sm:$0xff]
      %v341 = vld [vmem:[%s331 + $0x10] sm:$0xff]
      %v342 = vld [vmem:[%s331 + $0x18] sm:$0xff]
      %v343 = vld [vmem:[%s331 + $0x20] sm:$0xff]
      %v344 = vld [vmem:[%s331 + $0x28] sm:$0xff]
      %v345 = vld [vmem:[%s331 + $0x30] sm:$0xff]
      %v346 = vld [vmem:[%s331 + $0x38] sm:$0xff]
      %s347 = scalar_lea.vmem %s331, 64
      %v348 = vld [vmem:[%s347] sm:$0xff]
      %v349 = vld [vmem:[%s347 + $0x8] sm:$0xff]
      %v350 = vld [vmem:[%s347 + $0x10] sm:$0xff]
      %v351 = vld [vmem:[%s347 + $0x18] sm:$0xff]
      %v352 = vld [vmem:[%s347 + $0x20] sm:$0xff]
      %v353 = vld [vmem:[%s347 + $0x28] sm:$0xff]
      %v354 = vld [vmem:[%s347 + $0x30] sm:$0xff]
      %v355 = vld [vmem:[%s347 + $0x38] sm:$0xff]
      %v356 = vmax.f32 %v339, %v348
      %v357 = vmax.f32 %v340, %v349
      %v358 = vmax.f32 %v341, %v350
      %v359 = vmax.f32 %v342, %v351
      %v360 = vmax.f32 %v343, %v352
      %v361 = vmax.f32 %v344, %v353
      %v362 = vmax.f32 %v345, %v354
      %v363 = vmax.f32 %v346, %v355
      %s364 = scalar_lea.vmem %s331, 128
      %v365 = vld [vmem:[%s364] sm:$0xff]
      %v366 = vld [vmem:[%s364 + $0x8] sm:$0xff]
      %v367 = vld [vmem:[%s364 + $0x10] sm:$0xff]
      %v368 = vld [vmem:[%s364 + $0x18] sm:$0xff]
      %v369 = vld [vmem:[%s364 + $0x20] sm:$0xff]
      %v370 = vld [vmem:[%s364 + $0x28] sm:$0xff]
      %v371 = vld [vmem:[%s364 + $0x30] sm:$0xff]
      %v372 = vld [vmem:[%s364 + $0x38] sm:$0xff]
      %s373 = scalar_lea.vmem %s331, 192
      %v374 = vld [vmem:[%s373] sm:$0xff]
      %v375 = vld [vmem:[%s373 + $0x8] sm:$0xff]
      %v376 = vld [vmem:[%s373 + $0x10] sm:$0xff]
      %v377 = vld [vmem:[%s373 + $0x18] sm:$0xff]
      %v378 = vld [vmem:[%s373 + $0x20] sm:$0xff]
      %v379 = vld [vmem:[%s373 + $0x28] sm:$0xff]
      %v380 = vld [vmem:[%s373 + $0x30] sm:$0xff]
      %v381 = vld [vmem:[%s373 + $0x38] sm:$0xff]
      %v382 = vmax.f32 %v365, %v374
      %v383 = vmax.f32 %v366, %v375
      %v384 = vmax.f32 %v367, %v376
      %v385 = vmax.f32 %v368, %v377
      %v386 = vmax.f32 %v369, %v378
      %v387 = vmax.f32 %v370, %v379
      %v388 = vmax.f32 %v371, %v380
      %v389 = vmax.f32 %v372, %v381
      %v390 = vmax.f32 %v356, %v382
      %v391 = vmax.f32 %v357, %v383
      %v392 = vmax.f32 %v358, %v384
      %v393 = vmax.f32 %v359, %v385
      %v394 = vmax.f32 %v360, %v386
      %v395 = vmax.f32 %v361, %v387
      %v396 = vmax.f32 %v362, %v388
      %v397 = vmax.f32 %v363, %v389
      %vm398 = vcmask 27648
      %399 = vst.msk [vmem:[#allocation2] sm:$0xf] %vm398, 0
      %vm400 = vcmask 24576
      %401 = vst.msk [vmem:[#allocation2 + $0x4] sm:$0x1] %vm400, 0
      %402 = vst.msk [vmem:[#allocation2 + $0x8] sm:$0xf] %vm398, 0
      %403 = vst.msk [vmem:[#allocation2 + $0xc] sm:$0x1] %vm400, 0
      %404 = vst.msk [vmem:[#allocation2 + $0x10] sm:$0xf] %vm398, 0
      %405 = vst.msk [vmem:[#allocation2 + $0x14] sm:$0x1] %vm400, 0
      %406 = vst.msk [vmem:[#allocation2 + $0x18] sm:$0xf] %vm398, 0
      %407 = vst.msk [vmem:[#allocation2 + $0x1c] sm:$0x1] %vm400, 0
      %408 = vst.msk [vmem:[#allocation2 + $0x20] sm:$0xf] %vm398, 0
      %409 = vst.msk [vmem:[#allocation2 + $0x24] sm:$0x1] %vm400, 0
      %410 = vst.msk [vmem:[#allocation2 + $0x28] sm:$0xf] %vm398, 0
      %411 = vst.msk [vmem:[#allocation2 + $0x2c] sm:$0x1] %vm400, 0
      %412 = vst.msk [vmem:[#allocation2 + $0x30] sm:$0xf] %vm398, 0
      %413 = vst.msk [vmem:[#allocation2 + $0x34] sm:$0x1] %vm400, 0
      %414 = vst.msk [vmem:[#allocation2 + $0x38] sm:$0xf] %vm398, 0
      %415 = vst.msk [vmem:[#allocation2 + $0x3c] sm:$0x1] %vm400, 0
      %416 = vst.msk [vmem:[#allocation2 + $0x40] sm:$0xf] %vm398, 0
      %417 = vst.msk [vmem:[#allocation2 + $0x44] sm:$0x1] %vm400, 0
      %418 = vst.msk [vmem:[#allocation2 + $0x48] sm:$0xf] %vm398, 0
      %419 = vst.msk [vmem:[#allocation2 + $0x4c] sm:$0x1] %vm400, 0
      %v420 = vpack.c.bf16 %v390, %v390
      %v421 = vpack.c.bf16 %v391, %v391
      %v422 = vpack.c.bf16 %v392, %v392
      %v423 = vpack.c.bf16 %v393, %v393
      %v424 = vpack.c.bf16 %v394, %v394
      %v425 = vpack.c.bf16 %v395, %v395
      %v426 = vpack.c.bf16 %v396, %v396
      %v427 = vpack.c.bf16 %v397, %v397
      %v436 = vunpack.c.l.b16 %v420
      %v437 = vunpack.c.l.b16 %v421
      %v438 = vunpack.c.l.b16 %v422
      %v439 = vunpack.c.l.b16 %v423
      %v440 = vunpack.c.l.b16 %v424
      %v441 = vunpack.c.l.b16 %v425
      %v442 = vunpack.c.l.b16 %v426
      %v443 = vunpack.c.l.b16 %v427
      %v444 = vpack.c.b16 %v436, %v436
      %v445 = vpack.c.b16 %v437, %v437
      %v446 = vpack.c.b16 %v438, %v438
      %v447 = vpack.c.b16 %v439, %v439
      %v448 = vpack.c.b16 %v440, %v440
      %v449 = vpack.c.b16 %v441, %v441
      %v450 = vpack.c.b16 %v442, %v442
      %v451 = vpack.c.b16 %v443, %v443
      %v453 = vshrl.u32 %v444, 16
      %v455 = vrot.slane %v453, 7
      %v456 = vshll.u32 %v444, 16
      %v458 = vor.u32 %v455, %v456
      %v459 = vrot.slane %v455, 4
      %v461 = vshrl.u32 %v445, 16
      %v463 = vrot.slane %v461, 7
      %v464 = vshll.u32 %v445, 16
      %v466 = vor.u32 %v463, %v464
      %v467 = vrot.slane %v463, 4
      %v469 = vshrl.u32 %v446, 16
      %v471 = vrot.slane %v469, 7
      %v472 = vshll.u32 %v446, 16
      %v474 = vor.u32 %v471, %v472
      %v475 = vrot.slane %v471, 4
      %v477 = vshrl.u32 %v447, 16
      %v479 = vrot.slane %v477, 7
      %v480 = vshll.u32 %v447, 16
      %v482 = vor.u32 %v479, %v480
      %v483 = vrot.slane %v479, 4
      %v485 = vshrl.u32 %v448, 16
      %v487 = vrot.slane %v485, 7
      %v488 = vshll.u32 %v448, 16
      %v490 = vor.u32 %v487, %v488
      %v491 = vrot.slane %v487, 4
      %v493 = vshrl.u32 %v449, 16
      %v495 = vrot.slane %v493, 7
      %v496 = vshll.u32 %v449, 16
      %v498 = vor.u32 %v495, %v496
      %v499 = vrot.slane %v495, 4
      %v501 = vshrl.u32 %v450, 16
      %v503 = vrot.slane %v501, 7
      %v504 = vshll.u32 %v450, 16
      %v506 = vor.u32 %v503, %v504
      %v507 = vrot.slane %v503, 4
      %v509 = vshrl.u32 %v451, 16
      %v511 = vrot.slane %v509, 7
      %v512 = vshll.u32 %v451, 16
      %v514 = vor.u32 %v511, %v512
      %v515 = vrot.slane %v511, 4
      %s532 = scalar_lea.vmem [#allocation2], 8
      %vm533 = vcmask 27648
      %vm534 = vsmask.f32 7938
      %vm535 = vmand %vm533, %vm534
      %v536 = vld [vmem:[%s532] sm:$0xf]
      %v537 = vsel %vm535, %v458, %v536
      %538 = vst [vmem:[%s532] sm:$0xf] %v537
      %vm539 = vcmask 24576
      %vm540 = vsmask.f32 256
      %vm541 = vmand %vm539, %vm540
      %v542 = vld [vmem:[%s532 + $0x4] sm:$0x1]
      %v543 = vsel %vm541, %v459, %v542
      %544 = vst [vmem:[%s532 + $0x4] sm:$0x1] %v543
      %v545 = vld [vmem:[%s532 + $0x8] sm:$0xf]
      %v546 = vsel %vm535, %v466, %v545
      %547 = vst [vmem:[%s532 + $0x8] sm:$0xf] %v546
      %v548 = vld [vmem:[%s532 + $0xc] sm:$0x1]
      %v549 = vsel %vm541, %v467, %v548
      %550 = vst [vmem:[%s532 + $0xc] sm:$0x1] %v549
      %v551 = vld [vmem:[%s532 + $0x10] sm:$0xf]
      %v552 = vsel %vm535, %v474, %v551
      %553 = vst [vmem:[%s532 + $0x10] sm:$0xf] %v552
      %v554 = vld [vmem:[%s532 + $0x14] sm:$0x1]
      %v555 = vsel %vm541, %v475, %v554
      %556 = vst [vmem:[%s532 + $0x14] sm:$0x1] %v555
      %v557 = vld [vmem:[%s532 + $0x18] sm:$0xf]
      %v558 = vsel %vm535, %v482, %v557
      %559 = vst [vmem:[%s532 + $0x18] sm:$0xf] %v558
      %v560 = vld [vmem:[%s532 + $0x1c] sm:$0x1]
      %v561 = vsel %vm541, %v483, %v560
      %562 = vst [vmem:[%s532 + $0x1c] sm:$0x1] %v561
      %v563 = vld [vmem:[%s532 + $0x20] sm:$0xf]
      %v564 = vsel %vm535, %v490, %v563
      %565 = vst [vmem:[%s532 + $0x20] sm:$0xf] %v564
      %v566 = vld [vmem:[%s532 + $0x24] sm:$0x1]
      %v567 = vsel %vm541, %v491, %v566
      %568 = vst [vmem:[%s532 + $0x24] sm:$0x1] %v567
      %v569 = vld [vmem:[%s532 + $0x28] sm:$0xf]
      %v570 = vsel %vm535, %v498, %v569
      %571 = vst [vmem:[%s532 + $0x28] sm:$0xf] %v570
      %v572 = vld [vmem:[%s532 + $0x2c] sm:$0x1]
      %v573 = vsel %vm541, %v499, %v572
      %574 = vst [vmem:[%s532 + $0x2c] sm:$0x1] %v573
      %v575 = vld [vmem:[%s532 + $0x30] sm:$0xf]
      %v576 = vsel %vm535, %v506, %v575
      %577 = vst [vmem:[%s532 + $0x30] sm:$0xf] %v576
      %v578 = vld [vmem:[%s532 + $0x34] sm:$0x1]
      %v579 = vsel %vm541, %v507, %v578
      %580 = vst [vmem:[%s532 + $0x34] sm:$0x1] %v579
      %v581 = vld [vmem:[%s532 + $0x38] sm:$0xf]
      %v582 = vsel %vm535, %v514, %v581
      %583 = vst [vmem:[%s532 + $0x38] sm:$0xf] %v582
      %v584 = vld [vmem:[%s532 + $0x3c] sm:$0x1]
      %v585 = vsel %vm541, %v515, %v584
      %586 = vst [vmem:[%s532 + $0x3c] sm:$0x1] %v585
      %v587 = vld [vmem:[#allocation2] sm:$0xf]
      %v588 = vld [vmem:[#allocation2 + $0x8] sm:$0xf]
      %v589 = vld [vmem:[#allocation2 + $0x10] sm:$0xf]
      %v590 = vld [vmem:[#allocation2 + $0x18] sm:$0xf]
      %v591 = vld [vmem:[#allocation2 + $0x20] sm:$0xf]
      %v592 = vld [vmem:[#allocation2 + $0x28] sm:$0xf]
      %v593 = vld [vmem:[#allocation2 + $0x30] sm:$0xf]
      %v594 = vld [vmem:[#allocation2 + $0x38] sm:$0xf]
      %v595 = vld [vmem:[%s1] sm:$0x3]
      %v596 = vld [vmem:[#allocation2 + $0x4] sm:$0x1]
      %v597 = vld [vmem:[#allocation2 + $0xc] sm:$0x1]
      %v598 = vld [vmem:[#allocation2 + $0x14] sm:$0x1]
      %v599 = vld [vmem:[#allocation2 + $0x1c] sm:$0x1]
      %v600 = vld [vmem:[#allocation2 + $0x24] sm:$0x1]
      %v601 = vld [vmem:[#allocation2 + $0x2c] sm:$0x1]
      %v602 = vld [vmem:[#allocation2 + $0x34] sm:$0x1]
      %v603 = vld [vmem:[#allocation2 + $0x3c] sm:$0x1]
      %vm604 = vsmask.f32 3328
      %vm605 = vsmask.f32 7440
      %vm606 = vmor %vm604, %vm605
      %v608 = vshrl.u32 %v587, 16
      %v610 = vrot.slane %v608, 4
      %v611 = vshll.u32 %v587, 16
      %v613 = vrot.slane %v611, 5
      %v614 = vor.u32 %v610, %v613
      %v615 = vrot.slane %v614, 4
      %v617 = vshll.u32 %v596, 16
      %v619 = vrot.slane %v617, 5
      %v620 = vsel %vm606, %v615, %v619
      %v622 = vshrl.u32 %v588, 16
      %v624 = vrot.slane %v622, 4
      %v625 = vshll.u32 %v588, 16
      %v627 = vrot.slane %v625, 5
      %v628 = vor.u32 %v624, %v627
      %v629 = vrot.slane %v628, 4
      %v631 = vshll.u32 %v597, 16
      %v633 = vrot.slane %v631, 5
      %v634 = vsel %vm606, %v629, %v633
      %v636 = vshrl.u32 %v589, 16
      %v638 = vrot.slane %v636, 4
      %v639 = vshll.u32 %v589, 16
      %v641 = vrot.slane %v639, 5
      %v642 = vor.u32 %v638, %v641
      %v643 = vrot.slane %v642, 4
      %v645 = vshll.u32 %v598, 16
      %v647 = vrot.slane %v645, 5
      %v648 = vsel %vm606, %v643, %v647
      %v650 = vshrl.u32 %v590, 16
      %v652 = vrot.slane %v650, 4
      %v653 = vshll.u32 %v590, 16
      %v655 = vrot.slane %v653, 5
      %v656 = vor.u32 %v652, %v655
      %v657 = vrot.slane %v656, 4
      %v659 = vshll.u32 %v599, 16
      %v661 = vrot.slane %v659, 5
      %v662 = vsel %vm606, %v657, %v661
      %v664 = vshrl.u32 %v591, 16
      %v666 = vrot.slane %v664, 4
      %v667 = vshll.u32 %v591, 16
      %v669 = vrot.slane %v667, 5
      %v670 = vor.u32 %v666, %v669
      %v671 = vrot.slane %v670, 4
      %v673 = vshll.u32 %v600, 16
      %v675 = vrot.slane %v673, 5
      %v676 = vsel %vm606, %v671, %v675
      %v678 = vshrl.u32 %v592, 16
      %v680 = vrot.slane %v678, 4
      %v681 = vshll.u32 %v592, 16
      %v683 = vrot.slane %v681, 5
      %v684 = vor.u32 %v680, %v683
      %v685 = vrot.slane %v684, 4
      %v687 = vshll.u32 %v601, 16
      %v689 = vrot.slane %v687, 5
      %v690 = vsel %vm606, %v685, %v689
      %v692 = vshrl.u32 %v593, 16
      %v694 = vrot.slane %v692, 4
      %v695 = vshll.u32 %v593, 16
      %v697 = vrot.slane %v695, 5
      %v698 = vor.u32 %v694, %v697
      %v699 = vrot.slane %v698, 4
      %v701 = vshll.u32 %v602, 16
      %v703 = vrot.slane %v701, 5
      %v704 = vsel %vm606, %v699, %v703
      %v706 = vshrl.u32 %v594, 16
      %v708 = vrot.slane %v706, 4
      %v709 = vshll.u32 %v594, 16
      %v711 = vrot.slane %v709, 5
      %v712 = vor.u32 %v708, %v711
      %v713 = vrot.slane %v712, 4
      %v715 = vshll.u32 %v603, 16
      %v717 = vrot.slane %v715, 5
      %v718 = vsel %vm606, %v713, %v717
      %s719 = scalar_lea.vmem %s1, 2
      %v720 = vld [vmem:[%s719] sm:$0x3]
      %v721 = vunpack.c.l.b16 %v620
      %v722 = vunpack.c.l.b16 %v634
      %v723 = vunpack.c.l.b16 %v648
      %v724 = vunpack.c.l.b16 %v662
      %v725 = vunpack.c.l.b16 %v676
      %v726 = vunpack.c.l.b16 %v690
      %v727 = vunpack.c.l.b16 %v704
      %v728 = vunpack.c.l.b16 %v718
      %v729 = vpack.c.b16 %v722, %v721
      %v730 = vpack.c.b16 %v724, %v723
      %v731 = vpack.c.b16 %v726, %v725
      %v732 = vpack.c.b16 %v728, %v727
      %vm733 = vcmask 31744
      %v735 = vsel %vm733, %v729, 0
      %v738 = vsel %vm733, %v730, 0
      %v741 = vsel %vm733, %v731, 0
      %v744 = vsel %vm733, %v732, 0
      %vm746 = vcmask 1041408
      %v748 = vsel %vm746, %v720, 0
      %750 = vmatprep.subr.bf16.mxu0 0
      %751 = vmatpush1.bf16.msra.mxu0 0
      %752 = vmatprep.subr.bf16.mxu0 0
      %753 = vmatpush1.bf16.msra.mxu0 0
      %754 = vmatprep.subr.bf16.mxu0 0
      %755 = vmatpush1.bf16.msra.mxu0 0
      %756 = vmatprep.subr.bf16.mxu0 0
      %757 = vmatpush1.bf16.msra.mxu0 0
      %758 = vmatprep.subr.bf16.mxu0 0
      %759 = vmatpush1.bf16.msra.mxu0 0
      %760 = vmatprep.subr.bf16.mxu0 0
      %761 = vmatpush1.bf16.msra.mxu0 0
      %762 = vmatprep.subr.bf16.mxu0 0
      %763 = vmatpush1.bf16.msra.mxu0 0
      %764 = vmatprep.subr.bf16.mxu0 0
      %765 = vmatpush1.bf16.msra.mxu0 %v748
      %766 = vmatprep.subr.bf16.mxu0 0
      %767 = vmatpush2.bf16.msra.mxu0 0
      %768 = vmatprep.subr.bf16.mxu0 0
      %769 = vmatpush2.bf16.msra.mxu0 0
      %770 = vmatprep.subr.bf16.mxu0 0
      %771 = vmatpush2.bf16.msra.mxu0 0
      %772 = vmatprep.subr.bf16.mxu0 0
      %773 = vmatpush2.bf16.msra.mxu0 0
      %774 = vmatprep.subr.bf16.mxu0 0
      %775 = vmatpush2.bf16.msra.mxu0 0
      %776 = vmatprep.subr.bf16.mxu0 0
      %777 = vmatpush2.bf16.msra.mxu0 0
      %778 = vmatprep.subr.bf16.mxu0 0
      %779 = vmatpush2.bf16.msra.mxu0 0
      %780 = vmatprep.subr.bf16.mxu0 0
      %781 = vmatpush2.bf16.msra.mxu0 0
      %782 = vmatprep.mubr.bf16.mxu0 0
      %783 = vmatmul.mubr.bf16.gmra.mxu0 %v735
      %v784 = vpop.f32.mrf.mxu0
      %v785 = vadd.f32 0.0, %v784
      %v786 = vpop.f32.mrf.mxu0
      %v787 = vpop.f32.mrf.mxu0
      %v788 = vadd.f32 0.0, %v787
      %v789 = vpop.f32.mrf.mxu0
      %790 = vmatprep.mubr.bf16.mxu0 0
      %791 = vmatmul.mubr.bf16.gmra.mxu0 %v738
      %v792 = vpop.f32.mrf.mxu0
      %v793 = vadd.f32 0.0, %v792
      %v794 = vpop.f32.mrf.mxu0
      %v795 = vpop.f32.mrf.mxu0
      %v796 = vadd.f32 0.0, %v795
      %v797 = vpop.f32.mrf.mxu0
      %798 = vmatprep.mubr.bf16.mxu0 0
      %799 = vmatmul.mubr.bf16.gmra.mxu0 %v741
      %v800 = vpop.f32.mrf.mxu0
      %v801 = vadd.f32 0.0, %v800
      %v802 = vpop.f32.mrf.mxu0
      %v803 = vpop.f32.mrf.mxu0
      %v804 = vadd.f32 0.0, %v803
      %v805 = vpop.f32.mrf.mxu0
      %806 = vmatprep.mubr.bf16.mxu0 0
      %807 = vmatmul.mubr.bf16.gmra.mxu0 %v744
      %v808 = vpop.f32.mrf.mxu0
      %v809 = vadd.f32 0.0, %v808
      %v810 = vpop.f32.mrf.mxu0
      %v811 = vpop.f32.mrf.mxu0
      %v812 = vadd.f32 0.0, %v811
      %v813 = vpop.f32.mrf.mxu0
      %814 = vdwg.mxu0
      %v823 = vunpack.c.l.b16 %v587
      %v824 = vunpack.c.l.b16 %v588
      %v825 = vunpack.c.l.b16 %v589
      %v826 = vunpack.c.l.b16 %v590
      %v827 = vunpack.c.l.b16 %v591
      %v828 = vunpack.c.l.b16 %v592
      %v829 = vunpack.c.l.b16 %v593
      %v830 = vunpack.c.l.b16 %v594
      %v831 = vpack.c.b16 %v824, %v823
      %v832 = vpack.c.b16 %v826, %v825
      %v833 = vpack.c.b16 %v828, %v827
      %v834 = vpack.c.b16 %v830, %v829
      %v836 = vsel %vm733, %v831, 0
      %v839 = vsel %vm733, %v832, 0
      %v842 = vsel %vm733, %v833, 0
      %v845 = vsel %vm733, %v834, 0
      %v848 = vsel %vm746, %v595, 0
      %850 = vmatprep.subr.bf16.mxu0 0
      %851 = vmatpush1.bf16.msra.mxu0 0
      %852 = vmatprep.subr.bf16.mxu0 0
      %853 = vmatpush1.bf16.msra.mxu0 0
      %854 = vmatprep.subr.bf16.mxu0 0
      %855 = vmatpush1.bf16.msra.mxu0 0
      %856 = vmatprep.subr.bf16.mxu0 0
      %857 = vmatpush1.bf16.msra.mxu0 0
      %858 = vmatprep.subr.bf16.mxu0 0
      %859 = vmatpush1.bf16.msra.mxu0 0
      %860 = vmatprep.subr.bf16.mxu0 0
      %861 = vmatpush1.bf16.msra.mxu0 0
      %862 = vmatprep.subr.bf16.mxu0 0
      %863 = vmatpush1.bf16.msra.mxu0 0
      %864 = vmatprep.subr.bf16.mxu0 0
      %865 = vmatpush1.bf16.msra.mxu0 %v848
      %866 = vmatprep.subr.bf16.mxu0 0
      %867 = vmatpush2.bf16.msra.mxu0 0
      %868 = vmatprep.subr.bf16.mxu0 0
      %869 = vmatpush2.bf16.msra.mxu0 0
      %870 = vmatprep.subr.bf16.mxu0 0
      %871 = vmatpush2.bf16.msra.mxu0 0
      %872 = vmatprep.subr.bf16.mxu0 0
      %873 = vmatpush2.bf16.msra.mxu0 0
      %874 = vmatprep.subr.bf16.mxu0 0
      %875 = vmatpush2.bf16.msra.mxu0 0
      %876 = vmatprep.subr.bf16.mxu0 0
      %877 = vmatpush2.bf16.msra.mxu0 0
      %878 = vmatprep.subr.bf16.mxu0 0
      %879 = vmatpush2.bf16.msra.mxu0 0
      %880 = vmatprep.subr.bf16.mxu0 0
      %881 = vmatpush2.bf16.msra.mxu0 0
      %882 = vmatprep.mubr.bf16.mxu0 0
      %883 = vmatmul.mubr.bf16.gmra.mxu0 %v836
      %v884 = vpop.f32.mrf.mxu0
      %v885 = vadd.f32 %v785, %v884
      %v886 = vpop.f32.mrf.mxu0
      %v887 = vpop.f32.mrf.mxu0
      %v888 = vadd.f32 %v788, %v887
      %v889 = vpop.f32.mrf.mxu0
      %890 = vmatprep.mubr.bf16.mxu0 0
      %891 = vmatmul.mubr.bf16.gmra.mxu0 %v839
      %v892 = vpop.f32.mrf.mxu0
      %v893 = vadd.f32 %v793, %v892
      %v894 = vpop.f32.mrf.mxu0
      %v895 = vpop.f32.mrf.mxu0
      %v896 = vadd.f32 %v796, %v895
      %v897 = vpop.f32.mrf.mxu0
      %898 = vmatprep.mubr.bf16.mxu0 0
      %899 = vmatmul.mubr.bf16.gmra.mxu0 %v842
      %v900 = vpop.f32.mrf.mxu0
      %v901 = vadd.f32 %v801, %v900
      %v902 = vpop.f32.mrf.mxu0
      %v903 = vpop.f32.mrf.mxu0
      %v904 = vadd.f32 %v804, %v903
      %v905 = vpop.f32.mrf.mxu0
      %906 = vmatprep.mubr.bf16.mxu0 0
      %907 = vmatmul.mubr.bf16.gmra.mxu0 %v845
      %v908 = vpop.f32.mrf.mxu0
      %v909 = vadd.f32 %v809, %v908
      %v910 = vpop.f32.mrf.mxu0
      %v911 = vpop.f32.mrf.mxu0
      %v912 = vadd.f32 %v812, %v911
      %v913 = vpop.f32.mrf.mxu0
      %914 = vdwg.mxu0
      %v915 = vld [vmem:[#allocation2] sm:$0xe]
      %v916 = vld [vmem:[#allocation2 + $0x8] sm:$0xe]
      %v917 = vld [vmem:[#allocation2 + $0x10] sm:$0xe]
      %v918 = vld [vmem:[#allocation2 + $0x18] sm:$0xe]
      %v919 = vld [vmem:[#allocation2 + $0x20] sm:$0xe]
      %v920 = vld [vmem:[#allocation2 + $0x28] sm:$0xe]
      %v921 = vld [vmem:[#allocation2 + $0x30] sm:$0xe]
      %v922 = vld [vmem:[#allocation2 + $0x38] sm:$0xe]
      %vm939 = vcmask 1042432
      %vm940 = vcmask 1046532
      %vm941 = vmor %vm939, %vm940
      %v942 = vrot.slane %v915, 5
      %v943 = vrot.slane %v942, 4
      %v944 = vrot.slane %v596, 5
      %v945 = vsel %vm941, %v943, %v944
      %v946 = vrot.slane %v916, 5
      %v947 = vrot.slane %v946, 4
      %v948 = vrot.slane %v597, 5
      %v949 = vsel %vm941, %v947, %v948
      %v950 = vrot.slane %v917, 5
      %v951 = vrot.slane %v950, 4
      %v952 = vrot.slane %v598, 5
      %v953 = vsel %vm941, %v951, %v952
      %v954 = vrot.slane %v918, 5
      %v955 = vrot.slane %v954, 4
      %v956 = vrot.slane %v599, 5
      %v957 = vsel %vm941, %v955, %v956
      %v958 = vrot.slane %v919, 5
      %v959 = vrot.slane %v958, 4
      %v960 = vrot.slane %v600, 5
      %v961 = vsel %vm941, %v959, %v960
      %v962 = vrot.slane %v920, 5
      %v963 = vrot.slane %v962, 4
      %v964 = vrot.slane %v601, 5
      %v965 = vsel %vm941, %v963, %v964
      %v966 = vrot.slane %v921, 5
      %v967 = vrot.slane %v966, 4
      %v968 = vrot.slane %v602, 5
      %v969 = vsel %vm941, %v967, %v968
      %v970 = vrot.slane %v922, 5
      %v971 = vrot.slane %v970, 4
      %v972 = vrot.slane %v603, 5
      %v973 = vsel %vm941, %v971, %v972
      %s974 = scalar_lea.vmem %s1, 4
      %v975 = vld [vmem:[%s974] sm:$0x3]
      %v976 = vunpack.c.l.b16 %v945
      %v977 = vunpack.c.l.b16 %v949
      %v978 = vunpack.c.l.b16 %v953
      %v979 = vunpack.c.l.b16 %v957
      %v980 = vunpack.c.l.b16 %v961
      %v981 = vunpack.c.l.b16 %v965
      %v982 = vunpack.c.l.b16 %v969
      %v983 = vunpack.c.l.b16 %v973
      %v984 = vpack.c.b16 %v977, %v976
      %v985 = vpack.c.b16 %v979, %v978
      %v986 = vpack.c.b16 %v981, %v980
      %v987 = vpack.c.b16 %v983, %v982
      %v989 = vsel %vm733, %v984, 0
      %v992 = vsel %vm733, %v985, 0
      %v995 = vsel %vm733, %v986, 0
      %v998 = vsel %vm733, %v987, 0
      %v1001 = vsel %vm746, %v975, 0
      %1003 = vmatprep.subr.bf16.mxu0 0
      %1004 = vmatpush1.bf16.msra.mxu0 0
      %1005 = vmatprep.subr.bf16.mxu0 0
      %1006 = vmatpush1.bf16.msra.mxu0 0
      %1007 = vmatprep.subr.bf16.mxu0 0
      %1008 = vmatpush1.bf16.msra.mxu0 0
      %1009 = vmatprep.subr.bf16.mxu0 0
      %1010 = vmatpush1.bf16.msra.mxu0 0
      %1011 = vmatprep.subr.bf16.mxu0 0
      %1012 = vmatpush1.bf16.msra.mxu0 0
      %1013 = vmatprep.subr.bf16.mxu0 0
      %1014 = vmatpush1.bf16.msra.mxu0 0
      %1015 = vmatprep.subr.bf16.mxu0 0
      %1016 = vmatpush1.bf16.msra.mxu0 0
      %1017 = vmatprep.subr.bf16.mxu0 0
      %1018 = vmatpush1.bf16.msra.mxu0 %v1001
      %1019 = vmatprep.subr.bf16.mxu0 0
      %1020 = vmatpush2.bf16.msra.mxu0 0
      %1021 = vmatprep.subr.bf16.mxu0 0
      %1022 = vmatpush2.bf16.msra.mxu0 0
      %1023 = vmatprep.subr.bf16.mxu0 0
      %1024 = vmatpush2.bf16.msra.mxu0 0
      %1025 = vmatprep.subr.bf16.mxu0 0
      %1026 = vmatpush2.bf16.msra.mxu0 0
      %1027 = vmatprep.subr.bf16.mxu0 0
      %1028 = vmatpush2.bf16.msra.mxu0 0
      %1029 = vmatprep.subr.bf16.mxu0 0
      %1030 = vmatpush2.bf16.msra.mxu0 0
      %1031 = vmatprep.subr.bf16.mxu0 0
      %1032 = vmatpush2.bf16.msra.mxu0 0
      %1033 = vmatprep.subr.bf16.mxu0 0
      %1034 = vmatpush2.bf16.msra.mxu0 0
      %1035 = vmatprep.mubr.bf16.mxu0 0
      %1036 = vmatmul.mubr.bf16.gmra.mxu0 %v989
      %v1037 = vpop.f32.mrf.mxu0
      %v1038 = vadd.f32 0.0, %v1037
      %v1039 = vpop.f32.mrf.mxu0
      %v1040 = vpop.f32.mrf.mxu0
      %v1041 = vadd.f32 0.0, %v1040
      %v1042 = vpop.f32.mrf.mxu0
      %1043 = vmatprep.mubr.bf16.mxu0 0
      %1044 = vmatmul.mubr.bf16.gmra.mxu0 %v992
      %v1045 = vpop.f32.mrf.mxu0
      %v1046 = vadd.f32 0.0, %v1045
      %v1047 = vpop.f32.mrf.mxu0
      %v1048 = vpop.f32.mrf.mxu0
      %v1049 = vadd.f32 0.0, %v1048
      %v1050 = vpop.f32.mrf.mxu0
      %1051 = vmatprep.mubr.bf16.mxu0 0
      %1052 = vmatmul.mubr.bf16.gmra.mxu0 %v995
      %v1053 = vpop.f32.mrf.mxu0
      %v1054 = vadd.f32 0.0, %v1053
      %v1055 = vpop.f32.mrf.mxu0
      %v1056 = vpop.f32.mrf.mxu0
      %v1057 = vadd.f32 0.0, %v1056
      %v1058 = vpop.f32.mrf.mxu0
      %1059 = vmatprep.mubr.bf16.mxu0 0
      %1060 = vmatmul.mubr.bf16.gmra.mxu0 %v998
      %v1061 = vpop.f32.mrf.mxu0
      %v1062 = vadd.f32 0.0, %v1061
      %v1063 = vpop.f32.mrf.mxu0
      %v1064 = vpop.f32.mrf.mxu0
      %v1065 = vadd.f32 0.0, %v1064
      %v1066 = vpop.f32.mrf.mxu0
      %1067 = vdwg.mxu0
      %v1068 = vadd.f32 %v885, %v1038
      %v1069 = vadd.f32 %v888, %v1041
      %v1070 = vadd.f32 %v893, %v1046
      %v1071 = vadd.f32 %v896, %v1049
      %v1072 = vadd.f32 %v901, %v1054
      %v1073 = vadd.f32 %v904, %v1057
      %v1074 = vadd.f32 %v909, %v1062
      %v1075 = vadd.f32 %v912, %v1065
      %v1076 = vld [vmem:[%s532] sm:$0xf]
      %v1077 = vld [vmem:[%s532 + $0x8] sm:$0xf]
      %v1078 = vld [vmem:[%s532 + $0x10] sm:$0xf]
      %v1079 = vld [vmem:[%s532 + $0x18] sm:$0xf]
      %v1080 = vld [vmem:[%s532 + $0x20] sm:$0xf]
      %v1081 = vld [vmem:[%s532 + $0x28] sm:$0xf]
      %v1082 = vld [vmem:[%s532 + $0x30] sm:$0xf]
      %v1083 = vld [vmem:[%s532 + $0x38] sm:$0xf]
      %s1084 = scalar_lea.vmem %s1, 6
      %v1085 = vld [vmem:[%s1084] sm:$0x3]
      %v1094 = vunpack.c.l.b16 %v1076
      %v1095 = vunpack.c.l.b16 %v1077
      %v1096 = vunpack.c.l.b16 %v1078
      %v1097 = vunpack.c.l.b16 %v1079
      %v1098 = vunpack.c.l.b16 %v1080
      %v1099 = vunpack.c.l.b16 %v1081
      %v1100 = vunpack.c.l.b16 %v1082
      %v1101 = vunpack.c.l.b16 %v1083
      %v1102 = vpack.c.b16 %v1095, %v1094
      %v1103 = vpack.c.b16 %v1097, %v1096
      %v1104 = vpack.c.b16 %v1099, %v1098
      %v1105 = vpack.c.b16 %v1101, %v1100
      %v1107 = vsel %vm733, %v1102, 0
      %v1110 = vsel %vm733, %v1103, 0
      %v1113 = vsel %vm733, %v1104, 0
      %v1116 = vsel %vm733, %v1105, 0
      %v1119 = vsel %vm746, %v1085, 0
      %1121 = vmatprep.subr.bf16.mxu0 0
      %1122 = vmatpush1.bf16.msra.mxu0 0
      %1123 = vmatprep.subr.bf16.mxu0 0
      %1124 = vmatpush1.bf16.msra.mxu0 0
      %1125 = vmatprep.subr.bf16.mxu0 0
      %1126 = vmatpush1.bf16.msra.mxu0 0
      %1127 = vmatprep.subr.bf16.mxu0 0
      %1128 = vmatpush1.bf16.msra.mxu0 0
      %1129 = vmatprep.subr.bf16.mxu0 0
      %1130 = vmatpush1.bf16.msra.mxu0 0
      %1131 = vmatprep.subr.bf16.mxu0 0
      %1132 = vmatpush1.bf16.msra.mxu0 0
      %1133 = vmatprep.subr.bf16.mxu0 0
      %1134 = vmatpush1.bf16.msra.mxu0 0
      %1135 = vmatprep.subr.bf16.mxu0 0
      %1136 = vmatpush1.bf16.msra.mxu0 %v1119
      %1137 = vmatprep.subr.bf16.mxu0 0
      %1138 = vmatpush2.bf16.msra.mxu0 0
      %1139 = vmatprep.subr.bf16.mxu0 0
      %1140 = vmatpush2.bf16.msra.mxu0 0
      %1141 = vmatprep.subr.bf16.mxu0 0
      %1142 = vmatpush2.bf16.msra.mxu0 0
      %1143 = vmatprep.subr.bf16.mxu0 0
      %1144 = vmatpush2.bf16.msra.mxu0 0
      %1145 = vmatprep.subr.bf16.mxu0 0
      %1146 = vmatpush2.bf16.msra.mxu0 0
      %1147 = vmatprep.subr.bf16.mxu0 0
      %1148 = vmatpush2.bf16.msra.mxu0 0
      %1149 = vmatprep.subr.bf16.mxu0 0
      %1150 = vmatpush2.bf16.msra.mxu0 0
      %1151 = vmatprep.subr.bf16.mxu0 0
      %1152 = vmatpush2.bf16.msra.mxu0 0
      %1153 = vmatprep.mubr.bf16.mxu0 0
      %1154 = vmatmul.mubr.bf16.gmra.mxu0 %v1107
      %v1155 = vpop.f32.mrf.mxu0
      %v1156 = vadd.f32 0.0, %v1155
      %v1157 = vpop.f32.mrf.mxu0
      %v1158 = vpop.f32.mrf.mxu0
      %v1159 = vadd.f32 0.0, %v1158
      %v1160 = vpop.f32.mrf.mxu0
      %1161 = vmatprep.mubr.bf16.mxu0 0
      %1162 = vmatmul.mubr.bf16.gmra.mxu0 %v1110
      %v1163 = vpop.f32.mrf.mxu0
      %v1164 = vadd.f32 0.0, %v1163
      %v1165 = vpop.f32.mrf.mxu0
      %v1166 = vpop.f32.mrf.mxu0
      %v1167 = vadd.f32 0.0, %v1166
      %v1168 = vpop.f32.mrf.mxu0
      %1169 = vmatprep.mubr.bf16.mxu0 0
      %1170 = vmatmul.mubr.bf16.gmra.mxu0 %v1113
      %v1171 = vpop.f32.mrf.mxu0
      %v1172 = vadd.f32 0.0, %v1171
      %v1173 = vpop.f32.mrf.mxu0
      %v1174 = vpop.f32.mrf.mxu0
      %v1175 = vadd.f32 0.0, %v1174
      %v1176 = vpop.f32.mrf.mxu0
      %1177 = vmatprep.mubr.bf16.mxu0 0
      %1178 = vmatmul.mubr.bf16.gmra.mxu0 %v1116
      %v1179 = vpop.f32.mrf.mxu0
      %v1180 = vadd.f32 0.0, %v1179
      %v1181 = vpop.f32.mrf.mxu0
      %v1182 = vpop.f32.mrf.mxu0
      %v1183 = vadd.f32 0.0, %v1182
      %v1184 = vpop.f32.mrf.mxu0
      %1185 = vdwg.mxu0
      %v1186 = vadd.f32 %v1068, %v1156
      %v1187 = vadd.f32 %v1069, %v1159
      %v1188 = vadd.f32 %v1070, %v1164
      %v1189 = vadd.f32 %v1071, %v1167
      %v1190 = vadd.f32 %v1072, %v1172
      %v1191 = vadd.f32 %v1073, %v1175
      %v1192 = vadd.f32 %v1074, %v1180
      %v1193 = vadd.f32 %v1075, %v1183
      %v1194 = vld [vmem:[%s532] sm:$0xf]
      %v1195 = vld [vmem:[%s532 + $0x4] sm:$0x1]
      %v1196 = vld [vmem:[%s532 + $0x8] sm:$0xf]
      %v1197 = vld [vmem:[%s532 + $0xc] sm:$0x1]
      %v1198 = vld [vmem:[%s532 + $0x10] sm:$0xf]
      %v1199 = vld [vmem:[%s532 + $0x14] sm:$0x1]
      %v1200 = vld [vmem:[%s532 + $0x18] sm:$0xf]
      %v1201 = vld [vmem:[%s532 + $0x1c] sm:$0x1]
      %v1202 = vld [vmem:[%s532 + $0x20] sm:$0xf]
      %v1203 = vld [vmem:[%s532 + $0x24] sm:$0x1]
      %v1204 = vld [vmem:[%s532 + $0x28] sm:$0xf]
      %v1205 = vld [vmem:[%s532 + $0x2c] sm:$0x1]
      %v1206 = vld [vmem:[%s532 + $0x30] sm:$0xf]
      %v1207 = vld [vmem:[%s532 + $0x34] sm:$0x1]
      %v1208 = vld [vmem:[%s532 + $0x38] sm:$0xf]
      %v1209 = vld [vmem:[%s532 + $0x3c] sm:$0x1]
      %v1211 = vshrl.u32 %v1194, 16
      %v1213 = vrot.slane %v1211, 4
      %v1214 = vshll.u32 %v1194, 16
      %v1216 = vrot.slane %v1214, 5
      %v1217 = vor.u32 %v1213, %v1216
      %v1218 = vrot.slane %v1217, 4
      %v1220 = vshll.u32 %v1195, 16
      %v1222 = vrot.slane %v1220, 5
      %v1223 = vsel %vm606, %v1218, %v1222
      %v1225 = vshrl.u32 %v1196, 16
      %v1227 = vrot.slane %v1225, 4
      %v1228 = vshll.u32 %v1196, 16
      %v1230 = vrot.slane %v1228, 5
      %v1231 = vor.u32 %v1227, %v1230
      %v1232 = vrot.slane %v1231, 4
      %v1234 = vshll.u32 %v1197, 16
      %v1236 = vrot.slane %v1234, 5
      %v1237 = vsel %vm606, %v1232, %v1236
      %v1239 = vshrl.u32 %v1198, 16
      %v1241 = vrot.slane %v1239, 4
      %v1242 = vshll.u32 %v1198, 16
      %v1244 = vrot.slane %v1242, 5
      %v1245 = vor.u32 %v1241, %v1244
      %v1246 = vrot.slane %v1245, 4
      %v1248 = vshll.u32 %v1199, 16
      %v1250 = vrot.slane %v1248, 5
      %v1251 = vsel %vm606, %v1246, %v1250
      %v1253 = vshrl.u32 %v1200, 16
      %v1255 = vrot.slane %v1253, 4
      %v1256 = vshll.u32 %v1200, 16
      %v1258 = vrot.slane %v1256, 5
      %v1259 = vor.u32 %v1255, %v1258
      %v1260 = vrot.slane %v1259, 4
      %v1262 = vshll.u32 %v1201, 16
      %v1264 = vrot.slane %v1262, 5
      %v1265 = vsel %vm606, %v1260, %v1264
      %v1267 = vshrl.u32 %v1202, 16
      %v1269 = vrot.slane %v1267, 4
      %v1270 = vshll.u32 %v1202, 16
      %v1272 = vrot.slane %v1270, 5
      %v1273 = vor.u32 %v1269, %v1272
      %v1274 = vrot.slane %v1273, 4
      %v1276 = vshll.u32 %v1203, 16
      %v1278 = vrot.slane %v1276, 5
      %v1279 = vsel %vm606, %v1274, %v1278
      %v1281 = vshrl.u32 %v1204, 16
      %v1283 = vrot.slane %v1281, 4
      %v1284 = vshll.u32 %v1204, 16
      %v1286 = vrot.slane %v1284, 5
      %v1287 = vor.u32 %v1283, %v1286
      %v1288 = vrot.slane %v1287, 4
      %v1290 = vshll.u32 %v1205, 16
      %v1292 = vrot.slane %v1290, 5
      %v1293 = vsel %vm606, %v1288, %v1292
      %v1295 = vshrl.u32 %v1206, 16
      %v1297 = vrot.slane %v1295, 4
      %v1298 = vshll.u32 %v1206, 16
      %v1300 = vrot.slane %v1298, 5
      %v1301 = vor.u32 %v1297, %v1300
      %v1302 = vrot.slane %v1301, 4
      %v1304 = vshll.u32 %v1207, 16
      %v1306 = vrot.slane %v1304, 5
      %v1307 = vsel %vm606, %v1302, %v1306
      %v1309 = vshrl.u32 %v1208, 16
      %v1311 = vrot.slane %v1309, 4
      %v1312 = vshll.u32 %v1208, 16
      %v1314 = vrot.slane %v1312, 5
      %v1315 = vor.u32 %v1311, %v1314
      %v1316 = vrot.slane %v1315, 4
      %v1318 = vshll.u32 %v1209, 16
      %v1320 = vrot.slane %v1318, 5
      %v1321 = vsel %vm606, %v1316, %v1320
      %s1322 = scalar_lea.vmem %s1, 8
      %v1323 = vld [vmem:[%s1322] sm:$0x3]
      %v1324 = vunpack.c.l.b16 %v1223
      %v1325 = vunpack.c.l.b16 %v1237
      %v1326 = vunpack.c.l.b16 %v1251
      %v1327 = vunpack.c.l.b16 %v1265
      %v1328 = vunpack.c.l.b16 %v1279
      %v1329 = vunpack.c.l.b16 %v1293
      %v1330 = vunpack.c.l.b16 %v1307
      %v1331 = vunpack.c.l.b16 %v1321
      %v1332 = vpack.c.b16 %v1325, %v1324
      %v1333 = vpack.c.b16 %v1327, %v1326
      %v1334 = vpack.c.b16 %v1329, %v1328
      %v1335 = vpack.c.b16 %v1331, %v1330
      %v1337 = vsel %vm733, %v1332, 0
      %v1340 = vsel %vm733, %v1333, 0
      %v1343 = vsel %vm733, %v1334, 0
      %v1346 = vsel %vm733, %v1335, 0
      %v1349 = vsel %vm746, %v1323, 0
      %1351 = vmatprep.subr.bf16.mxu0 0
      %1352 = vmatpush1.bf16.msra.mxu0 0
      %1353 = vmatprep.subr.bf16.mxu0 0
      %1354 = vmatpush1.bf16.msra.mxu0 0
      %1355 = vmatprep.subr.bf16.mxu0 0
      %1356 = vmatpush1.bf16.msra.mxu0 0
      %1357 = vmatprep.subr.bf16.mxu0 0
      %1358 = vmatpush1.bf16.msra.mxu0 0
      %1359 = vmatprep.subr.bf16.mxu0 0
      %1360 = vmatpush1.bf16.msra.mxu0 0
      %1361 = vmatprep.subr.bf16.mxu0 0
      %1362 = vmatpush1.bf16.msra.mxu0 0
      %1363 = vmatprep.subr.bf16.mxu0 0
      %1364 = vmatpush1.bf16.msra.mxu0 0
      %1365 = vmatprep.subr.bf16.mxu0 0
      %1366 = vmatpush1.bf16.msra.mxu0 %v1349
      %1367 = vmatprep.subr.bf16.mxu0 0
      %1368 = vmatpush2.bf16.msra.mxu0 0
      %1369 = vmatprep.subr.bf16.mxu0 0
      %1370 = vmatpush2.bf16.msra.mxu0 0
      %1371 = vmatprep.subr.bf16.mxu0 0
      %1372 = vmatpush2.bf16.msra.mxu0 0
      %1373 = vmatprep.subr.bf16.mxu0 0
      %1374 = vmatpush2.bf16.msra.mxu0 0
      %1375 = vmatprep.subr.bf16.mxu0 0
      %1376 = vmatpush2.bf16.msra.mxu0 0
      %1377 = vmatprep.subr.bf16.mxu0 0
      %1378 = vmatpush2.bf16.msra.mxu0 0
      %1379 = vmatprep.subr.bf16.mxu0 0
      %1380 = vmatpush2.bf16.msra.mxu0 0
      %1381 = vmatprep.subr.bf16.mxu0 0
      %1382 = vmatpush2.bf16.msra.mxu0 0
      %1383 = vmatprep.mubr.bf16.mxu0 0
      %1384 = vmatmul.mubr.bf16.gmra.mxu0 %v1337
      %v1385 = vpop.f32.mrf.mxu0
      %v1386 = vadd.f32 0.0, %v1385
      %v1387 = vpop.f32.mrf.mxu0
      %v1388 = vpop.f32.mrf.mxu0
      %v1389 = vadd.f32 0.0, %v1388
      %v1390 = vpop.f32.mrf.mxu0
      %1391 = vmatprep.mubr.bf16.mxu0 0
      %1392 = vmatmul.mubr.bf16.gmra.mxu0 %v1340
      %v1393 = vpop.f32.mrf.mxu0
      %v1394 = vadd.f32 0.0, %v1393
      %v1395 = vpop.f32.mrf.mxu0
      %v1396 = vpop.f32.mrf.mxu0
      %v1397 = vadd.f32 0.0, %v1396
      %v1398 = vpop.f32.mrf.mxu0
      %1399 = vmatprep.mubr.bf16.mxu0 0
      %1400 = vmatmul.mubr.bf16.gmra.mxu0 %v1343
      %v1401 = vpop.f32.mrf.mxu0
      %v1402 = vadd.f32 0.0, %v1401
      %v1403 = vpop.f32.mrf.mxu0
      %v1404 = vpop.f32.mrf.mxu0
      %v1405 = vadd.f32 0.0, %v1404
      %v1406 = vpop.f32.mrf.mxu0
      %1407 = vmatprep.mubr.bf16.mxu0 0
      %1408 = vmatmul.mubr.bf16.gmra.mxu0 %v1346
      %v1409 = vpop.f32.mrf.mxu0
      %v1410 = vadd.f32 0.0, %v1409
      %v1411 = vpop.f32.mrf.mxu0
      %v1412 = vpop.f32.mrf.mxu0
      %v1413 = vadd.f32 0.0, %v1412
      %v1414 = vpop.f32.mrf.mxu0
      %1415 = vdwg.mxu0
      %v1416 = vadd.f32 %v1186, %v1386
      %v1417 = vadd.f32 %v1187, %v1389
      %v1418 = vadd.f32 %v1188, %v1394
      %v1419 = vadd.f32 %v1189, %v1397
      %v1420 = vadd.f32 %v1190, %v1402
      %v1421 = vadd.f32 %v1191, %v1405
      %v1422 = vadd.f32 %v1192, %v1410
      %v1423 = vadd.f32 %v1193, %v1413
      %v1424 = vld [vmem:[%s532] sm:$0xe]
      %v1425 = vld [vmem:[%s532 + $0x8] sm:$0xe]
      %v1426 = vld [vmem:[%s532 + $0x10] sm:$0xe]
      %v1427 = vld [vmem:[%s532 + $0x18] sm:$0xe]
      %v1428 = vld [vmem:[%s532 + $0x20] sm:$0xe]
      %v1429 = vld [vmem:[%s532 + $0x28] sm:$0xe]
      %v1430 = vld [vmem:[%s532 + $0x30] sm:$0xe]
      %v1431 = vld [vmem:[%s532 + $0x38] sm:$0xe]
      %v1448 = vrot.slane %v1424, 5
      %v1449 = vrot.slane %v1448, 4
      %v1450 = vrot.slane %v1195, 5
      %v1451 = vsel %vm941, %v1449, %v1450
      %v1452 = vrot.slane %v1425, 5
      %v1453 = vrot.slane %v1452, 4
      %v1454 = vrot.slane %v1197, 5
      %v1455 = vsel %vm941, %v1453, %v1454
      %v1456 = vrot.slane %v1426, 5
      %v1457 = vrot.slane %v1456, 4
      %v1458 = vrot.slane %v1199, 5
      %v1459 = vsel %vm941, %v1457, %v1458
      %v1460 = vrot.slane %v1427, 5
      %v1461 = vrot.slane %v1460, 4
      %v1462 = vrot.slane %v1201, 5
      %v1463 = vsel %vm941, %v1461, %v1462
      %v1464 = vrot.slane %v1428, 5
      %v1465 = vrot.slane %v1464, 4
      %v1466 = vrot.slane %v1203, 5
      %v1467 = vsel %vm941, %v1465, %v1466
      %v1468 = vrot.slane %v1429, 5
      %v1469 = vrot.slane %v1468, 4
      %v1470 = vrot.slane %v1205, 5
      %v1471 = vsel %vm941, %v1469, %v1470
      %v1472 = vrot.slane %v1430, 5
      %v1473 = vrot.slane %v1472, 4
      %v1474 = vrot.slane %v1207, 5
      %v1475 = vsel %vm941, %v1473, %v1474
      %v1476 = vrot.slane %v1431, 5
      %v1477 = vrot.slane %v1476, 4
      %v1478 = vrot.slane %v1209, 5
      %v1479 = vsel %vm941, %v1477, %v1478
      %s1480 = scalar_lea.vmem %s1, 10
      %v1481 = vld [vmem:[%s1480] sm:$0x3]
      %v1482 = vunpack.c.l.b16 %v1451
      %v1483 = vunpack.c.l.b16 %v1455
      %v1484 = vunpack.c.l.b16 %v1459
      %v1485 = vunpack.c.l.b16 %v1463
      %v1486 = vunpack.c.l.b16 %v1467
      %v1487 = vunpack.c.l.b16 %v1471
      %v1488 = vunpack.c.l.b16 %v1475
      %v1489 = vunpack.c.l.b16 %v1479
      %v1490 = vpack.c.b16 %v1483, %v1482
      %v1491 = vpack.c.b16 %v1485, %v1484
      %v1492 = vpack.c.b16 %v1487, %v1486
      %v1493 = vpack.c.b16 %v1489, %v1488
      %v1495 = vsel %vm733, %v1490, 0
      %v1498 = vsel %vm733, %v1491, 0
      %v1501 = vsel %vm733, %v1492, 0
      %v1504 = vsel %vm733, %v1493, 0
      %v1507 = vsel %vm746, %v1481, 0
      %1509 = vmatprep.subr.bf16.mxu0 0
      %1510 = vmatpush1.bf16.msra.mxu0 0
      %1511 = vmatprep.subr.bf16.mxu0 0
      %1512 = vmatpush1.bf16.msra.mxu0 0
      %1513 = vmatprep.subr.bf16.mxu0 0
      %1514 = vmatpush1.bf16.msra.mxu0 0
      %1515 = vmatprep.subr.bf16.mxu0 0
      %1516 = vmatpush1.bf16.msra.mxu0 0
      %1517 = vmatprep.subr.bf16.mxu0 0
      %1518 = vmatpush1.bf16.msra.mxu0 0
      %1519 = vmatprep.subr.bf16.mxu0 0
      %1520 = vmatpush1.bf16.msra.mxu0 0
      %1521 = vmatprep.subr.bf16.mxu0 0
      %1522 = vmatpush1.bf16.msra.mxu0 0
      %1523 = vmatprep.subr.bf16.mxu0 0
      %1524 = vmatpush1.bf16.msra.mxu0 %v1507
      %1525 = vmatprep.subr.bf16.mxu0 0
      %1526 = vmatpush2.bf16.msra.mxu0 0
      %1527 = vmatprep.subr.bf16.mxu0 0
      %1528 = vmatpush2.bf16.msra.mxu0 0
      %1529 = vmatprep.subr.bf16.mxu0 0
      %1530 = vmatpush2.bf16.msra.mxu0 0
      %1531 = vmatprep.subr.bf16.mxu0 0
      %1532 = vmatpush2.bf16.msra.mxu0 0
      %1533 = vmatprep.subr.bf16.mxu0 0
      %1534 = vmatpush2.bf16.msra.mxu0 0
      %1535 = vmatprep.subr.bf16.mxu0 0
      %1536 = vmatpush2.bf16.msra.mxu0 0
      %1537 = vmatprep.subr.bf16.mxu0 0
      %1538 = vmatpush2.bf16.msra.mxu0 0
      %1539 = vmatprep.subr.bf16.mxu0 0
      %1540 = vmatpush2.bf16.msra.mxu0 0
      %1541 = vmatprep.mubr.bf16.mxu0 0
      %1542 = vmatmul.mubr.bf16.gmra.mxu0 %v1495
      %v1543 = vpop.f32.mrf.mxu0
      %v1544 = vadd.f32 0.0, %v1543
      %v1545 = vpop.f32.mrf.mxu0
      %v1546 = vpop.f32.mrf.mxu0
      %v1547 = vadd.f32 0.0, %v1546
      %v1548 = vpop.f32.mrf.mxu0
      %1549 = vmatprep.mubr.bf16.mxu0 0
      %1550 = vmatmul.mubr.bf16.gmra.mxu0 %v1498
      %v1551 = vpop.f32.mrf.mxu0
      %v1552 = vadd.f32 0.0, %v1551
      %v1553 = vpop.f32.mrf.mxu0
      %v1554 = vpop.f32.mrf.mxu0
      %v1555 = vadd.f32 0.0, %v1554
      %v1556 = vpop.f32.mrf.mxu0
      %1557 = vmatprep.mubr.bf16.mxu0 0
      %1558 = vmatmul.mubr.bf16.gmra.mxu0 %v1501
      %v1559 = vpop.f32.mrf.mxu0
      %v1560 = vadd.f32 0.0, %v1559
      %v1561 = vpop.f32.mrf.mxu0
      %v1562 = vpop.f32.mrf.mxu0
      %v1563 = vadd.f32 0.0, %v1562
      %v1564 = vpop.f32.mrf.mxu0
      %1565 = vmatprep.mubr.bf16.mxu0 0
      %1566 = vmatmul.mubr.bf16.gmra.mxu0 %v1504
      %v1567 = vpop.f32.mrf.mxu0
      %v1568 = vadd.f32 0.0, %v1567
      %v1569 = vpop.f32.mrf.mxu0
      %v1570 = vpop.f32.mrf.mxu0
      %v1571 = vadd.f32 0.0, %v1570
      %v1572 = vpop.f32.mrf.mxu0
      %1573 = vdwg.mxu0
      %v1574 = vadd.f32 %v1416, %v1544
      %v1575 = vadd.f32 %v1417, %v1547
      %v1576 = vadd.f32 %v1418, %v1552
      %v1577 = vadd.f32 %v1419, %v1555
      %v1578 = vadd.f32 %v1420, %v1560
      %v1579 = vadd.f32 %v1421, %v1563
      %v1580 = vadd.f32 %v1422, %v1568
      %v1581 = vadd.f32 %v1423, %v1571
      %s1582 = scalar_lea.vmem [#allocation2], 16
      %v1583 = vld [vmem:[%s1582] sm:$0xf]
      %v1584 = vld [vmem:[%s1582 + $0x8] sm:$0xf]
      %v1585 = vld [vmem:[%s1582 + $0x10] sm:$0xf]
      %v1586 = vld [vmem:[%s1582 + $0x18] sm:$0xf]
      %v1587 = vld [vmem:[%s1582 + $0x20] sm:$0xf]
      %v1588 = vld [vmem:[%s1582 + $0x28] sm:$0xf]
      %v1589 = vld [vmem:[%s1582 + $0x30] sm:$0xf]
      %v1590 = vld [vmem:[%s1582 + $0x38] sm:$0xf]
      %s1591 = scalar_lea.vmem %s1, 12
      %v1592 = vld [vmem:[%s1591] sm:$0x3]
      %v1601 = vunpack.c.l.b16 %v1583
      %v1602 = vunpack.c.l.b16 %v1584
      %v1603 = vunpack.c.l.b16 %v1585
      %v1604 = vunpack.c.l.b16 %v1586
      %v1605 = vunpack.c.l.b16 %v1587
      %v1606 = vunpack.c.l.b16 %v1588
      %v1607 = vunpack.c.l.b16 %v1589
      %v1608 = vunpack.c.l.b16 %v1590
      %v1609 = vpack.c.b16 %v1602, %v1601
      %v1610 = vpack.c.b16 %v1604, %v1603
      %v1611 = vpack.c.b16 %v1606, %v1605
      %v1612 = vpack.c.b16 %v1608, %v1607
      %v1614 = vsel %vm733, %v1609, 0
      %v1617 = vsel %vm733, %v1610, 0
      %v1620 = vsel %vm733, %v1611, 0
      %v1623 = vsel %vm733, %v1612, 0
      %v1626 = vsel %vm746, %v1592, 0
      %1628 = vmatprep.subr.bf16.mxu0 0
      %1629 = vmatpush1.bf16.msra.mxu0 0
      %1630 = vmatprep.subr.bf16.mxu0 0
      %1631 = vmatpush1.bf16.msra.mxu0 0
      %1632 = vmatprep.subr.bf16.mxu0 0
      %1633 = vmatpush1.bf16.msra.mxu0 0
      %1634 = vmatprep.subr.bf16.mxu0 0
      %1635 = vmatpush1.bf16.msra.mxu0 0
      %1636 = vmatprep.subr.bf16.mxu0 0
      %1637 = vmatpush1.bf16.msra.mxu0 0
      %1638 = vmatprep.subr.bf16.mxu0 0
      %1639 = vmatpush1.bf16.msra.mxu0 0
      %1640 = vmatprep.subr.bf16.mxu0 0
      %1641 = vmatpush1.bf16.msra.mxu0 0
      %1642 = vmatprep.subr.bf16.mxu0 0
      %1643 = vmatpush1.bf16.msra.mxu0 %v1626
      %1644 = vmatprep.subr.bf16.mxu0 0
      %1645 = vmatpush2.bf16.msra.mxu0 0
      %1646 = vmatprep.subr.bf16.mxu0 0
      %1647 = vmatpush2.bf16.msra.mxu0 0
      %1648 = vmatprep.subr.bf16.mxu0 0
      %1649 = vmatpush2.bf16.msra.mxu0 0
      %1650 = vmatprep.subr.bf16.mxu0 0
      %1651 = vmatpush2.bf16.msra.mxu0 0
      %1652 = vmatprep.subr.bf16.mxu0 0
      %1653 = vmatpush2.bf16.msra.mxu0 0
      %1654 = vmatprep.subr.bf16.mxu0 0
      %1655 = vmatpush2.bf16.msra.mxu0 0
      %1656 = vmatprep.subr.bf16.mxu0 0
      %1657 = vmatpush2.bf16.msra.mxu0 0
      %1658 = vmatprep.subr.bf16.mxu0 0
      %1659 = vmatpush2.bf16.msra.mxu0 0
      %1660 = vmatprep.mubr.bf16.mxu0 0
      %1661 = vmatmul.mubr.bf16.gmra.mxu0 %v1614
      %v1662 = vpop.f32.mrf.mxu0
      %v1663 = vadd.f32 0.0, %v1662
      %v1664 = vpop.f32.mrf.mxu0
      %v1665 = vpop.f32.mrf.mxu0
      %v1666 = vadd.f32 0.0, %v1665
      %v1667 = vpop.f32.mrf.mxu0
      %1668 = vmatprep.mubr.bf16.mxu0 0
      %1669 = vmatmul.mubr.bf16.gmra.mxu0 %v1617
      %v1670 = vpop.f32.mrf.mxu0
      %v1671 = vadd.f32 0.0, %v1670
      %v1672 = vpop.f32.mrf.mxu0
      %v1673 = vpop.f32.mrf.mxu0
      %v1674 = vadd.f32 0.0, %v1673
      %v1675 = vpop.f32.mrf.mxu0
      %1676 = vmatprep.mubr.bf16.mxu0 0
      %1677 = vmatmul.mubr.bf16.gmra.mxu0 %v1620
      %v1678 = vpop.f32.mrf.mxu0
      %v1679 = vadd.f32 0.0, %v1678
      %v1680 = vpop.f32.mrf.mxu0
      %v1681 = vpop.f32.mrf.mxu0
      %v1682 = vadd.f32 0.0, %v1681
      %v1683 = vpop.f32.mrf.mxu0
      %1684 = vmatprep.mubr.bf16.mxu0 0
      %1685 = vmatmul.mubr.bf16.gmra.mxu0 %v1623
      %v1686 = vpop.f32.mrf.mxu0
      %v1687 = vadd.f32 0.0, %v1686
      %v1688 = vpop.f32.mrf.mxu0
      %v1689 = vpop.f32.mrf.mxu0
      %v1690 = vadd.f32 0.0, %v1689
      %v1691 = vpop.f32.mrf.mxu0
      %1692 = vdwg.mxu0
      %v1693 = vadd.f32 %v1574, %v1663
      %v1694 = vadd.f32 %v1575, %v1666
      %v1695 = vadd.f32 %v1576, %v1671
      %v1696 = vadd.f32 %v1577, %v1674
      %v1697 = vadd.f32 %v1578, %v1679
      %v1698 = vadd.f32 %v1579, %v1682
      %v1699 = vadd.f32 %v1580, %v1687
      %v1700 = vadd.f32 %v1581, %v1690
      %v1701 = vld [vmem:[%s1582] sm:$0xf]
      %v1702 = vld [vmem:[%s1582 + $0x4] sm:$0x1]
      %v1703 = vld [vmem:[%s1582 + $0x8] sm:$0xf]
      %v1704 = vld [vmem:[%s1582 + $0xc] sm:$0x1]
      %v1705 = vld [vmem:[%s1582 + $0x10] sm:$0xf]
      %v1706 = vld [vmem:[%s1582 + $0x14] sm:$0x1]
      %v1707 = vld [vmem:[%s1582 + $0x18] sm:$0xf]
      %v1708 = vld [vmem:[%s1582 + $0x1c] sm:$0x1]
      %v1709 = vld [vmem:[%s1582 + $0x20] sm:$0xf]
      %v1710 = vld [vmem:[%s1582 + $0x24] sm:$0x1]
      %v1711 = vld [vmem:[%s1582 + $0x28] sm:$0xf]
      %v1712 = vld [vmem:[%s1582 + $0x2c] sm:$0x1]
      %v1713 = vld [vmem:[%s1582 + $0x30] sm:$0xf]
      %v1714 = vld [vmem:[%s1582 + $0x34] sm:$0x1]
      %v1715 = vld [vmem:[%s1582 + $0x38] sm:$0xf]
      %v1716 = vld [vmem:[%s1582 + $0x3c] sm:$0x1]
      %v1718 = vshrl.u32 %v1701, 16
      %v1720 = vrot.slane %v1718, 4
      %v1721 = vshll.u32 %v1701, 16
      %v1723 = vrot.slane %v1721, 5
      %v1724 = vor.u32 %v1720, %v1723
      %v1725 = vrot.slane %v1724, 4
      %v1727 = vshll.u32 %v1702, 16
      %v1729 = vrot.slane %v1727, 5
      %v1730 = vsel %vm606, %v1725, %v1729
      %v1732 = vshrl.u32 %v1703, 16
      %v1734 = vrot.slane %v1732, 4
      %v1735 = vshll.u32 %v1703, 16
      %v1737 = vrot.slane %v1735, 5
      %v1738 = vor.u32 %v1734, %v1737
      %v1739 = vrot.slane %v1738, 4
      %v1741 = vshll.u32 %v1704, 16
      %v1743 = vrot.slane %v1741, 5
      %v1744 = vsel %vm606, %v1739, %v1743
      %v1746 = vshrl.u32 %v1705, 16
      %v1748 = vrot.slane %v1746, 4
      %v1749 = vshll.u32 %v1705, 16
      %v1751 = vrot.slane %v1749, 5
      %v1752 = vor.u32 %v1748, %v1751
      %v1753 = vrot.slane %v1752, 4
      %v1755 = vshll.u32 %v1706, 16
      %v1757 = vrot.slane %v1755, 5
      %v1758 = vsel %vm606, %v1753, %v1757
      %v1760 = vshrl.u32 %v1707, 16
      %v1762 = vrot.slane %v1760, 4
      %v1763 = vshll.u32 %v1707, 16
      %v1765 = vrot.slane %v1763, 5
      %v1766 = vor.u32 %v1762, %v1765
      %v1767 = vrot.slane %v1766, 4
      %v1769 = vshll.u32 %v1708, 16
      %v1771 = vrot.slane %v1769, 5
      %v1772 = vsel %vm606, %v1767, %v1771
      %v1774 = vshrl.u32 %v1709, 16
      %v1776 = vrot.slane %v1774, 4
      %v1777 = vshll.u32 %v1709, 16
      %v1779 = vrot.slane %v1777, 5
      %v1780 = vor.u32 %v1776, %v1779
      %v1781 = vrot.slane %v1780, 4
      %v1783 = vshll.u32 %v1710, 16
      %v1785 = vrot.slane %v1783, 5
      %v1786 = vsel %vm606, %v1781, %v1785
      %v1788 = vshrl.u32 %v1711, 16
      %v1790 = vrot.slane %v1788, 4
      %v1791 = vshll.u32 %v1711, 16
      %v1793 = vrot.slane %v1791, 5
      %v1794 = vor.u32 %v1790, %v1793
      %v1795 = vrot.slane %v1794, 4
      %v1797 = vshll.u32 %v1712, 16
      %v1799 = vrot.slane %v1797, 5
      %v1800 = vsel %vm606, %v1795, %v1799
      %v1802 = vshrl.u32 %v1713, 16
      %v1804 = vrot.slane %v1802, 4
      %v1805 = vshll.u32 %v1713, 16
      %v1807 = vrot.slane %v1805, 5
      %v1808 = vor.u32 %v1804, %v1807
      %v1809 = vrot.slane %v1808, 4
      %v1811 = vshll.u32 %v1714, 16
      %v1813 = vrot.slane %v1811, 5
      %v1814 = vsel %vm606, %v1809, %v1813
      %v1816 = vshrl.u32 %v1715, 16
      %v1818 = vrot.slane %v1816, 4
      %v1819 = vshll.u32 %v1715, 16
      %v1821 = vrot.slane %v1819, 5
      %v1822 = vor.u32 %v1818, %v1821
      %v1823 = vrot.slane %v1822, 4
      %v1825 = vshll.u32 %v1716, 16
      %v1827 = vrot.slane %v1825, 5
      %v1828 = vsel %vm606, %v1823, %v1827
      %s1829 = scalar_lea.vmem %s1, 14
      %v1830 = vld [vmem:[%s1829] sm:$0x3]
      %v1831 = vunpack.c.l.b16 %v1730
      %v1832 = vunpack.c.l.b16 %v1744
      %v1833 = vunpack.c.l.b16 %v1758
      %v1834 = vunpack.c.l.b16 %v1772
      %v1835 = vunpack.c.l.b16 %v1786
      %v1836 = vunpack.c.l.b16 %v1800
      %v1837 = vunpack.c.l.b16 %v1814
      %v1838 = vunpack.c.l.b16 %v1828
      %v1839 = vpack.c.b16 %v1832, %v1831
      %v1840 = vpack.c.b16 %v1834, %v1833
      %v1841 = vpack.c.b16 %v1836, %v1835
      %v1842 = vpack.c.b16 %v1838, %v1837
      %v1844 = vsel %vm733, %v1839, 0
      %v1847 = vsel %vm733, %v1840, 0
      %v1850 = vsel %vm733, %v1841, 0
      %v1853 = vsel %vm733, %v1842, 0
      %v1856 = vsel %vm746, %v1830, 0
      %1858 = vmatprep.subr.bf16.mxu0 0
      %1859 = vmatpush1.bf16.msra.mxu0 0
      %1860 = vmatprep.subr.bf16.mxu0 0
      %1861 = vmatpush1.bf16.msra.mxu0 0
      %1862 = vmatprep.subr.bf16.mxu0 0
      %1863 = vmatpush1.bf16.msra.mxu0 0
      %1864 = vmatprep.subr.bf16.mxu0 0
      %1865 = vmatpush1.bf16.msra.mxu0 0
      %1866 = vmatprep.subr.bf16.mxu0 0
      %1867 = vmatpush1.bf16.msra.mxu0 0
      %1868 = vmatprep.subr.bf16.mxu0 0
      %1869 = vmatpush1.bf16.msra.mxu0 0
      %1870 = vmatprep.subr.bf16.mxu0 0
      %1871 = vmatpush1.bf16.msra.mxu0 0
      %1872 = vmatprep.subr.bf16.mxu0 0
      %1873 = vmatpush1.bf16.msra.mxu0 %v1856
      %1874 = vmatprep.subr.bf16.mxu0 0
      %1875 = vmatpush2.bf16.msra.mxu0 0
      %1876 = vmatprep.subr.bf16.mxu0 0
      %1877 = vmatpush2.bf16.msra.mxu0 0
      %1878 = vmatprep.subr.bf16.mxu0 0
      %1879 = vmatpush2.bf16.msra.mxu0 0
      %1880 = vmatprep.subr.bf16.mxu0 0
      %1881 = vmatpush2.bf16.msra.mxu0 0
      %1882 = vmatprep.subr.bf16.mxu0 0
      %1883 = vmatpush2.bf16.msra.mxu0 0
      %1884 = vmatprep.subr.bf16.mxu0 0
      %1885 = vmatpush2.bf16.msra.mxu0 0
      %1886 = vmatprep.subr.bf16.mxu0 0
      %1887 = vmatpush2.bf16.msra.mxu0 0
      %1888 = vmatprep.subr.bf16.mxu0 0
      %1889 = vmatpush2.bf16.msra.mxu0 0
      %1890 = vmatprep.mubr.bf16.mxu0 0
      %1891 = vmatmul.mubr.bf16.gmra.mxu0 %v1844
      %v1892 = vpop.f32.mrf.mxu0
      %v1893 = vadd.f32 0.0, %v1892
      %v1894 = vpop.f32.mrf.mxu0
      %v1895 = vpop.f32.mrf.mxu0
      %v1896 = vadd.f32 0.0, %v1895
      %v1897 = vpop.f32.mrf.mxu0
      %1898 = vmatprep.mubr.bf16.mxu0 0
      %1899 = vmatmul.mubr.bf16.gmra.mxu0 %v1847
      %v1900 = vpop.f32.mrf.mxu0
      %v1901 = vadd.f32 0.0, %v1900
      %v1902 = vpop.f32.mrf.mxu0
      %v1903 = vpop.f32.mrf.mxu0
      %v1904 = vadd.f32 0.0, %v1903
      %v1905 = vpop.f32.mrf.mxu0
      %1906 = vmatprep.mubr.bf16.mxu0 0
      %1907 = vmatmul.mubr.bf16.gmra.mxu0 %v1850
      %v1908 = vpop.f32.mrf.mxu0
      %v1909 = vadd.f32 0.0, %v1908
      %v1910 = vpop.f32.mrf.mxu0
      %v1911 = vpop.f32.mrf.mxu0
      %v1912 = vadd.f32 0.0, %v1911
      %v1913 = vpop.f32.mrf.mxu0
      %1914 = vmatprep.mubr.bf16.mxu0 0
      %1915 = vmatmul.mubr.bf16.gmra.mxu0 %v1853
      %v1916 = vpop.f32.mrf.mxu0
      %v1917 = vadd.f32 0.0, %v1916
      %v1918 = vpop.f32.mrf.mxu0
      %v1919 = vpop.f32.mrf.mxu0
      %v1920 = vadd.f32 0.0, %v1919
      %v1921 = vpop.f32.mrf.mxu0
      %1922 = vdwg.mxu0
      %v1923 = vadd.f32 %v1693, %v1893
      %v1924 = vadd.f32 %v1694, %v1896
      %v1925 = vadd.f32 %v1695, %v1901
      %v1926 = vadd.f32 %v1696, %v1904
      %v1927 = vadd.f32 %v1697, %v1909
      %v1928 = vadd.f32 %v1698, %v1912
      %v1929 = vadd.f32 %v1699, %v1917
      %v1930 = vadd.f32 %v1700, %v1920
      %v1931 = vld [vmem:[%s1582] sm:$0xe]
      %v1932 = vld [vmem:[%s1582 + $0x8] sm:$0xe]
      %v1933 = vld [vmem:[%s1582 + $0x10] sm:$0xe]
      %v1934 = vld [vmem:[%s1582 + $0x18] sm:$0xe]
      %v1935 = vld [vmem:[%s1582 + $0x20] sm:$0xe]
      %v1936 = vld [vmem:[%s1582 + $0x28] sm:$0xe]
      %v1937 = vld [vmem:[%s1582 + $0x30] sm:$0xe]
      %v1938 = vld [vmem:[%s1582 + $0x38] sm:$0xe]
      %v1955 = vrot.slane %v1931, 5
      %v1956 = vrot.slane %v1955, 4
      %v1957 = vrot.slane %v1702, 5
      %v1958 = vsel %vm941, %v1956, %v1957
      %v1959 = vrot.slane %v1932, 5
      %v1960 = vrot.slane %v1959, 4
      %v1961 = vrot.slane %v1704, 5
      %v1962 = vsel %vm941, %v1960, %v1961
      %v1963 = vrot.slane %v1933, 5
      %v1964 = vrot.slane %v1963, 4
      %v1965 = vrot.slane %v1706, 5
      %v1966 = vsel %vm941, %v1964, %v1965
      %v1967 = vrot.slane %v1934, 5
      %v1968 = vrot.slane %v1967, 4
      %v1969 = vrot.slane %v1708, 5
      %v1970 = vsel %vm941, %v1968, %v1969
      %v1971 = vrot.slane %v1935, 5
      %v1972 = vrot.slane %v1971, 4
      %v1973 = vrot.slane %v1710, 5
      %v1974 = vsel %vm941, %v1972, %v1973
      %v1975 = vrot.slane %v1936, 5
      %v1976 = vrot.slane %v1975, 4
      %v1977 = vrot.slane %v1712, 5
      %v1978 = vsel %vm941, %v1976, %v1977
      %v1979 = vrot.slane %v1937, 5
      %v1980 = vrot.slane %v1979, 4
      %v1981 = vrot.slane %v1714, 5
      %v1982 = vsel %vm941, %v1980, %v1981
      %v1983 = vrot.slane %v1938, 5
      %v1984 = vrot.slane %v1983, 4
      %v1985 = vrot.slane %v1716, 5
      %v1986 = vsel %vm941, %v1984, %v1985
      %s1987 = scalar_lea.vmem %s1, 16
      %v1988 = vld [vmem:[%s1987] sm:$0x3]
      %v1989 = vunpack.c.l.b16 %v1958
      %v1990 = vunpack.c.l.b16 %v1962
      %v1991 = vunpack.c.l.b16 %v1966
      %v1992 = vunpack.c.l.b16 %v1970
      %v1993 = vunpack.c.l.b16 %v1974
      %v1994 = vunpack.c.l.b16 %v1978
      %v1995 = vunpack.c.l.b16 %v1982
      %v1996 = vunpack.c.l.b16 %v1986
      %v1997 = vpack.c.b16 %v1990, %v1989
      %v1998 = vpack.c.b16 %v1992, %v1991
      %v1999 = vpack.c.b16 %v1994, %v1993
      %v2000 = vpack.c.b16 %v1996, %v1995
      %v2002 = vsel %vm733, %v1997, 0
      %v2005 = vsel %vm733, %v1998, 0
      %v2008 = vsel %vm733, %v1999, 0
      %v2011 = vsel %vm733, %v2000, 0
      %v2014 = vsel %vm746, %v1988, 0
      %2016 = vmatprep.subr.bf16.mxu0 0
      %2017 = vmatpush1.bf16.msra.mxu0 0
      %2018 = vmatprep.subr.bf16.mxu0 0
      %2019 = vmatpush1.bf16.msra.mxu0 0
      %2020 = vmatprep.subr.bf16.mxu0 0
      %2021 = vmatpush1.bf16.msra.mxu0 0
      %2022 = vmatprep.subr.bf16.mxu0 0
      %2023 = vmatpush1.bf16.msra.mxu0 0
      %2024 = vmatprep.subr.bf16.mxu0 0
      %2025 = vmatpush1.bf16.msra.mxu0 0
      %2026 = vmatprep.subr.bf16.mxu0 0
      %2027 = vmatpush1.bf16.msra.mxu0 0
      %2028 = vmatprep.subr.bf16.mxu0 0
      %2029 = vmatpush1.bf16.msra.mxu0 0
      %2030 = vmatprep.subr.bf16.mxu0 0
      %2031 = vmatpush1.bf16.msra.mxu0 %v2014
      %2032 = vmatprep.subr.bf16.mxu0 0
      %2033 = vmatpush2.bf16.msra.mxu0 0
      %2034 = vmatprep.subr.bf16.mxu0 0
      %2035 = vmatpush2.bf16.msra.mxu0 0
      %2036 = vmatprep.subr.bf16.mxu0 0
      %2037 = vmatpush2.bf16.msra.mxu0 0
      %2038 = vmatprep.subr.bf16.mxu0 0
      %2039 = vmatpush2.bf16.msra.mxu0 0
      %2040 = vmatprep.subr.bf16.mxu0 0
      %2041 = vmatpush2.bf16.msra.mxu0 0
      %2042 = vmatprep.subr.bf16.mxu0 0
      %2043 = vmatpush2.bf16.msra.mxu0 0
      %2044 = vmatprep.subr.bf16.mxu0 0
      %2045 = vmatpush2.bf16.msra.mxu0 0
      %2046 = vmatprep.subr.bf16.mxu0 0
      %2047 = vmatpush2.bf16.msra.mxu0 0
      %2048 = vmatprep.mubr.bf16.mxu0 0
      %2049 = vmatmul.mubr.bf16.gmra.mxu0 %v2002
      %v2050 = vpop.f32.mrf.mxu0
      %v2051 = vadd.f32 0.0, %v2050
      %v2052 = vpop.f32.mrf.mxu0
      %v2053 = vpop.f32.mrf.mxu0
      %v2054 = vadd.f32 0.0, %v2053
      %v2055 = vpop.f32.mrf.mxu0
      %2056 = vmatprep.mubr.bf16.mxu0 0
      %2057 = vmatmul.mubr.bf16.gmra.mxu0 %v2005
      %v2058 = vpop.f32.mrf.mxu0
      %v2059 = vadd.f32 0.0, %v2058
      %v2060 = vpop.f32.mrf.mxu0
      %v2061 = vpop.f32.mrf.mxu0
      %v2062 = vadd.f32 0.0, %v2061
      %v2063 = vpop.f32.mrf.mxu0
      %2064 = vmatprep.mubr.bf16.mxu0 0
      %2065 = vmatmul.mubr.bf16.gmra.mxu0 %v2008
      %v2066 = vpop.f32.mrf.mxu0
      %v2067 = vadd.f32 0.0, %v2066
      %v2068 = vpop.f32.mrf.mxu0
      %v2069 = vpop.f32.mrf.mxu0
      %v2070 = vadd.f32 0.0, %v2069
      %v2071 = vpop.f32.mrf.mxu0
      %2072 = vmatprep.mubr.bf16.mxu0 0
      %2073 = vmatmul.mubr.bf16.gmra.mxu0 %v2011
      %v2074 = vpop.f32.mrf.mxu0
      %v2075 = vadd.f32 0.0, %v2074
      %v2076 = vpop.f32.mrf.mxu0
      %v2077 = vpop.f32.mrf.mxu0
      %v2078 = vadd.f32 0.0, %v2077
      %v2079 = vpop.f32.mrf.mxu0
      %2080 = vdwg.mxu0
      %v2081 = vadd.f32 %v1923, %v2051
      %v2082 = vadd.f32 %v1924, %v2054
      %v2083 = vadd.f32 %v1925, %v2059
      %v2084 = vadd.f32 %v1926, %v2062
      %v2085 = vadd.f32 %v1927, %v2067
      %v2086 = vadd.f32 %v1928, %v2070
      %v2087 = vadd.f32 %v1929, %v2075
      %v2088 = vadd.f32 %v1930, %v2078
      %v2089 = vld [vmem:[%s2] sm:$0x1]
      %v2091 = vlaneseq
      %v2092 = vshrl.u32 %v2091, 7
      %v2093 = vsub.s32 0, %v2092
      %v2094 = vrot.slane %v2089, %v2093
      %v2096 = vadd.f32 %v2081, %v2094
      %v2097 = vadd.f32 %v2082, %v2094
      %v2098 = vadd.f32 %v2083, %v2094
      %v2099 = vadd.f32 %v2084, %v2094
      %v2100 = vadd.f32 %v2085, %v2094
      %v2101 = vadd.f32 %v2086, %v2094
      %v2102 = vadd.f32 %v2087, %v2094
      %v2103 = vadd.f32 %v2088, %v2094
      %vm2104 = vcmask 64512
      %v2105 = vsel %vm2104, %v2096, 0.0
      %v2106 = vsel %vm2104, %v2097, 0.0
      %v2107 = vadd.f32 %v2105, %v2106
      %v2108 = vsel %vm2104, %v2098, 0.0
      %v2109 = vadd.f32 %v2107, %v2108
      %v2110 = vsel %vm2104, %v2099, 0.0
      %v2111 = vadd.f32 %v2109, %v2110
      %v2112 = vsel %vm2104, %v2100, 0.0
      %v2113 = vadd.f32 %v2111, %v2112
      %v2114 = vsel %vm2104, %v2101, 0.0
      %v2115 = vadd.f32 %v2113, %v2114
      %v2116 = vsel %vm2104, %v2102, 0.0
      %v2117 = vadd.f32 %v2115, %v2116
      %v2118 = vsel %vm2104, %v2103, 0.0
      %v2119 = vadd.f32 %v2117, %v2118
      %v2120 = vrot.slane %v2119, 4
      %v2121 = vadd.f32 %v2119, %v2120
      %v2122 = vrot.slane %v2121, 2
      %v2123 = vadd.f32 %v2121, %v2122
      %v2124 = vrot.slane %v2123, 1
      %v2125 = vadd.f32 %v2123, %v2124
      %v2126 = vrcp.pop 64.0
      %v2127 = vmul.f32 %v2125, %v2126
      %v2128 = vmul.f32 %v2096, %v2096
      %v2129 = vmul.f32 %v2097, %v2097
      %v2130 = vmul.f32 %v2098, %v2098
      %v2131 = vmul.f32 %v2099, %v2099
      %v2132 = vmul.f32 %v2100, %v2100
      %v2133 = vmul.f32 %v2101, %v2101
      %v2134 = vmul.f32 %v2102, %v2102
      %v2135 = vmul.f32 %v2103, %v2103
      %v2136 = vsel %vm2104, %v2128, 0.0
      %v2137 = vsel %vm2104, %v2129, 0.0
      %v2138 = vadd.f32 %v2136, %v2137
      %v2139 = vsel %vm2104, %v2130, 0.0
      %v2140 = vadd.f32 %v2138, %v2139
      %v2141 = vsel %vm2104, %v2131, 0.0
      %v2142 = vadd.f32 %v2140, %v2141
      %v2143 = vsel %vm2104, %v2132, 0.0
      %v2144 = vadd.f32 %v2142, %v2143
      %v2145 = vsel %vm2104, %v2133, 0.0
      %v2146 = vadd.f32 %v2144, %v2145
      %v2147 = vsel %vm2104, %v2134, 0.0
      %v2148 = vadd.f32 %v2146, %v2147
      %v2149 = vsel %vm2104, %v2135, 0.0
      %v2150 = vadd.f32 %v2148, %v2149
      %v2151 = vrot.slane %v2150, 4
      %v2152 = vadd.f32 %v2150, %v2151
      %v2153 = vrot.slane %v2152, 2
      %v2154 = vadd.f32 %v2152, %v2153
      %v2155 = vrot.slane %v2154, 1
      %v2156 = vadd.f32 %v2154, %v2155
      %v2157 = vmul.f32 %v2156, %v2126
      %v2158 = vmul.f32 %v2127, %v2127
      %v2159 = vsub.f32 %v2157, %v2158
      %v2160 = vmax.f32 %v2159, 0.0
      %v2161 = vsub.f32 %v2096, %v2127
      %v2162 = vsub.f32 %v2097, %v2127
      %v2163 = vsub.f32 %v2098, %v2127
      %v2164 = vsub.f32 %v2099, %v2127
      %v2165 = vsub.f32 %v2100, %v2127
      %v2166 = vsub.f32 %v2101, %v2127
      %v2167 = vsub.f32 %v2102, %v2127
      %v2168 = vsub.f32 %v2103, %v2127
      %v2169 = vadd.f32 %v2160, 1e-05
      %v2170 = vrsqrt.pop %v2169
      %v2171 = vmul.f32 %v2161, %v2170
      %v2172 = vmul.f32 %v2162, %v2170
      %v2173 = vmul.f32 %v2163, %v2170
      %v2174 = vmul.f32 %v2164, %v2170
      %v2175 = vmul.f32 %v2165, %v2170
      %v2176 = vmul.f32 %v2166, %v2170
      %v2177 = vmul.f32 %v2167, %v2170
      %v2178 = vmul.f32 %v2168, %v2170
      %v2179 = vld [vmem:[%s3] sm:$0x1]
      %v2181 = vlaneseq
      %v2182 = vshrl.u32 %v2181, 7
      %v2183 = vsub.s32 0, %v2182
      %v2184 = vrot.slane %v2179, %v2183
      %v2186 = vmul.f32 %v2171, %v2184
      %v2187 = vmul.f32 %v2172, %v2184
      %v2188 = vmul.f32 %v2173, %v2184
      %v2189 = vmul.f32 %v2174, %v2184
      %v2190 = vmul.f32 %v2175, %v2184
      %v2191 = vmul.f32 %v2176, %v2184
      %v2192 = vmul.f32 %v2177, %v2184
      %v2193 = vmul.f32 %v2178, %v2184
      %v2194 = vld [vmem:[%s4] sm:$0x1]
      %v2196 = vlaneseq
      %v2197 = vshrl.u32 %v2196, 7
      %v2198 = vsub.s32 0, %v2197
      %v2199 = vrot.slane %v2194, %v2198
      %v2201 = vadd.f32 %v2186, %v2199
      %v2202 = vadd.f32 %v2187, %v2199
      %v2203 = vadd.f32 %v2188, %v2199
      %v2204 = vadd.f32 %v2189, %v2199
      %v2205 = vadd.f32 %v2190, %v2199
      %v2206 = vadd.f32 %v2191, %v2199
      %v2207 = vadd.f32 %v2192, %v2199
      %v2208 = vadd.f32 %v2193, %v2199
      %v2209 = vmax.f32 %v2201, 0.0
      %v2210 = vmax.f32 %v2202, 0.0
      %v2211 = vmax.f32 %v2203, 0.0
      %v2212 = vmax.f32 %v2204, 0.0
      %v2213 = vmax.f32 %v2205, 0.0
      %v2214 = vmax.f32 %v2206, 0.0
      %v2215 = vmax.f32 %v2207, 0.0
      %v2216 = vmax.f32 %v2208, 0.0
      %vm2217 = vcmask 60416
      %2218 = vst.msk [vmem:[#allocation3] sm:$0xf] %vm2217, 0
      %vm2219 = vcmask 57344
      %2220 = vst.msk [vmem:[#allocation3 + $0x4] sm:$0x1] %vm2219, 0
      %2221 = vst.msk [vmem:[#allocation3 + $0x8] sm:$0xf] %vm2217, 0
      %2222 = vst.msk [vmem:[#allocation3 + $0xc] sm:$0x1] %vm2219, 0
      %2223 = vst.msk [vmem:[#allocation3 + $0x10] sm:$0xf] %vm2217, 0
      %2224 = vst.msk [vmem:[#allocation3 + $0x14] sm:$0x1] %vm2219, 0
      %2225 = vst.msk [vmem:[#allocation3 + $0x18] sm:$0xf] %vm2217, 0
      %2226 = vst.msk [vmem:[#allocation3 + $0x1c] sm:$0x1] %vm2219, 0
      %2227 = vst.msk [vmem:[#allocation3 + $0x20] sm:$0xf] %vm2217, 0
      %2228 = vst.msk [vmem:[#allocation3 + $0x24] sm:$0x1] %vm2219, 0
      %2229 = vst.msk [vmem:[#allocation3 + $0x28] sm:$0xf] %vm2217, 0
      %2230 = vst.msk [vmem:[#allocation3 + $0x2c] sm:$0x1] %vm2219, 0
      %2231 = vst.msk [vmem:[#allocation3 + $0x30] sm:$0xf] %vm2217, 0
      %2232 = vst.msk [vmem:[#allocation3 + $0x34] sm:$0x1] %vm2219, 0
      %2233 = vst.msk [vmem:[#allocation3 + $0x38] sm:$0xf] %vm2217, 0
      %2234 = vst.msk [vmem:[#allocation3 + $0x3c] sm:$0x1] %vm2219, 0
      %2235 = vst.msk [vmem:[#allocation3 + $0x40] sm:$0xf] %vm2217, 0
      %2236 = vst.msk [vmem:[#allocation3 + $0x44] sm:$0x1] %vm2219, 0
      %2237 = vst.msk [vmem:[#allocation3 + $0x48] sm:$0xf] %vm2217, 0
      %2238 = vst.msk [vmem:[#allocation3 + $0x4c] sm:$0x1] %vm2219, 0
      %v2239 = vpack.c.bf16 %v2209, %v2209
      %v2240 = vpack.c.bf16 %v2210, %v2210
      %v2241 = vpack.c.bf16 %v2211, %v2211
      %v2242 = vpack.c.bf16 %v2212, %v2212
      %v2243 = vpack.c.bf16 %v2213, %v2213
      %v2244 = vpack.c.bf16 %v2214, %v2214
      %v2245 = vpack.c.bf16 %v2215, %v2215
      %v2246 = vpack.c.bf16 %v2216, %v2216
      %v2255 = vunpack.c.l.b16 %v2239
      %v2256 = vunpack.c.l.b16 %v2240
      %v2257 = vunpack.c.l.b16 %v2241
      %v2258 = vunpack.c.l.b16 %v2242
      %v2259 = vunpack.c.l.b16 %v2243
      %v2260 = vunpack.c.l.b16 %v2244
      %v2261 = vunpack.c.l.b16 %v2245
      %v2262 = vunpack.c.l.b16 %v2246
      %v2263 = vpack.c.b16 %v2255, %v2255
      %v2264 = vpack.c.b16 %v2256, %v2256
      %v2265 = vpack.c.b16 %v2257, %v2257
      %v2266 = vpack.c.b16 %v2258, %v2258
      %v2267 = vpack.c.b16 %v2259, %v2259
      %v2268 = vpack.c.b16 %v2260, %v2260
      %v2269 = vpack.c.b16 %v2261, %v2261
      %v2270 = vpack.c.b16 %v2262, %v2262
      %v2272 = vshrl.u32 %v2263, 16
      %v2274 = vrot.slane %v2272, 7
      %v2275 = vshll.u32 %v2263, 16
      %v2277 = vor.u32 %v2274, %v2275
      %v2278 = vrot.slane %v2274, 4
      %v2280 = vshrl.u32 %v2264, 16
      %v2282 = vrot.slane %v2280, 7
      %v2283 = vshll.u32 %v2264, 16
      %v2285 = vor.u32 %v2282, %v2283
      %v2286 = vrot.slane %v2282, 4
      %v2288 = vshrl.u32 %v2265, 16
      %v2290 = vrot.slane %v2288, 7
      %v2291 = vshll.u32 %v2265, 16
      %v2293 = vor.u32 %v2290, %v2291
      %v2294 = vrot.slane %v2290, 4
      %v2296 = vshrl.u32 %v2266, 16
      %v2298 = vrot.slane %v2296, 7
      %v2299 = vshll.u32 %v2266, 16
      %v2301 = vor.u32 %v2298, %v2299
      %v2302 = vrot.slane %v2298, 4
      %v2304 = vshrl.u32 %v2267, 16
      %v2306 = vrot.slane %v2304, 7
      %v2307 = vshll.u32 %v2267, 16
      %v2309 = vor.u32 %v2306, %v2307
      %v2310 = vrot.slane %v2306, 4
      %v2312 = vshrl.u32 %v2268, 16
      %v2314 = vrot.slane %v2312, 7
      %v2315 = vshll.u32 %v2268, 16
      %v2317 = vor.u32 %v2314, %v2315
      %v2318 = vrot.slane %v2314, 4
      %v2320 = vshrl.u32 %v2269, 16
      %v2322 = vrot.slane %v2320, 7
      %v2323 = vshll.u32 %v2269, 16
      %v2325 = vor.u32 %v2322, %v2323
      %v2326 = vrot.slane %v2322, 4
      %v2328 = vshrl.u32 %v2270, 16
      %v2330 = vrot.slane %v2328, 7
      %v2331 = vshll.u32 %v2270, 16
      %v2333 = vor.u32 %v2330, %v2331
      %v2334 = vrot.slane %v2330, 4
      %s2351 = scalar_lea.vmem [#allocation3], 8
      %vm2352 = vcmask 60416
      %vm2353 = vmand %vm2352, %vm534
      %v2354 = vld [vmem:[%s2351] sm:$0xf]
      %v2355 = vsel %vm2353, %v2277, %v2354
      %2356 = vst [vmem:[%s2351] sm:$0xf] %v2355
      %vm2357 = vcmask 57344
      %vm2358 = vmand %vm2357, %vm540
      %v2359 = vld [vmem:[%s2351 + $0x4] sm:$0x1]
      %v2360 = vsel %vm2358, %v2278, %v2359
      %2361 = vst [vmem:[%s2351 + $0x4] sm:$0x1] %v2360
      %v2362 = vld [vmem:[%s2351 + $0x8] sm:$0xf]
      %v2363 = vsel %vm2353, %v2285, %v2362
      %2364 = vst [vmem:[%s2351 + $0x8] sm:$0xf] %v2363
      %v2365 = vld [vmem:[%s2351 + $0xc] sm:$0x1]
      %v2366 = vsel %vm2358, %v2286, %v2365
      %2367 = vst [vmem:[%s2351 + $0xc] sm:$0x1] %v2366
      %v2368 = vld [vmem:[%s2351 + $0x10] sm:$0xf]
      %v2369 = vsel %vm2353, %v2293, %v2368
      %2370 = vst [vmem:[%s2351 + $0x10] sm:$0xf] %v2369
      %v2371 = vld [vmem:[%s2351 + $0x14] sm:$0x1]
      %v2372 = vsel %vm2358, %v2294, %v2371
      %2373 = vst [vmem:[%s2351 + $0x14] sm:$0x1] %v2372
      %v2374 = vld [vmem:[%s2351 + $0x18] sm:$0xf]
      %v2375 = vsel %vm2353, %v2301, %v2374
      %2376 = vst [vmem:[%s2351 + $0x18] sm:$0xf] %v2375
      %v2377 = vld [vmem:[%s2351 + $0x1c] sm:$0x1]
      %v2378 = vsel %vm2358, %v2302, %v2377
      %2379 = vst [vmem:[%s2351 + $0x1c] sm:$0x1] %v2378
      %v2380 = vld [vmem:[%s2351 + $0x20] sm:$0xf]
      %v2381 = vsel %vm2353, %v2309, %v2380
      %2382 = vst [vmem:[%s2351 + $0x20] sm:$0xf] %v2381
      %v2383 = vld [vmem:[%s2351 + $0x24] sm:$0x1]
      %v2384 = vsel %vm2358, %v2310, %v2383
      %2385 = vst [vmem:[%s2351 + $0x24] sm:$0x1] %v2384
      %v2386 = vld [vmem:[%s2351 + $0x28] sm:$0xf]
      %v2387 = vsel %vm2353, %v2317, %v2386
      %2388 = vst [vmem:[%s2351 + $0x28] sm:$0xf] %v2387
      %v2389 = vld [vmem:[%s2351 + $0x2c] sm:$0x1]
      %v2390 = vsel %vm2358, %v2318, %v2389
      %2391 = vst [vmem:[%s2351 + $0x2c] sm:$0x1] %v2390
      %v2392 = vld [vmem:[%s2351 + $0x30] sm:$0xf]
      %v2393 = vsel %vm2353, %v2325, %v2392
      %2394 = vst [vmem:[%s2351 + $0x30] sm:$0xf] %v2393
      %v2395 = vld [vmem:[%s2351 + $0x34] sm:$0x1]
      %v2396 = vsel %vm2358, %v2326, %v2395
      %2397 = vst [vmem:[%s2351 + $0x34] sm:$0x1] %v2396
      %v2398 = vld [vmem:[%s2351 + $0x38] sm:$0xf]
      %v2399 = vsel %vm2353, %v2333, %v2398
      %2400 = vst [vmem:[%s2351 + $0x38] sm:$0xf] %v2399
      %v2401 = vld [vmem:[%s2351 + $0x3c] sm:$0x1]
      %v2402 = vsel %vm2358, %v2334, %v2401
      %2403 = vst [vmem:[%s2351 + $0x3c] sm:$0x1] %v2402
      %v2404 = vld [vmem:[#allocation3] sm:$0xf]
      %v2405 = vld [vmem:[#allocation3 + $0x8] sm:$0xf]
      %v2406 = vld [vmem:[#allocation3 + $0x10] sm:$0xf]
      %v2407 = vld [vmem:[#allocation3 + $0x18] sm:$0xf]
      %v2408 = vld [vmem:[#allocation3 + $0x20] sm:$0xf]
      %v2409 = vld [vmem:[#allocation3 + $0x28] sm:$0xf]
      %v2410 = vld [vmem:[#allocation3 + $0x30] sm:$0xf]
      %v2411 = vld [vmem:[#allocation3 + $0x38] sm:$0xf]
      %v2412 = vld [vmem:[%s5] sm:$0xf]
      %v2413 = vld [vmem:[#allocation3 + $0x4] sm:$0x1]
      %v2414 = vld [vmem:[#allocation3 + $0xc] sm:$0x1]
      %v2415 = vld [vmem:[#allocation3 + $0x14] sm:$0x1]
      %v2416 = vld [vmem:[#allocation3 + $0x1c] sm:$0x1]
      %v2417 = vld [vmem:[#allocation3 + $0x24] sm:$0x1]
      %v2418 = vld [vmem:[#allocation3 + $0x2c] sm:$0x1]
      %v2419 = vld [vmem:[#allocation3 + $0x34] sm:$0x1]
      %v2420 = vld [vmem:[#allocation3 + $0x3c] sm:$0x1]
      %v2422 = vshrl.u32 %v2404, 16
      %v2424 = vrot.slane %v2422, 4
      %v2425 = vshll.u32 %v2404, 16
      %v2427 = vrot.slane %v2425, 5
      %v2428 = vor.u32 %v2424, %v2427
      %v2429 = vrot.slane %v2428, 4
      %v2431 = vshll.u32 %v2413, 16
      %v2433 = vrot.slane %v2431, 5
      %v2434 = vsel %vm606, %v2429, %v2433
      %v2436 = vshrl.u32 %v2405, 16
      %v2438 = vrot.slane %v2436, 4
      %v2439 = vshll.u32 %v2405, 16
      %v2441 = vrot.slane %v2439, 5
      %v2442 = vor.u32 %v2438, %v2441
      %v2443 = vrot.slane %v2442, 4
      %v2445 = vshll.u32 %v2414, 16
      %v2447 = vrot.slane %v2445, 5
      %v2448 = vsel %vm606, %v2443, %v2447
      %v2450 = vshrl.u32 %v2406, 16
      %v2452 = vrot.slane %v2450, 4
      %v2453 = vshll.u32 %v2406, 16
      %v2455 = vrot.slane %v2453, 5
      %v2456 = vor.u32 %v2452, %v2455
      %v2457 = vrot.slane %v2456, 4
      %v2459 = vshll.u32 %v2415, 16
      %v2461 = vrot.slane %v2459, 5
      %v2462 = vsel %vm606, %v2457, %v2461
      %v2464 = vshrl.u32 %v2407, 16
      %v2466 = vrot.slane %v2464, 4
      %v2467 = vshll.u32 %v2407, 16
      %v2469 = vrot.slane %v2467, 5
      %v2470 = vor.u32 %v2466, %v2469
      %v2471 = vrot.slane %v2470, 4
      %v2473 = vshll.u32 %v2416, 16
      %v2475 = vrot.slane %v2473, 5
      %v2476 = vsel %vm606, %v2471, %v2475
      %v2478 = vshrl.u32 %v2408, 16
      %v2480 = vrot.slane %v2478, 4
      %v2481 = vshll.u32 %v2408, 16
      %v2483 = vrot.slane %v2481, 5
      %v2484 = vor.u32 %v2480, %v2483
      %v2485 = vrot.slane %v2484, 4
      %v2487 = vshll.u32 %v2417, 16
      %v2489 = vrot.slane %v2487, 5
      %v2490 = vsel %vm606, %v2485, %v2489
      %v2492 = vshrl.u32 %v2409, 16
      %v2494 = vrot.slane %v2492, 4
      %v2495 = vshll.u32 %v2409, 16
      %v2497 = vrot.slane %v2495, 5
      %v2498 = vor.u32 %v2494, %v2497
      %v2499 = vrot.slane %v2498, 4
      %v2501 = vshll.u32 %v2418, 16
      %v2503 = vrot.slane %v2501, 5
      %v2504 = vsel %vm606, %v2499, %v2503
      %v2506 = vshrl.u32 %v2410, 16
      %v2508 = vrot.slane %v2506, 4
      %v2509 = vshll.u32 %v2410, 16
      %v2511 = vrot.slane %v2509, 5
      %v2512 = vor.u32 %v2508, %v2511
      %v2513 = vrot.slane %v2512, 4
      %v2515 = vshll.u32 %v2419, 16
      %v2517 = vrot.slane %v2515, 5
      %v2518 = vsel %vm606, %v2513, %v2517
      %v2520 = vshrl.u32 %v2411, 16
      %v2522 = vrot.slane %v2520, 4
      %v2523 = vshll.u32 %v2411, 16
      %v2525 = vrot.slane %v2523, 5
      %v2526 = vor.u32 %v2522, %v2525
      %v2527 = vrot.slane %v2526, 4
      %v2529 = vshll.u32 %v2420, 16
      %v2531 = vrot.slane %v2529, 5
      %v2532 = vsel %vm606, %v2527, %v2531
      %s2533 = scalar_lea.vmem %s5, 4
      %v2534 = vld [vmem:[%s2533] sm:$0xf]
      %v2535 = vunpack.c.l.b16 %v2434
      %v2536 = vunpack.c.l.b16 %v2448
      %v2537 = vunpack.c.l.b16 %v2462
      %v2538 = vunpack.c.l.b16 %v2476
      %v2539 = vunpack.c.l.b16 %v2490
      %v2540 = vunpack.c.l.b16 %v2504
      %v2541 = vunpack.c.l.b16 %v2518
      %v2542 = vunpack.c.l.b16 %v2532
      %v2543 = vpack.c.b16 %v2536, %v2535
      %v2544 = vpack.c.b16 %v2538, %v2537
      %v2545 = vpack.c.b16 %v2540, %v2539
      %v2546 = vpack.c.b16 %v2542, %v2541
      %v2548 = vsel %vm2104, %v2543, 0
      %v2551 = vsel %vm2104, %v2544, 0
      %v2554 = vsel %vm2104, %v2545, 0
      %v2557 = vsel %vm2104, %v2546, 0
      %vm2559 = vcmask 1043456
      %v2561 = vsel %vm2559, %v2534, 0
      %2563 = vmatprep.subr.bf16.mxu0 0
      %2564 = vmatpush1.bf16.msra.mxu0 0
      %2565 = vmatprep.subr.bf16.mxu0 0
      %2566 = vmatpush1.bf16.msra.mxu0 0
      %2567 = vmatprep.subr.bf16.mxu0 0
      %2568 = vmatpush1.bf16.msra.mxu0 0
      %2569 = vmatprep.subr.bf16.mxu0 0
      %2570 = vmatpush1.bf16.msra.mxu0 0
      %2571 = vmatprep.subr.bf16.mxu0 0
      %2572 = vmatpush1.bf16.msra.mxu0 0
      %2573 = vmatprep.subr.bf16.mxu0 0
      %2574 = vmatpush1.bf16.msra.mxu0 0
      %2575 = vmatprep.subr.bf16.mxu0 0
      %2576 = vmatpush1.bf16.msra.mxu0 0
      %2577 = vmatprep.subr.bf16.mxu0 0
      %2578 = vmatpush1.bf16.msra.mxu0 %v2561
      %2579 = vmatprep.subr.bf16.mxu0 0
      %2580 = vmatpush2.bf16.msra.mxu0 0
      %2581 = vmatprep.subr.bf16.mxu0 0
      %2582 = vmatpush2.bf16.msra.mxu0 0
      %2583 = vmatprep.subr.bf16.mxu0 0
      %2584 = vmatpush2.bf16.msra.mxu0 0
      %2585 = vmatprep.subr.bf16.mxu0 0
      %2586 = vmatpush2.bf16.msra.mxu0 0
      %2587 = vmatprep.subr.bf16.mxu0 0
      %2588 = vmatpush2.bf16.msra.mxu0 0
      %2589 = vmatprep.subr.bf16.mxu0 0
      %2590 = vmatpush2.bf16.msra.mxu0 0
      %2591 = vmatprep.subr.bf16.mxu0 0
      %2592 = vmatpush2.bf16.msra.mxu0 0
      %2593 = vmatprep.subr.bf16.mxu0 0
      %2594 = vmatpush2.bf16.msra.mxu0 0
      %2595 = vmatprep.mubr.bf16.mxu0 0
      %2596 = vmatmul.mubr.bf16.gmra.mxu0 %v2548
      %v2597 = vpop.f32.mrf.mxu0
      %v2598 = vadd.f32 0.0, %v2597
      %v2599 = vpop.f32.mrf.mxu0
      %v2600 = vpop.f32.mrf.mxu0
      %v2601 = vadd.f32 0.0, %v2600
      %v2602 = vpop.f32.mrf.mxu0
      %2603 = vmatprep.mubr.bf16.mxu0 0
      %2604 = vmatmul.mubr.bf16.gmra.mxu0 %v2551
      %v2605 = vpop.f32.mrf.mxu0
      %v2606 = vadd.f32 0.0, %v2605
      %v2607 = vpop.f32.mrf.mxu0
      %v2608 = vpop.f32.mrf.mxu0
      %v2609 = vadd.f32 0.0, %v2608
      %v2610 = vpop.f32.mrf.mxu0
      %2611 = vmatprep.mubr.bf16.mxu0 0
      %2612 = vmatmul.mubr.bf16.gmra.mxu0 %v2554
      %v2613 = vpop.f32.mrf.mxu0
      %v2614 = vadd.f32 0.0, %v2613
      %v2615 = vpop.f32.mrf.mxu0
      %v2616 = vpop.f32.mrf.mxu0
      %v2617 = vadd.f32 0.0, %v2616
      %v2618 = vpop.f32.mrf.mxu0
      %2619 = vmatprep.mubr.bf16.mxu0 0
      %2620 = vmatmul.mubr.bf16.gmra.mxu0 %v2557
      %v2621 = vpop.f32.mrf.mxu0
      %v2622 = vadd.f32 0.0, %v2621
      %v2623 = vpop.f32.mrf.mxu0
      %v2624 = vpop.f32.mrf.mxu0
      %v2625 = vadd.f32 0.0, %v2624
      %v2626 = vpop.f32.mrf.mxu0
      %2627 = vdwg.mxu0
      %v2636 = vunpack.c.l.b16 %v2404
      %v2637 = vunpack.c.l.b16 %v2405
      %v2638 = vunpack.c.l.b16 %v2406
      %v2639 = vunpack.c.l.b16 %v2407
      %v2640 = vunpack.c.l.b16 %v2408
      %v2641 = vunpack.c.l.b16 %v2409
      %v2642 = vunpack.c.l.b16 %v2410
      %v2643 = vunpack.c.l.b16 %v2411
      %v2644 = vpack.c.b16 %v2637, %v2636
      %v2645 = vpack.c.b16 %v2639, %v2638
      %v2646 = vpack.c.b16 %v2641, %v2640
      %v2647 = vpack.c.b16 %v2643, %v2642
      %v2649 = vsel %vm2104, %v2644, 0
      %v2652 = vsel %vm2104, %v2645, 0
      %v2655 = vsel %vm2104, %v2646, 0
      %v2658 = vsel %vm2104, %v2647, 0
      %v2661 = vsel %vm2559, %v2412, 0
      %2663 = vmatprep.subr.bf16.mxu0 0
      %2664 = vmatpush1.bf16.msra.mxu0 0
      %2665 = vmatprep.subr.bf16.mxu0 0
      %2666 = vmatpush1.bf16.msra.mxu0 0
      %2667 = vmatprep.subr.bf16.mxu0 0
      %2668 = vmatpush1.bf16.msra.mxu0 0
      %2669 = vmatprep.subr.bf16.mxu0 0
      %2670 = vmatpush1.bf16.msra.mxu0 0
      %2671 = vmatprep.subr.bf16.mxu0 0
      %2672 = vmatpush1.bf16.msra.mxu0 0
      %2673 = vmatprep.subr.bf16.mxu0 0
      %2674 = vmatpush1.bf16.msra.mxu0 0
      %2675 = vmatprep.subr.bf16.mxu0 0
      %2676 = vmatpush1.bf16.msra.mxu0 0
      %2677 = vmatprep.subr.bf16.mxu0 0
      %2678 = vmatpush1.bf16.msra.mxu0 %v2661
      %2679 = vmatprep.subr.bf16.mxu0 0
      %2680 = vmatpush2.bf16.msra.mxu0 0
      %2681 = vmatprep.subr.bf16.mxu0 0
      %2682 = vmatpush2.bf16.msra.mxu0 0
      %2683 = vmatprep.subr.bf16.mxu0 0
      %2684 = vmatpush2.bf16.msra.mxu0 0
      %2685 = vmatprep.subr.bf16.mxu0 0
      %2686 = vmatpush2.bf16.msra.mxu0 0
      %2687 = vmatprep.subr.bf16.mxu0 0
      %2688 = vmatpush2.bf16.msra.mxu0 0
      %2689 = vmatprep.subr.bf16.mxu0 0
      %2690 = vmatpush2.bf16.msra.mxu0 0
      %2691 = vmatprep.subr.bf16.mxu0 0
      %2692 = vmatpush2.bf16.msra.mxu0 0
      %2693 = vmatprep.subr.bf16.mxu0 0
      %2694 = vmatpush2.bf16.msra.mxu0 0
      %2695 = vmatprep.mubr.bf16.mxu0 0
      %2696 = vmatmul.mubr.bf16.gmra.mxu0 %v2649
      %v2697 = vpop.f32.mrf.mxu0
      %v2698 = vadd.f32 %v2598, %v2697
      %v2699 = vpop.f32.mrf.mxu0
      %v2700 = vpop.f32.mrf.mxu0
      %v2701 = vadd.f32 %v2601, %v2700
      %v2702 = vpop.f32.mrf.mxu0
      %2703 = vmatprep.mubr.bf16.mxu0 0
      %2704 = vmatmul.mubr.bf16.gmra.mxu0 %v2652
      %v2705 = vpop.f32.mrf.mxu0
      %v2706 = vadd.f32 %v2606, %v2705
      %v2707 = vpop.f32.mrf.mxu0
      %v2708 = vpop.f32.mrf.mxu0
      %v2709 = vadd.f32 %v2609, %v2708
      %v2710 = vpop.f32.mrf.mxu0
      %2711 = vmatprep.mubr.bf16.mxu0 0
      %2712 = vmatmul.mubr.bf16.gmra.mxu0 %v2655
      %v2713 = vpop.f32.mrf.mxu0
      %v2714 = vadd.f32 %v2614, %v2713
      %v2715 = vpop.f32.mrf.mxu0
      %v2716 = vpop.f32.mrf.mxu0
      %v2717 = vadd.f32 %v2617, %v2716
      %v2718 = vpop.f32.mrf.mxu0
      %2719 = vmatprep.mubr.bf16.mxu0 0
      %2720 = vmatmul.mubr.bf16.gmra.mxu0 %v2658
      %v2721 = vpop.f32.mrf.mxu0
      %v2722 = vadd.f32 %v2622, %v2721
      %v2723 = vpop.f32.mrf.mxu0
      %v2724 = vpop.f32.mrf.mxu0
      %v2725 = vadd.f32 %v2625, %v2724
      %v2726 = vpop.f32.mrf.mxu0
      %2727 = vdwg.mxu0
      %v2728 = vld [vmem:[#allocation3] sm:$0xe]
      %v2729 = vld [vmem:[#allocation3 + $0x8] sm:$0xe]
      %v2730 = vld [vmem:[#allocation3 + $0x10] sm:$0xe]
      %v2731 = vld [vmem:[#allocation3 + $0x18] sm:$0xe]
      %v2732 = vld [vmem:[#allocation3 + $0x20] sm:$0xe]
      %v2733 = vld [vmem:[#allocation3 + $0x28] sm:$0xe]
      %v2734 = vld [vmem:[#allocation3 + $0x30] sm:$0xe]
      %v2735 = vld [vmem:[#allocation3 + $0x38] sm:$0xe]
      %v2752 = vrot.slane %v2728, 5
      %v2753 = vrot.slane %v2752, 4
      %v2754 = vrot.slane %v2413, 5
      %v2755 = vsel %vm941, %v2753, %v2754
      %v2756 = vrot.slane %v2729, 5
      %v2757 = vrot.slane %v2756, 4
      %v2758 = vrot.slane %v2414, 5
      %v2759 = vsel %vm941, %v2757, %v2758
      %v2760 = vrot.slane %v2730, 5
      %v2761 = vrot.slane %v2760, 4
      %v2762 = vrot.slane %v2415, 5
      %v2763 = vsel %vm941, %v2761, %v2762
      %v2764 = vrot.slane %v2731, 5
      %v2765 = vrot.slane %v2764, 4
      %v2766 = vrot.slane %v2416, 5
      %v2767 = vsel %vm941, %v2765, %v2766
      %v2768 = vrot.slane %v2732, 5
      %v2769 = vrot.slane %v2768, 4
      %v2770 = vrot.slane %v2417, 5
      %v2771 = vsel %vm941, %v2769, %v2770
      %v2772 = vrot.slane %v2733, 5
      %v2773 = vrot.slane %v2772, 4
      %v2774 = vrot.slane %v2418, 5
      %v2775 = vsel %vm941, %v2773, %v2774
      %v2776 = vrot.slane %v2734, 5
      %v2777 = vrot.slane %v2776, 4
      %v2778 = vrot.slane %v2419, 5
      %v2779 = vsel %vm941, %v2777, %v2778
      %v2780 = vrot.slane %v2735, 5
      %v2781 = vrot.slane %v2780, 4
      %v2782 = vrot.slane %v2420, 5
      %v2783 = vsel %vm941, %v2781, %v2782
      %s2784 = scalar_lea.vmem %s5, 8
      %v2785 = vld [vmem:[%s2784] sm:$0xf]
      %v2786 = vunpack.c.l.b16 %v2755
      %v2787 = vunpack.c.l.b16 %v2759
      %v2788 = vunpack.c.l.b16 %v2763
      %v2789 = vunpack.c.l.b16 %v2767
      %v2790 = vunpack.c.l.b16 %v2771
      %v2791 = vunpack.c.l.b16 %v2775
      %v2792 = vunpack.c.l.b16 %v2779
      %v2793 = vunpack.c.l.b16 %v2783
      %v2794 = vpack.c.b16 %v2787, %v2786
      %v2795 = vpack.c.b16 %v2789, %v2788
      %v2796 = vpack.c.b16 %v2791, %v2790
      %v2797 = vpack.c.b16 %v2793, %v2792
      %v2799 = vsel %vm2104, %v2794, 0
      %v2802 = vsel %vm2104, %v2795, 0
      %v2805 = vsel %vm2104, %v2796, 0
      %v2808 = vsel %vm2104, %v2797, 0
      %v2811 = vsel %vm2559, %v2785, 0
      %2813 = vmatprep.subr.bf16.mxu0 0
      %2814 = vmatpush1.bf16.msra.mxu0 0
      %2815 = vmatprep.subr.bf16.mxu0 0
      %2816 = vmatpush1.bf16.msra.mxu0 0
      %2817 = vmatprep.subr.bf16.mxu0 0
      %2818 = vmatpush1.bf16.msra.mxu0 0
      %2819 = vmatprep.subr.bf16.mxu0 0
      %2820 = vmatpush1.bf16.msra.mxu0 0
      %2821 = vmatprep.subr.bf16.mxu0 0
      %2822 = vmatpush1.bf16.msra.mxu0 0
      %2823 = vmatprep.subr.bf16.mxu0 0
      %2824 = vmatpush1.bf16.msra.mxu0 0
      %2825 = vmatprep.subr.bf16.mxu0 0
      %2826 = vmatpush1.bf16.msra.mxu0 0
      %2827 = vmatprep.subr.bf16.mxu0 0
      %2828 = vmatpush1.bf16.msra.mxu0 %v2811
      %2829 = vmatprep.subr.bf16.mxu0 0
      %2830 = vmatpush2.bf16.msra.mxu0 0
      %2831 = vmatprep.subr.bf16.mxu0 0
      %2832 = vmatpush2.bf16.msra.mxu0 0
      %2833 = vmatprep.subr.bf16.mxu0 0
      %2834 = vmatpush2.bf16.msra.mxu0 0
      %2835 = vmatprep.subr.bf16.mxu0 0
      %2836 = vmatpush2.bf16.msra.mxu0 0
      %2837 = vmatprep.subr.bf16.mxu0 0
      %2838 = vmatpush2.bf16.msra.mxu0 0
      %2839 = vmatprep.subr.bf16.mxu0 0
      %2840 = vmatpush2.bf16.msra.mxu0 0
      %2841 = vmatprep.subr.bf16.mxu0 0
      %2842 = vmatpush2.bf16.msra.mxu0 0
      %2843 = vmatprep.subr.bf16.mxu0 0
      %2844 = vmatpush2.bf16.msra.mxu0 0
      %2845 = vmatprep.mubr.bf16.mxu0 0
      %2846 = vmatmul.mubr.bf16.gmra.mxu0 %v2799
      %v2847 = vpop.f32.mrf.mxu0
      %v2848 = vadd.f32 0.0, %v2847
      %v2849 = vpop.f32.mrf.mxu0
      %v2850 = vpop.f32.mrf.mxu0
      %v2851 = vadd.f32 0.0, %v2850
      %v2852 = vpop.f32.mrf.mxu0
      %2853 = vmatprep.mubr.bf16.mxu0 0
      %2854 = vmatmul.mubr.bf16.gmra.mxu0 %v2802
      %v2855 = vpop.f32.mrf.mxu0
      %v2856 = vadd.f32 0.0, %v2855
      %v2857 = vpop.f32.mrf.mxu0
      %v2858 = vpop.f32.mrf.mxu0
      %v2859 = vadd.f32 0.0, %v2858
      %v2860 = vpop.f32.mrf.mxu0
      %2861 = vmatprep.mubr.bf16.mxu0 0
      %2862 = vmatmul.mubr.bf16.gmra.mxu0 %v2805
      %v2863 = vpop.f32.mrf.mxu0
      %v2864 = vadd.f32 0.0, %v2863
      %v2865 = vpop.f32.mrf.mxu0
      %v2866 = vpop.f32.mrf.mxu0
      %v2867 = vadd.f32 0.0, %v2866
      %v2868 = vpop.f32.mrf.mxu0
      %2869 = vmatprep.mubr.bf16.mxu0 0
      %2870 = vmatmul.mubr.bf16.gmra.mxu0 %v2808
      %v2871 = vpop.f32.mrf.mxu0
      %v2872 = vadd.f32 0.0, %v2871
      %v2873 = vpop.f32.mrf.mxu0
      %v2874 = vpop.f32.mrf.mxu0
      %v2875 = vadd.f32 0.0, %v2874
      %v2876 = vpop.f32.mrf.mxu0
      %2877 = vdwg.mxu0
      %v2878 = vadd.f32 %v2698, %v2848
      %v2879 = vadd.f32 %v2701, %v2851
      %v2880 = vadd.f32 %v2706, %v2856
      %v2881 = vadd.f32 %v2709, %v2859
      %v2882 = vadd.f32 %v2714, %v2864
      %v2883 = vadd.f32 %v2717, %v2867
      %v2884 = vadd.f32 %v2722, %v2872
      %v2885 = vadd.f32 %v2725, %v2875
      %v2886 = vld [vmem:[%s2351] sm:$0xf]
      %v2887 = vld [vmem:[%s2351 + $0x8] sm:$0xf]
      %v2888 = vld [vmem:[%s2351 + $0x10] sm:$0xf]
      %v2889 = vld [vmem:[%s2351 + $0x18] sm:$0xf]
      %v2890 = vld [vmem:[%s2351 + $0x20] sm:$0xf]
      %v2891 = vld [vmem:[%s2351 + $0x28] sm:$0xf]
      %v2892 = vld [vmem:[%s2351 + $0x30] sm:$0xf]
      %v2893 = vld [vmem:[%s2351 + $0x38] sm:$0xf]
      %s2894 = scalar_lea.vmem %s5, 12
      %v2895 = vld [vmem:[%s2894] sm:$0xf]
      %v2904 = vunpack.c.l.b16 %v2886
      %v2905 = vunpack.c.l.b16 %v2887
      %v2906 = vunpack.c.l.b16 %v2888
      %v2907 = vunpack.c.l.b16 %v2889
      %v2908 = vunpack.c.l.b16 %v2890
      %v2909 = vunpack.c.l.b16 %v2891
      %v2910 = vunpack.c.l.b16 %v2892
      %v2911 = vunpack.c.l.b16 %v2893
      %v2912 = vpack.c.b16 %v2905, %v2904
      %v2913 = vpack.c.b16 %v2907, %v2906
      %v2914 = vpack.c.b16 %v2909, %v2908
      %v2915 = vpack.c.b16 %v2911, %v2910
      %v2917 = vsel %vm2104, %v2912, 0
      %v2920 = vsel %vm2104, %v2913, 0
      %v2923 = vsel %vm2104, %v2914, 0
      %v2926 = vsel %vm2104, %v2915, 0
      %v2929 = vsel %vm2559, %v2895, 0
      %2931 = vmatprep.subr.bf16.mxu0 0
      %2932 = vmatpush1.bf16.msra.mxu0 0
      %2933 = vmatprep.subr.bf16.mxu0 0
      %2934 = vmatpush1.bf16.msra.mxu0 0
      %2935 = vmatprep.subr.bf16.mxu0 0
      %2936 = vmatpush1.bf16.msra.mxu0 0
      %2937 = vmatprep.subr.bf16.mxu0 0
      %2938 = vmatpush1.bf16.msra.mxu0 0
      %2939 = vmatprep.subr.bf16.mxu0 0
      %2940 = vmatpush1.bf16.msra.mxu0 0
      %2941 = vmatprep.subr.bf16.mxu0 0
      %2942 = vmatpush1.bf16.msra.mxu0 0
      %2943 = vmatprep.subr.bf16.mxu0 0
      %2944 = vmatpush1.bf16.msra.mxu0 0
      %2945 = vmatprep.subr.bf16.mxu0 0
      %2946 = vmatpush1.bf16.msra.mxu0 %v2929
      %2947 = vmatprep.subr.bf16.mxu0 0
      %2948 = vmatpush2.bf16.msra.mxu0 0
      %2949 = vmatprep.subr.bf16.mxu0 0
      %2950 = vmatpush2.bf16.msra.mxu0 0
      %2951 = vmatprep.subr.bf16.mxu0 0
      %2952 = vmatpush2.bf16.msra.mxu0 0
      %2953 = vmatprep.subr.bf16.mxu0 0
      %2954 = vmatpush2.bf16.msra.mxu0 0
      %2955 = vmatprep.subr.bf16.mxu0 0
      %2956 = vmatpush2.bf16.msra.mxu0 0
      %2957 = vmatprep.subr.bf16.mxu0 0
      %2958 = vmatpush2.bf16.msra.mxu0 0
      %2959 = vmatprep.subr.bf16.mxu0 0
      %2960 = vmatpush2.bf16.msra.mxu0 0
      %2961 = vmatprep.subr.bf16.mxu0 0
      %2962 = vmatpush2.bf16.msra.mxu0 0
      %2963 = vmatprep.mubr.bf16.mxu0 0
      %2964 = vmatmul.mubr.bf16.gmra.mxu0 %v2917
      %v2965 = vpop.f32.mrf.mxu0
      %v2966 = vadd.f32 0.0, %v2965
      %v2967 = vpop.f32.mrf.mxu0
      %v2968 = vpop.f32.mrf.mxu0
      %v2969 = vadd.f32 0.0, %v2968
      %v2970 = vpop.f32.mrf.mxu0
      %2971 = vmatprep.mubr.bf16.mxu0 0
      %2972 = vmatmul.mubr.bf16.gmra.mxu0 %v2920
      %v2973 = vpop.f32.mrf.mxu0
      %v2974 = vadd.f32 0.0, %v2973
      %v2975 = vpop.f32.mrf.mxu0
      %v2976 = vpop.f32.mrf.mxu0
      %v2977 = vadd.f32 0.0, %v2976
      %v2978 = vpop.f32.mrf.mxu0
      %2979 = vmatprep.mubr.bf16.mxu0 0
      %2980 = vmatmul.mubr.bf16.gmra.mxu0 %v2923
      %v2981 = vpop.f32.mrf.mxu0
      %v2982 = vadd.f32 0.0, %v2981
      %v2983 = vpop.f32.mrf.mxu0
      %v2984 = vpop.f32.mrf.mxu0
      %v2985 = vadd.f32 0.0, %v2984
      %v2986 = vpop.f32.mrf.mxu0
      %2987 = vmatprep.mubr.bf16.mxu0 0
      %2988 = vmatmul.mubr.bf16.gmra.mxu0 %v2926
      %v2989 = vpop.f32.mrf.mxu0
      %v2990 = vadd.f32 0.0, %v2989
      %v2991 = vpop.f32.mrf.mxu0
      %v2992 = vpop.f32.mrf.mxu0
      %v2993 = vadd.f32 0.0, %v2992
      %v2994 = vpop.f32.mrf.mxu0
      %2995 = vdwg.mxu0
      %v2996 = vadd.f32 %v2878, %v2966
      %v2997 = vadd.f32 %v2879, %v2969
      %v2998 = vadd.f32 %v2880, %v2974
      %v2999 = vadd.f32 %v2881, %v2977
      %v3000 = vadd.f32 %v2882, %v2982
      %v3001 = vadd.f32 %v2883, %v2985
      %v3002 = vadd.f32 %v2884, %v2990
      %v3003 = vadd.f32 %v2885, %v2993
      %v3004 = vld [vmem:[%s2351] sm:$0xf]
      %v3005 = vld [vmem:[%s2351 + $0x4] sm:$0x1]
      %v3006 = vld [vmem:[%s2351 + $0x8] sm:$0xf]
      %v3007 = vld [vmem:[%s2351 + $0xc] sm:$0x1]
      %v3008 = vld [vmem:[%s2351 + $0x10] sm:$0xf]
      %v3009 = vld [vmem:[%s2351 + $0x14] sm:$0x1]
      %v3010 = vld [vmem:[%s2351 + $0x18] sm:$0xf]
      %v3011 = vld [vmem:[%s2351 + $0x1c] sm:$0x1]
      %v3012 = vld [vmem:[%s2351 + $0x20] sm:$0xf]
      %v3013 = vld [vmem:[%s2351 + $0x24] sm:$0x1]
      %v3014 = vld [vmem:[%s2351 + $0x28] sm:$0xf]
      %v3015 = vld [vmem:[%s2351 + $0x2c] sm:$0x1]
      %v3016 = vld [vmem:[%s2351 + $0x30] sm:$0xf]
      %v3017 = vld [vmem:[%s2351 + $0x34] sm:$0x1]
      %v3018 = vld [vmem:[%s2351 + $0x38] sm:$0xf]
      %v3019 = vld [vmem:[%s2351 + $0x3c] sm:$0x1]
      %v3021 = vshrl.u32 %v3004, 16
      %v3023 = vrot.slane %v3021, 4
      %v3024 = vshll.u32 %v3004, 16
      %v3026 = vrot.slane %v3024, 5
      %v3027 = vor.u32 %v3023, %v3026
      %v3028 = vrot.slane %v3027, 4
      %v3030 = vshll.u32 %v3005, 16
      %v3032 = vrot.slane %v3030, 5
      %v3033 = vsel %vm606, %v3028, %v3032
      %v3035 = vshrl.u32 %v3006, 16
      %v3037 = vrot.slane %v3035, 4
      %v3038 = vshll.u32 %v3006, 16
      %v3040 = vrot.slane %v3038, 5
      %v3041 = vor.u32 %v3037, %v3040
      %v3042 = vrot.slane %v3041, 4
      %v3044 = vshll.u32 %v3007, 16
      %v3046 = vrot.slane %v3044, 5
      %v3047 = vsel %vm606, %v3042, %v3046
      %v3049 = vshrl.u32 %v3008, 16
      %v3051 = vrot.slane %v3049, 4
      %v3052 = vshll.u32 %v3008, 16
      %v3054 = vrot.slane %v3052, 5
      %v3055 = vor.u32 %v3051, %v3054
      %v3056 = vrot.slane %v3055, 4
      %v3058 = vshll.u32 %v3009, 16
      %v3060 = vrot.slane %v3058, 5
      %v3061 = vsel %vm606, %v3056, %v3060
      %v3063 = vshrl.u32 %v3010, 16
      %v3065 = vrot.slane %v3063, 4
      %v3066 = vshll.u32 %v3010, 16
      %v3068 = vrot.slane %v3066, 5
      %v3069 = vor.u32 %v3065, %v3068
      %v3070 = vrot.slane %v3069, 4
      %v3072 = vshll.u32 %v3011, 16
      %v3074 = vrot.slane %v3072, 5
      %v3075 = vsel %vm606, %v3070, %v3074
      %v3077 = vshrl.u32 %v3012, 16
      %v3079 = vrot.slane %v3077, 4
      %v3080 = vshll.u32 %v3012, 16
      %v3082 = vrot.slane %v3080, 5
      %v3083 = vor.u32 %v3079, %v3082
      %v3084 = vrot.slane %v3083, 4
      %v3086 = vshll.u32 %v3013, 16
      %v3088 = vrot.slane %v3086, 5
      %v3089 = vsel %vm606, %v3084, %v3088
      %v3091 = vshrl.u32 %v3014, 16
      %v3093 = vrot.slane %v3091, 4
      %v3094 = vshll.u32 %v3014, 16
      %v3096 = vrot.slane %v3094, 5
      %v3097 = vor.u32 %v3093, %v3096
      %v3098 = vrot.slane %v3097, 4
      %v3100 = vshll.u32 %v3015, 16
      %v3102 = vrot.slane %v3100, 5
      %v3103 = vsel %vm606, %v3098, %v3102
      %v3105 = vshrl.u32 %v3016, 16
      %v3107 = vrot.slane %v3105, 4
      %v3108 = vshll.u32 %v3016, 16
      %v3110 = vrot.slane %v3108, 5
      %v3111 = vor.u32 %v3107, %v3110
      %v3112 = vrot.slane %v3111, 4
      %v3114 = vshll.u32 %v3017, 16
      %v3116 = vrot.slane %v3114, 5
      %v3117 = vsel %vm606, %v3112, %v3116
      %v3119 = vshrl.u32 %v3018, 16
      %v3121 = vrot.slane %v3119, 4
      %v3122 = vshll.u32 %v3018, 16
      %v3124 = vrot.slane %v3122, 5
      %v3125 = vor.u32 %v3121, %v3124
      %v3126 = vrot.slane %v3125, 4
      %v3128 = vshll.u32 %v3019, 16
      %v3130 = vrot.slane %v3128, 5
      %v3131 = vsel %vm606, %v3126, %v3130
      %s3132 = scalar_lea.vmem %s5, 16
      %v3133 = vld [vmem:[%s3132] sm:$0xf]
      %v3134 = vunpack.c.l.b16 %v3033
      %v3135 = vunpack.c.l.b16 %v3047
      %v3136 = vunpack.c.l.b16 %v3061
      %v3137 = vunpack.c.l.b16 %v3075
      %v3138 = vunpack.c.l.b16 %v3089
      %v3139 = vunpack.c.l.b16 %v3103
      %v3140 = vunpack.c.l.b16 %v3117
      %v3141 = vunpack.c.l.b16 %v3131
      %v3142 = vpack.c.b16 %v3135, %v3134
      %v3143 = vpack.c.b16 %v3137, %v3136
      %v3144 = vpack.c.b16 %v3139, %v3138
      %v3145 = vpack.c.b16 %v3141, %v3140
      %v3147 = vsel %vm2104, %v3142, 0
      %v3150 = vsel %vm2104, %v3143, 0
      %v3153 = vsel %vm2104, %v3144, 0
      %v3156 = vsel %vm2104, %v3145, 0
      %v3159 = vsel %vm2559, %v3133, 0
      %3161 = vmatprep.subr.bf16.mxu0 0
      %3162 = vmatpush1.bf16.msra.mxu0 0
      %3163 = vmatprep.subr.bf16.mxu0 0
      %3164 = vmatpush1.bf16.msra.mxu0 0
      %3165 = vmatprep.subr.bf16.mxu0 0
      %3166 = vmatpush1.bf16.msra.mxu0 0
      %3167 = vmatprep.subr.bf16.mxu0 0
      %3168 = vmatpush1.bf16.msra.mxu0 0
      %3169 = vmatprep.subr.bf16.mxu0 0
      %3170 = vmatpush1.bf16.msra.mxu0 0
      %3171 = vmatprep.subr.bf16.mxu0 0
      %3172 = vmatpush1.bf16.msra.mxu0 0
      %3173 = vmatprep.subr.bf16.mxu0 0
      %3174 = vmatpush1.bf16.msra.mxu0 0
      %3175 = vmatprep.subr.bf16.mxu0 0
      %3176 = vmatpush1.bf16.msra.mxu0 %v3159
      %3177 = vmatprep.subr.bf16.mxu0 0
      %3178 = vmatpush2.bf16.msra.mxu0 0
      %3179 = vmatprep.subr.bf16.mxu0 0
      %3180 = vmatpush2.bf16.msra.mxu0 0
      %3181 = vmatprep.subr.bf16.mxu0 0
      %3182 = vmatpush2.bf16.msra.mxu0 0
      %3183 = vmatprep.subr.bf16.mxu0 0
      %3184 = vmatpush2.bf16.msra.mxu0 0
      %3185 = vmatprep.subr.bf16.mxu0 0
      %3186 = vmatpush2.bf16.msra.mxu0 0
      %3187 = vmatprep.subr.bf16.mxu0 0
      %3188 = vmatpush2.bf16.msra.mxu0 0
      %3189 = vmatprep.subr.bf16.mxu0 0
      %3190 = vmatpush2.bf16.msra.mxu0 0
      %3191 = vmatprep.subr.bf16.mxu0 0
      %3192 = vmatpush2.bf16.msra.mxu0 0
      %3193 = vmatprep.mubr.bf16.mxu0 0
      %3194 = vmatmul.mubr.bf16.gmra.mxu0 %v3147
      %v3195 = vpop.f32.mrf.mxu0
      %v3196 = vadd.f32 0.0, %v3195
      %v3197 = vpop.f32.mrf.mxu0
      %v3198 = vpop.f32.mrf.mxu0
      %v3199 = vadd.f32 0.0, %v3198
      %v3200 = vpop.f32.mrf.mxu0
      %3201 = vmatprep.mubr.bf16.mxu0 0
      %3202 = vmatmul.mubr.bf16.gmra.mxu0 %v3150
      %v3203 = vpop.f32.mrf.mxu0
      %v3204 = vadd.f32 0.0, %v3203
      %v3205 = vpop.f32.mrf.mxu0
      %v3206 = vpop.f32.mrf.mxu0
      %v3207 = vadd.f32 0.0, %v3206
      %v3208 = vpop.f32.mrf.mxu0
      %3209 = vmatprep.mubr.bf16.mxu0 0
      %3210 = vmatmul.mubr.bf16.gmra.mxu0 %v3153
      %v3211 = vpop.f32.mrf.mxu0
      %v3212 = vadd.f32 0.0, %v3211
      %v3213 = vpop.f32.mrf.mxu0
      %v3214 = vpop.f32.mrf.mxu0
      %v3215 = vadd.f32 0.0, %v3214
      %v3216 = vpop.f32.mrf.mxu0
      %3217 = vmatprep.mubr.bf16.mxu0 0
      %3218 = vmatmul.mubr.bf16.gmra.mxu0 %v3156
      %v3219 = vpop.f32.mrf.mxu0
      %v3220 = vadd.f32 0.0, %v3219
      %v3221 = vpop.f32.mrf.mxu0
      %v3222 = vpop.f32.mrf.mxu0
      %v3223 = vadd.f32 0.0, %v3222
      %v3224 = vpop.f32.mrf.mxu0
      %3225 = vdwg.mxu0
      %v3226 = vadd.f32 %v2996, %v3196
      %v3227 = vadd.f32 %v2997, %v3199
      %v3228 = vadd.f32 %v2998, %v3204
      %v3229 = vadd.f32 %v2999, %v3207
      %v3230 = vadd.f32 %v3000, %v3212
      %v3231 = vadd.f32 %v3001, %v3215
      %v3232 = vadd.f32 %v3002, %v3220
      %v3233 = vadd.f32 %v3003, %v3223
      %v3234 = vld [vmem:[%s2351] sm:$0xe]
      %v3235 = vld [vmem:[%s2351 + $0x8] sm:$0xe]
      %v3236 = vld [vmem:[%s2351 + $0x10] sm:$0xe]
      %v3237 = vld [vmem:[%s2351 + $0x18] sm:$0xe]
      %v3238 = vld [vmem:[%s2351 + $0x20] sm:$0xe]
      %v3239 = vld [vmem:[%s2351 + $0x28] sm:$0xe]
      %v3240 = vld [vmem:[%s2351 + $0x30] sm:$0xe]
      %v3241 = vld [vmem:[%s2351 + $0x38] sm:$0xe]
      %v3258 = vrot.slane %v3234, 5
      %v3259 = vrot.slane %v3258, 4
      %v3260 = vrot.slane %v3005, 5
      %v3261 = vsel %vm941, %v3259, %v3260
      %v3262 = vrot.slane %v3235, 5
      %v3263 = vrot.slane %v3262, 4
      %v3264 = vrot.slane %v3007, 5
      %v3265 = vsel %vm941, %v3263, %v3264
      %v3266 = vrot.slane %v3236, 5
      %v3267 = vrot.slane %v3266, 4
      %v3268 = vrot.slane %v3009, 5
      %v3269 = vsel %vm941, %v3267, %v3268
      %v3270 = vrot.slane %v3237, 5
      %v3271 = vrot.slane %v3270, 4
      %v3272 = vrot.slane %v3011, 5
      %v3273 = vsel %vm941, %v3271, %v3272
      %v3274 = vrot.slane %v3238, 5
      %v3275 = vrot.slane %v3274, 4
      %v3276 = vrot.slane %v3013, 5
      %v3277 = vsel %vm941, %v3275, %v3276
      %v3278 = vrot.slane %v3239, 5
      %v3279 = vrot.slane %v3278, 4
      %v3280 = vrot.slane %v3015, 5
      %v3281 = vsel %vm941, %v3279, %v3280
      %v3282 = vrot.slane %v3240, 5
      %v3283 = vrot.slane %v3282, 4
      %v3284 = vrot.slane %v3017, 5
      %v3285 = vsel %vm941, %v3283, %v3284
      %v3286 = vrot.slane %v3241, 5
      %v3287 = vrot.slane %v3286, 4
      %v3288 = vrot.slane %v3019, 5
      %v3289 = vsel %vm941, %v3287, %v3288
      %s3290 = scalar_lea.vmem %s5, 20
      %v3291 = vld [vmem:[%s3290] sm:$0xf]
      %v3292 = vunpack.c.l.b16 %v3261
      %v3293 = vunpack.c.l.b16 %v3265
      %v3294 = vunpack.c.l.b16 %v3269
      %v3295 = vunpack.c.l.b16 %v3273
      %v3296 = vunpack.c.l.b16 %v3277
      %v3297 = vunpack.c.l.b16 %v3281
      %v3298 = vunpack.c.l.b16 %v3285
      %v3299 = vunpack.c.l.b16 %v3289
      %v3300 = vpack.c.b16 %v3293, %v3292
      %v3301 = vpack.c.b16 %v3295, %v3294
      %v3302 = vpack.c.b16 %v3297, %v3296
      %v3303 = vpack.c.b16 %v3299, %v3298
      %v3305 = vsel %vm2104, %v3300, 0
      %v3308 = vsel %vm2104, %v3301, 0
      %v3311 = vsel %vm2104, %v3302, 0
      %v3314 = vsel %vm2104, %v3303, 0
      %v3317 = vsel %vm2559, %v3291, 0
      %3319 = vmatprep.subr.bf16.mxu0 0
      %3320 = vmatpush1.bf16.msra.mxu0 0
      %3321 = vmatprep.subr.bf16.mxu0 0
      %3322 = vmatpush1.bf16.msra.mxu0 0
      %3323 = vmatprep.subr.bf16.mxu0 0
      %3324 = vmatpush1.bf16.msra.mxu0 0
      %3325 = vmatprep.subr.bf16.mxu0 0
      %3326 = vmatpush1.bf16.msra.mxu0 0
      %3327 = vmatprep.subr.bf16.mxu0 0
      %3328 = vmatpush1.bf16.msra.mxu0 0
      %3329 = vmatprep.subr.bf16.mxu0 0
      %3330 = vmatpush1.bf16.msra.mxu0 0
      %3331 = vmatprep.subr.bf16.mxu0 0
      %3332 = vmatpush1.bf16.msra.mxu0 0
      %3333 = vmatprep.subr.bf16.mxu0 0
      %3334 = vmatpush1.bf16.msra.mxu0 %v3317
      %3335 = vmatprep.subr.bf16.mxu0 0
      %3336 = vmatpush2.bf16.msra.mxu0 0
      %3337 = vmatprep.subr.bf16.mxu0 0
      %3338 = vmatpush2.bf16.msra.mxu0 0
      %3339 = vmatprep.subr.bf16.mxu0 0
      %3340 = vmatpush2.bf16.msra.mxu0 0
      %3341 = vmatprep.subr.bf16.mxu0 0
      %3342 = vmatpush2.bf16.msra.mxu0 0
      %3343 = vmatprep.subr.bf16.mxu0 0
      %3344 = vmatpush2.bf16.msra.mxu0 0
      %3345 = vmatprep.subr.bf16.mxu0 0
      %3346 = vmatpush2.bf16.msra.mxu0 0
      %3347 = vmatprep.subr.bf16.mxu0 0
      %3348 = vmatpush2.bf16.msra.mxu0 0
      %3349 = vmatprep.subr.bf16.mxu0 0
      %3350 = vmatpush2.bf16.msra.mxu0 0
      %3351 = vmatprep.mubr.bf16.mxu0 0
      %3352 = vmatmul.mubr.bf16.gmra.mxu0 %v3305
      %v3353 = vpop.f32.mrf.mxu0
      %v3354 = vadd.f32 0.0, %v3353
      %v3355 = vpop.f32.mrf.mxu0
      %v3356 = vpop.f32.mrf.mxu0
      %v3357 = vadd.f32 0.0, %v3356
      %v3358 = vpop.f32.mrf.mxu0
      %3359 = vmatprep.mubr.bf16.mxu0 0
      %3360 = vmatmul.mubr.bf16.gmra.mxu0 %v3308
      %v3361 = vpop.f32.mrf.mxu0
      %v3362 = vadd.f32 0.0, %v3361
      %v3363 = vpop.f32.mrf.mxu0
      %v3364 = vpop.f32.mrf.mxu0
      %v3365 = vadd.f32 0.0, %v3364
      %v3366 = vpop.f32.mrf.mxu0
      %3367 = vmatprep.mubr.bf16.mxu0 0
      %3368 = vmatmul.mubr.bf16.gmra.mxu0 %v3311
      %v3369 = vpop.f32.mrf.mxu0
      %v3370 = vadd.f32 0.0, %v3369
      %v3371 = vpop.f32.mrf.mxu0
      %v3372 = vpop.f32.mrf.mxu0
      %v3373 = vadd.f32 0.0, %v3372
      %v3374 = vpop.f32.mrf.mxu0
      %3375 = vmatprep.mubr.bf16.mxu0 0
      %3376 = vmatmul.mubr.bf16.gmra.mxu0 %v3314
      %v3377 = vpop.f32.mrf.mxu0
      %v3378 = vadd.f32 0.0, %v3377
      %v3379 = vpop.f32.mrf.mxu0
      %v3380 = vpop.f32.mrf.mxu0
      %v3381 = vadd.f32 0.0, %v3380
      %v3382 = vpop.f32.mrf.mxu0
      %3383 = vdwg.mxu0
      %v3384 = vadd.f32 %v3226, %v3354
      %v3385 = vadd.f32 %v3227, %v3357
      %v3386 = vadd.f32 %v3228, %v3362
      %v3387 = vadd.f32 %v3229, %v3365
      %v3388 = vadd.f32 %v3230, %v3370
      %v3389 = vadd.f32 %v3231, %v3373
      %v3390 = vadd.f32 %v3232, %v3378
      %v3391 = vadd.f32 %v3233, %v3381
      %s3392 = scalar_lea.vmem [#allocation3], 16
      %v3393 = vld [vmem:[%s3392] sm:$0xf]
      %v3394 = vld [vmem:[%s3392 + $0x8] sm:$0xf]
      %v3395 = vld [vmem:[%s3392 + $0x10] sm:$0xf]
      %v3396 = vld [vmem:[%s3392 + $0x18] sm:$0xf]
      %v3397 = vld [vmem:[%s3392 + $0x20] sm:$0xf]
      %v3398 = vld [vmem:[%s3392 + $0x28] sm:$0xf]
      %v3399 = vld [vmem:[%s3392 + $0x30] sm:$0xf]
      %v3400 = vld [vmem:[%s3392 + $0x38] sm:$0xf]
      %s3401 = scalar_lea.vmem %s5, 24
      %v3402 = vld [vmem:[%s3401] sm:$0xf]
      %v3411 = vunpack.c.l.b16 %v3393
      %v3412 = vunpack.c.l.b16 %v3394
      %v3413 = vunpack.c.l.b16 %v3395
      %v3414 = vunpack.c.l.b16 %v3396
      %v3415 = vunpack.c.l.b16 %v3397
      %v3416 = vunpack.c.l.b16 %v3398
      %v3417 = vunpack.c.l.b16 %v3399
      %v3418 = vunpack.c.l.b16 %v3400
      %v3419 = vpack.c.b16 %v3412, %v3411
      %v3420 = vpack.c.b16 %v3414, %v3413
      %v3421 = vpack.c.b16 %v3416, %v3415
      %v3422 = vpack.c.b16 %v3418, %v3417
      %v3424 = vsel %vm2104, %v3419, 0
      %v3427 = vsel %vm2104, %v3420, 0
      %v3430 = vsel %vm2104, %v3421, 0
      %v3433 = vsel %vm2104, %v3422, 0
      %v3436 = vsel %vm2559, %v3402, 0
      %3438 = vmatprep.subr.bf16.mxu0 0
      %3439 = vmatpush1.bf16.msra.mxu0 0
      %3440 = vmatprep.subr.bf16.mxu0 0
      %3441 = vmatpush1.bf16.msra.mxu0 0
      %3442 = vmatprep.subr.bf16.mxu0 0
      %3443 = vmatpush1.bf16.msra.mxu0 0
      %3444 = vmatprep.subr.bf16.mxu0 0
      %3445 = vmatpush1.bf16.msra.mxu0 0
      %3446 = vmatprep.subr.bf16.mxu0 0
      %3447 = vmatpush1.bf16.msra.mxu0 0
      %3448 = vmatprep.subr.bf16.mxu0 0
      %3449 = vmatpush1.bf16.msra.mxu0 0
      %3450 = vmatprep.subr.bf16.mxu0 0
      %3451 = vmatpush1.bf16.msra.mxu0 0
      %3452 = vmatprep.subr.bf16.mxu0 0
      %3453 = vmatpush1.bf16.msra.mxu0 %v3436
      %3454 = vmatprep.subr.bf16.mxu0 0
      %3455 = vmatpush2.bf16.msra.mxu0 0
      %3456 = vmatprep.subr.bf16.mxu0 0
      %3457 = vmatpush2.bf16.msra.mxu0 0
      %3458 = vmatprep.subr.bf16.mxu0 0
      %3459 = vmatpush2.bf16.msra.mxu0 0
      %3460 = vmatprep.subr.bf16.mxu0 0
      %3461 = vmatpush2.bf16.msra.mxu0 0
      %3462 = vmatprep.subr.bf16.mxu0 0
      %3463 = vmatpush2.bf16.msra.mxu0 0
      %3464 = vmatprep.subr.bf16.mxu0 0
      %3465 = vmatpush2.bf16.msra.mxu0 0
      %3466 = vmatprep.subr.bf16.mxu0 0
      %3467 = vmatpush2.bf16.msra.mxu0 0
      %3468 = vmatprep.subr.bf16.mxu0 0
      %3469 = vmatpush2.bf16.msra.mxu0 0
      %3470 = vmatprep.mubr.bf16.mxu0 0
      %3471 = vmatmul.mubr.bf16.gmra.mxu0 %v3424
      %v3472 = vpop.f32.mrf.mxu0
      %v3473 = vadd.f32 0.0, %v3472
      %v3474 = vpop.f32.mrf.mxu0
      %v3475 = vpop.f32.mrf.mxu0
      %v3476 = vadd.f32 0.0, %v3475
      %v3477 = vpop.f32.mrf.mxu0
      %3478 = vmatprep.mubr.bf16.mxu0 0
      %3479 = vmatmul.mubr.bf16.gmra.mxu0 %v3427
      %v3480 = vpop.f32.mrf.mxu0
      %v3481 = vadd.f32 0.0, %v3480
      %v3482 = vpop.f32.mrf.mxu0
      %v3483 = vpop.f32.mrf.mxu0
      %v3484 = vadd.f32 0.0, %v3483
      %v3485 = vpop.f32.mrf.mxu0
      %3486 = vmatprep.mubr.bf16.mxu0 0
      %3487 = vmatmul.mubr.bf16.gmra.mxu0 %v3430
      %v3488 = vpop.f32.mrf.mxu0
      %v3489 = vadd.f32 0.0, %v3488
      %v3490 = vpop.f32.mrf.mxu0
      %v3491 = vpop.f32.mrf.mxu0
      %v3492 = vadd.f32 0.0, %v3491
      %v3493 = vpop.f32.mrf.mxu0
      %3494 = vmatprep.mubr.bf16.mxu0 0
      %3495 = vmatmul.mubr.bf16.gmra.mxu0 %v3433
      %v3496 = vpop.f32.mrf.mxu0
      %v3497 = vadd.f32 0.0, %v3496
      %v3498 = vpop.f32.mrf.mxu0
      %v3499 = vpop.f32.mrf.mxu0
      %v3500 = vadd.f32 0.0, %v3499
      %v3501 = vpop.f32.mrf.mxu0
      %3502 = vdwg.mxu0
      %v3503 = vadd.f32 %v3384, %v3473
      %v3504 = vadd.f32 %v3385, %v3476
      %v3505 = vadd.f32 %v3386, %v3481
      %v3506 = vadd.f32 %v3387, %v3484
      %v3507 = vadd.f32 %v3388, %v3489
      %v3508 = vadd.f32 %v3389, %v3492
      %v3509 = vadd.f32 %v3390, %v3497
      %v3510 = vadd.f32 %v3391, %v3500
      %v3511 = vld [vmem:[%s3392] sm:$0xf]
      %v3512 = vld [vmem:[%s3392 + $0x4] sm:$0x1]
      %v3513 = vld [vmem:[%s3392 + $0x8] sm:$0xf]
      %v3514 = vld [vmem:[%s3392 + $0xc] sm:$0x1]
      %v3515 = vld [vmem:[%s3392 + $0x10] sm:$0xf]
      %v3516 = vld [vmem:[%s3392 + $0x14] sm:$0x1]
      %v3517 = vld [vmem:[%s3392 + $0x18] sm:$0xf]
      %v3518 = vld [vmem:[%s3392 + $0x1c] sm:$0x1]
      %v3519 = vld [vmem:[%s3392 + $0x20] sm:$0xf]
      %v3520 = vld [vmem:[%s3392 + $0x24] sm:$0x1]
      %v3521 = vld [vmem:[%s3392 + $0x28] sm:$0xf]
      %v3522 = vld [vmem:[%s3392 + $0x2c] sm:$0x1]
      %v3523 = vld [vmem:[%s3392 + $0x30] sm:$0xf]
      %v3524 = vld [vmem:[%s3392 + $0x34] sm:$0x1]
      %v3525 = vld [vmem:[%s3392 + $0x38] sm:$0xf]
      %v3526 = vld [vmem:[%s3392 + $0x3c] sm:$0x1]
      %v3528 = vshrl.u32 %v3511, 16
      %v3530 = vrot.slane %v3528, 4
      %v3531 = vshll.u32 %v3511, 16
      %v3533 = vrot.slane %v3531, 5
      %v3534 = vor.u32 %v3530, %v3533
      %v3535 = vrot.slane %v3534, 4
      %v3537 = vshll.u32 %v3512, 16
      %v3539 = vrot.slane %v3537, 5
      %v3540 = vsel %vm606, %v3535, %v3539
      %v3542 = vshrl.u32 %v3513, 16
      %v3544 = vrot.slane %v3542, 4
      %v3545 = vshll.u32 %v3513, 16
      %v3547 = vrot.slane %v3545, 5
      %v3548 = vor.u32 %v3544, %v3547
      %v3549 = vrot.slane %v3548, 4
      %v3551 = vshll.u32 %v3514, 16
      %v3553 = vrot.slane %v3551, 5
      %v3554 = vsel %vm606, %v3549, %v3553
      %v3556 = vshrl.u32 %v3515, 16
      %v3558 = vrot.slane %v3556, 4
      %v3559 = vshll.u32 %v3515, 16
      %v3561 = vrot.slane %v3559, 5
      %v3562 = vor.u32 %v3558, %v3561
      %v3563 = vrot.slane %v3562, 4
      %v3565 = vshll.u32 %v3516, 16
      %v3567 = vrot.slane %v3565, 5
      %v3568 = vsel %vm606, %v3563, %v3567
      %v3570 = vshrl.u32 %v3517, 16
      %v3572 = vrot.slane %v3570, 4
      %v3573 = vshll.u32 %v3517, 16
      %v3575 = vrot.slane %v3573, 5
      %v3576 = vor.u32 %v3572, %v3575
      %v3577 = vrot.slane %v3576, 4
      %v3579 = vshll.u32 %v3518, 16
      %v3581 = vrot.slane %v3579, 5
      %v3582 = vsel %vm606, %v3577, %v3581
      %v3584 = vshrl.u32 %v3519, 16
      %v3586 = vrot.slane %v3584, 4
      %v3587 = vshll.u32 %v3519, 16
      %v3589 = vrot.slane %v3587, 5
      %v3590 = vor.u32 %v3586, %v3589
      %v3591 = vrot.slane %v3590, 4
      %v3593 = vshll.u32 %v3520, 16
      %v3595 = vrot.slane %v3593, 5
      %v3596 = vsel %vm606, %v3591, %v3595
      %v3598 = vshrl.u32 %v3521, 16
      %v3600 = vrot.slane %v3598, 4
      %v3601 = vshll.u32 %v3521, 16
      %v3603 = vrot.slane %v3601, 5
      %v3604 = vor.u32 %v3600, %v3603
      %v3605 = vrot.slane %v3604, 4
      %v3607 = vshll.u32 %v3522, 16
      %v3609 = vrot.slane %v3607, 5
      %v3610 = vsel %vm606, %v3605, %v3609
      %v3612 = vshrl.u32 %v3523, 16
      %v3614 = vrot.slane %v3612, 4
      %v3615 = vshll.u32 %v3523, 16
      %v3617 = vrot.slane %v3615, 5
      %v3618 = vor.u32 %v3614, %v3617
      %v3619 = vrot.slane %v3618, 4
      %v3621 = vshll.u32 %v3524, 16
      %v3623 = vrot.slane %v3621, 5
      %v3624 = vsel %vm606, %v3619, %v3623
      %v3626 = vshrl.u32 %v3525, 16
      %v3628 = vrot.slane %v3626, 4
      %v3629 = vshll.u32 %v3525, 16
      %v3631 = vrot.slane %v3629, 5
      %v3632 = vor.u32 %v3628, %v3631
      %v3633 = vrot.slane %v3632, 4
      %v3635 = vshll.u32 %v3526, 16
      %v3637 = vrot.slane %v3635, 5
      %v3638 = vsel %vm606, %v3633, %v3637
      %s3639 = scalar_lea.vmem %s5, 28
      %v3640 = vld [vmem:[%s3639] sm:$0xf]
      %v3641 = vunpack.c.l.b16 %v3540
      %v3642 = vunpack.c.l.b16 %v3554
      %v3643 = vunpack.c.l.b16 %v3568
      %v3644 = vunpack.c.l.b16 %v3582
      %v3645 = vunpack.c.l.b16 %v3596
      %v3646 = vunpack.c.l.b16 %v3610
      %v3647 = vunpack.c.l.b16 %v3624
      %v3648 = vunpack.c.l.b16 %v3638
      %v3649 = vpack.c.b16 %v3642, %v3641
      %v3650 = vpack.c.b16 %v3644, %v3643
      %v3651 = vpack.c.b16 %v3646, %v3645
      %v3652 = vpack.c.b16 %v3648, %v3647
      %v3654 = vsel %vm2104, %v3649, 0
      %v3657 = vsel %vm2104, %v3650, 0
      %v3660 = vsel %vm2104, %v3651, 0
      %v3663 = vsel %vm2104, %v3652, 0
      %v3666 = vsel %vm2559, %v3640, 0
      %3668 = vmatprep.subr.bf16.mxu0 0
      %3669 = vmatpush1.bf16.msra.mxu0 0
      %3670 = vmatprep.subr.bf16.mxu0 0
      %3671 = vmatpush1.bf16.msra.mxu0 0
      %3672 = vmatprep.subr.bf16.mxu0 0
      %3673 = vmatpush1.bf16.msra.mxu0 0
      %3674 = vmatprep.subr.bf16.mxu0 0
      %3675 = vmatpush1.bf16.msra.mxu0 0
      %3676 = vmatprep.subr.bf16.mxu0 0
      %3677 = vmatpush1.bf16.msra.mxu0 0
      %3678 = vmatprep.subr.bf16.mxu0 0
      %3679 = vmatpush1.bf16.msra.mxu0 0
      %3680 = vmatprep.subr.bf16.mxu0 0
      %3681 = vmatpush1.bf16.msra.mxu0 0
      %3682 = vmatprep.subr.bf16.mxu0 0
      %3683 = vmatpush1.bf16.msra.mxu0 %v3666
      %3684 = vmatprep.subr.bf16.mxu0 0
      %3685 = vmatpush2.bf16.msra.mxu0 0
      %3686 = vmatprep.subr.bf16.mxu0 0
      %3687 = vmatpush2.bf16.msra.mxu0 0
      %3688 = vmatprep.subr.bf16.mxu0 0
      %3689 = vmatpush2.bf16.msra.mxu0 0
      %3690 = vmatprep.subr.bf16.mxu0 0
      %3691 = vmatpush2.bf16.msra.mxu0 0
      %3692 = vmatprep.subr.bf16.mxu0 0
      %3693 = vmatpush2.bf16.msra.mxu0 0
      %3694 = vmatprep.subr.bf16.mxu0 0
      %3695 = vmatpush2.bf16.msra.mxu0 0
      %3696 = vmatprep.subr.bf16.mxu0 0
      %3697 = vmatpush2.bf16.msra.mxu0 0
      %3698 = vmatprep.subr.bf16.mxu0 0
      %3699 = vmatpush2.bf16.msra.mxu0 0
      %3700 = vmatprep.mubr.bf16.mxu0 0
      %3701 = vmatmul.mubr.bf16.gmra.mxu0 %v3654
      %v3702 = vpop.f32.mrf.mxu0
      %v3703 = vadd.f32 0.0, %v3702
      %v3704 = vpop.f32.mrf.mxu0
      %v3705 = vpop.f32.mrf.mxu0
      %v3706 = vadd.f32 0.0, %v3705
      %v3707 = vpop.f32.mrf.mxu0
      %3708 = vmatprep.mubr.bf16.mxu0 0
      %3709 = vmatmul.mubr.bf16.gmra.mxu0 %v3657
      %v3710 = vpop.f32.mrf.mxu0
      %v3711 = vadd.f32 0.0, %v3710
      %v3712 = vpop.f32.mrf.mxu0
      %v3713 = vpop.f32.mrf.mxu0
      %v3714 = vadd.f32 0.0, %v3713
      %v3715 = vpop.f32.mrf.mxu0
      %3716 = vmatprep.mubr.bf16.mxu0 0
      %3717 = vmatmul.mubr.bf16.gmra.mxu0 %v3660
      %v3718 = vpop.f32.mrf.mxu0
      %v3719 = vadd.f32 0.0, %v3718
      %v3720 = vpop.f32.mrf.mxu0
      %v3721 = vpop.f32.mrf.mxu0
      %v3722 = vadd.f32 0.0, %v3721
      %v3723 = vpop.f32.mrf.mxu0
      %3724 = vmatprep.mubr.bf16.mxu0 0
      %3725 = vmatmul.mubr.bf16.gmra.mxu0 %v3663
      %v3726 = vpop.f32.mrf.mxu0
      %v3727 = vadd.f32 0.0, %v3726
      %v3728 = vpop.f32.mrf.mxu0
      %v3729 = vpop.f32.mrf.mxu0
      %v3730 = vadd.f32 0.0, %v3729
      %v3731 = vpop.f32.mrf.mxu0
      %3732 = vdwg.mxu0
      %v3733 = vadd.f32 %v3503, %v3703
      %v3734 = vadd.f32 %v3504, %v3706
      %v3735 = vadd.f32 %v3505, %v3711
      %v3736 = vadd.f32 %v3506, %v3714
      %v3737 = vadd.f32 %v3507, %v3719
      %v3738 = vadd.f32 %v3508, %v3722
      %v3739 = vadd.f32 %v3509, %v3727
      %v3740 = vadd.f32 %v3510, %v3730
      %v3741 = vld [vmem:[%s3392] sm:$0xe]
      %v3742 = vld [vmem:[%s3392 + $0x8] sm:$0xe]
      %v3743 = vld [vmem:[%s3392 + $0x10] sm:$0xe]
      %v3744 = vld [vmem:[%s3392 + $0x18] sm:$0xe]
      %v3745 = vld [vmem:[%s3392 + $0x20] sm:$0xe]
      %v3746 = vld [vmem:[%s3392 + $0x28] sm:$0xe]
      %v3747 = vld [vmem:[%s3392 + $0x30] sm:$0xe]
      %v3748 = vld [vmem:[%s3392 + $0x38] sm:$0xe]
      %v3765 = vrot.slane %v3741, 5
      %v3766 = vrot.slane %v3765, 4
      %v3767 = vrot.slane %v3512, 5
      %v3768 = vsel %vm941, %v3766, %v3767
      %v3769 = vrot.slane %v3742, 5
      %v3770 = vrot.slane %v3769, 4
      %v3771 = vrot.slane %v3514, 5
      %v3772 = vsel %vm941, %v3770, %v3771
      %v3773 = vrot.slane %v3743, 5
      %v3774 = vrot.slane %v3773, 4
      %v3775 = vrot.slane %v3516, 5
      %v3776 = vsel %vm941, %v3774, %v3775
      %v3777 = vrot.slane %v3744, 5
      %v3778 = vrot.slane %v3777, 4
      %v3779 = vrot.slane %v3518, 5
      %v3780 = vsel %vm941, %v3778, %v3779
      %v3781 = vrot.slane %v3745, 5
      %v3782 = vrot.slane %v3781, 4
      %v3783 = vrot.slane %v3520, 5
      %v3784 = vsel %vm941, %v3782, %v3783
      %v3785 = vrot.slane %v3746, 5
      %v3786 = vrot.slane %v3785, 4
      %v3787 = vrot.slane %v3522, 5
      %v3788 = vsel %vm941, %v3786, %v3787
      %v3789 = vrot.slane %v3747, 5
      %v3790 = vrot.slane %v3789, 4
      %v3791 = vrot.slane %v3524, 5
      %v3792 = vsel %vm941, %v3790, %v3791
      %v3793 = vrot.slane %v3748, 5
      %v3794 = vrot.slane %v3793, 4
      %v3795 = vrot.slane %v3526, 5
      %v3796 = vsel %vm941, %v3794, %v3795
      %s3797 = scalar_lea.vmem %s5, 32
      %v3798 = vld [vmem:[%s3797] sm:$0xf]
      %v3799 = vunpack.c.l.b16 %v3768
      %v3800 = vunpack.c.l.b16 %v3772
      %v3801 = vunpack.c.l.b16 %v3776
      %v3802 = vunpack.c.l.b16 %v3780
      %v3803 = vunpack.c.l.b16 %v3784
      %v3804 = vunpack.c.l.b16 %v3788
      %v3805 = vunpack.c.l.b16 %v3792
      %v3806 = vunpack.c.l.b16 %v3796
      %v3807 = vpack.c.b16 %v3800, %v3799
      %v3808 = vpack.c.b16 %v3802, %v3801
      %v3809 = vpack.c.b16 %v3804, %v3803
      %v3810 = vpack.c.b16 %v3806, %v3805
      %v3812 = vsel %vm2104, %v3807, 0
      %v3815 = vsel %vm2104, %v3808, 0
      %v3818 = vsel %vm2104, %v3809, 0
      %v3821 = vsel %vm2104, %v3810, 0
      %v3824 = vsel %vm2559, %v3798, 0
      %3826 = vmatprep.subr.bf16.mxu0 0
      %3827 = vmatpush1.bf16.msra.mxu0 0
      %3828 = vmatprep.subr.bf16.mxu0 0
      %3829 = vmatpush1.bf16.msra.mxu0 0
      %3830 = vmatprep.subr.bf16.mxu0 0
      %3831 = vmatpush1.bf16.msra.mxu0 0
      %3832 = vmatprep.subr.bf16.mxu0 0
      %3833 = vmatpush1.bf16.msra.mxu0 0
      %3834 = vmatprep.subr.bf16.mxu0 0
      %3835 = vmatpush1.bf16.msra.mxu0 0
      %3836 = vmatprep.subr.bf16.mxu0 0
      %3837 = vmatpush1.bf16.msra.mxu0 0
      %3838 = vmatprep.subr.bf16.mxu0 0
      %3839 = vmatpush1.bf16.msra.mxu0 0
      %3840 = vmatprep.subr.bf16.mxu0 0
      %3841 = vmatpush1.bf16.msra.mxu0 %v3824
      %3842 = vmatprep.subr.bf16.mxu0 0
      %3843 = vmatpush2.bf16.msra.mxu0 0
      %3844 = vmatprep.subr.bf16.mxu0 0
      %3845 = vmatpush2.bf16.msra.mxu0 0
      %3846 = vmatprep.subr.bf16.mxu0 0
      %3847 = vmatpush2.bf16.msra.mxu0 0
      %3848 = vmatprep.subr.bf16.mxu0 0
      %3849 = vmatpush2.bf16.msra.mxu0 0
      %3850 = vmatprep.subr.bf16.mxu0 0
      %3851 = vmatpush2.bf16.msra.mxu0 0
      %3852 = vmatprep.subr.bf16.mxu0 0
      %3853 = vmatpush2.bf16.msra.mxu0 0
      %3854 = vmatprep.subr.bf16.mxu0 0
      %3855 = vmatpush2.bf16.msra.mxu0 0
      %3856 = vmatprep.subr.bf16.mxu0 0
      %3857 = vmatpush2.bf16.msra.mxu0 0
      %3858 = vmatprep.mubr.bf16.mxu0 0
      %3859 = vmatmul.mubr.bf16.gmra.mxu0 %v3812
      %v3860 = vpop.f32.mrf.mxu0
      %v3861 = vadd.f32 0.0, %v3860
      %v3862 = vpop.f32.mrf.mxu0
      %v3863 = vpop.f32.mrf.mxu0
      %v3864 = vadd.f32 0.0, %v3863
      %v3865 = vpop.f32.mrf.mxu0
      %3866 = vmatprep.mubr.bf16.mxu0 0
      %3867 = vmatmul.mubr.bf16.gmra.mxu0 %v3815
      %v3868 = vpop.f32.mrf.mxu0
      %v3869 = vadd.f32 0.0, %v3868
      %v3870 = vpop.f32.mrf.mxu0
      %v3871 = vpop.f32.mrf.mxu0
      %v3872 = vadd.f32 0.0, %v3871
      %v3873 = vpop.f32.mrf.mxu0
      %3874 = vmatprep.mubr.bf16.mxu0 0
      %3875 = vmatmul.mubr.bf16.gmra.mxu0 %v3818
      %v3876 = vpop.f32.mrf.mxu0
      %v3877 = vadd.f32 0.0, %v3876
      %v3878 = vpop.f32.mrf.mxu0
      %v3879 = vpop.f32.mrf.mxu0
      %v3880 = vadd.f32 0.0, %v3879
      %v3881 = vpop.f32.mrf.mxu0
      %3882 = vmatprep.mubr.bf16.mxu0 0
      %3883 = vmatmul.mubr.bf16.gmra.mxu0 %v3821
      %v3884 = vpop.f32.mrf.mxu0
      %v3885 = vadd.f32 0.0, %v3884
      %v3886 = vpop.f32.mrf.mxu0
      %v3887 = vpop.f32.mrf.mxu0
      %v3888 = vadd.f32 0.0, %v3887
      %v3889 = vpop.f32.mrf.mxu0
      %3890 = vdwg.mxu0
      %v3891 = vadd.f32 %v3733, %v3861
      %v3892 = vadd.f32 %v3734, %v3864
      %v3893 = vadd.f32 %v3735, %v3869
      %v3894 = vadd.f32 %v3736, %v3872
      %v3895 = vadd.f32 %v3737, %v3877
      %v3896 = vadd.f32 %v3738, %v3880
      %v3897 = vadd.f32 %v3739, %v3885
      %v3898 = vadd.f32 %v3740, %v3888
      %v3899 = vld [vmem:[%s6] sm:$0x1]
      %v3901 = vlaneseq
      %v3902 = vshrl.u32 %v3901, 7
      %v3903 = vsub.s32 0, %v3902
      %v3904 = vrot.slane %v3899, %v3903
      %v3906 = vadd.f32 %v3891, %v3904
      %v3907 = vadd.f32 %v3892, %v3904
      %v3908 = vadd.f32 %v3893, %v3904
      %v3909 = vadd.f32 %v3894, %v3904
      %v3910 = vadd.f32 %v3895, %v3904
      %v3911 = vadd.f32 %v3896, %v3904
      %v3912 = vadd.f32 %v3897, %v3904
      %v3913 = vadd.f32 %v3898, %v3904
      %v3914 = vsel %vm2104, %v3906, 0.0
      %v3915 = vsel %vm2104, %v3907, 0.0
      %v3916 = vadd.f32 %v3914, %v3915
      %v3917 = vsel %vm2104, %v3908, 0.0
      %v3918 = vadd.f32 %v3916, %v3917
      %v3919 = vsel %vm2104, %v3909, 0.0
      %v3920 = vadd.f32 %v3918, %v3919
      %v3921 = vsel %vm2104, %v3910, 0.0
      %v3922 = vadd.f32 %v3920, %v3921
      %v3923 = vsel %vm2104, %v3911, 0.0
      %v3924 = vadd.f32 %v3922, %v3923
      %v3925 = vsel %vm2104, %v3912, 0.0
      %v3926 = vadd.f32 %v3924, %v3925
      %v3927 = vsel %vm2104, %v3913, 0.0
      %v3928 = vadd.f32 %v3926, %v3927
      %v3929 = vrot.slane %v3928, 4
      %v3930 = vadd.f32 %v3928, %v3929
      %v3931 = vrot.slane %v3930, 2
      %v3932 = vadd.f32 %v3930, %v3931
      %v3933 = vrot.slane %v3932, 1
      %v3934 = vadd.f32 %v3932, %v3933
      %v3935 = vmul.f32 %v3934, %v2126
      %v3936 = vmul.f32 %v3906, %v3906
      %v3937 = vmul.f32 %v3907, %v3907
      %v3938 = vmul.f32 %v3908, %v3908
      %v3939 = vmul.f32 %v3909, %v3909
      %v3940 = vmul.f32 %v3910, %v3910
      %v3941 = vmul.f32 %v3911, %v3911
      %v3942 = vmul.f32 %v3912, %v3912
      %v3943 = vmul.f32 %v3913, %v3913
      %v3944 = vsel %vm2104, %v3936, 0.0
      %v3945 = vsel %vm2104, %v3937, 0.0
      %v3946 = vadd.f32 %v3944, %v3945
      %v3947 = vsel %vm2104, %v3938, 0.0
      %v3948 = vadd.f32 %v3946, %v3947
      %v3949 = vsel %vm2104, %v3939, 0.0
      %v3950 = vadd.f32 %v3948, %v3949
      %v3951 = vsel %vm2104, %v3940, 0.0
      %v3952 = vadd.f32 %v3950, %v3951
      %v3953 = vsel %vm2104, %v3941, 0.0
      %v3954 = vadd.f32 %v3952, %v3953
      %v3955 = vsel %vm2104, %v3942, 0.0
      %v3956 = vadd.f32 %v3954, %v3955
      %v3957 = vsel %vm2104, %v3943, 0.0
      %v3958 = vadd.f32 %v3956, %v3957
      %v3959 = vrot.slane %v3958, 4
      %v3960 = vadd.f32 %v3958, %v3959
      %v3961 = vrot.slane %v3960, 2
      %v3962 = vadd.f32 %v3960, %v3961
      %v3963 = vrot.slane %v3962, 1
      %v3964 = vadd.f32 %v3962, %v3963
      %v3965 = vmul.f32 %v3964, %v2126
      %v3966 = vmul.f32 %v3935, %v3935
      %v3967 = vsub.f32 %v3965, %v3966
      %v3968 = vmax.f32 %v3967, 0.0
      %v3969 = vsub.f32 %v3906, %v3935
      %v3970 = vsub.f32 %v3907, %v3935
      %v3971 = vsub.f32 %v3908, %v3935
      %v3972 = vsub.f32 %v3909, %v3935
      %v3973 = vsub.f32 %v3910, %v3935
      %v3974 = vsub.f32 %v3911, %v3935
      %v3975 = vsub.f32 %v3912, %v3935
      %v3976 = vsub.f32 %v3913, %v3935
      %v3977 = vadd.f32 %v3968, 1e-05
      %v3978 = vrsqrt.pop %v3977
      %v3979 = vmul.f32 %v3969, %v3978
      %v3980 = vmul.f32 %v3970, %v3978
      %v3981 = vmul.f32 %v3971, %v3978
      %v3982 = vmul.f32 %v3972, %v3978
      %v3983 = vmul.f32 %v3973, %v3978
      %v3984 = vmul.f32 %v3974, %v3978
      %v3985 = vmul.f32 %v3975, %v3978
      %v3986 = vmul.f32 %v3976, %v3978
      %v3987 = vld [vmem:[%s7] sm:$0x1]
      %v3989 = vlaneseq
      %v3990 = vshrl.u32 %v3989, 7
      %v3991 = vsub.s32 0, %v3990
      %v3992 = vrot.slane %v3987, %v3991
      %v3994 = vmul.f32 %v3979, %v3992
      %v3995 = vmul.f32 %v3980, %v3992
      %v3996 = vmul.f32 %v3981, %v3992
      %v3997 = vmul.f32 %v3982, %v3992
      %v3998 = vmul.f32 %v3983, %v3992
      %v3999 = vmul.f32 %v3984, %v3992
      %v4000 = vmul.f32 %v3985, %v3992
      %v4001 = vmul.f32 %v3986, %v3992
      %v4002 = vld [vmem:[%s8] sm:$0x1]
      %v4004 = vlaneseq
      %v4005 = vshrl.u32 %v4004, 7
      %v4006 = vsub.s32 0, %v4005
      %v4007 = vrot.slane %v4002, %v4006
      %v4009 = vadd.f32 %v3994, %v4007
      %v4010 = vadd.f32 %v3995, %v4007
      %v4011 = vadd.f32 %v3996, %v4007
      %v4012 = vadd.f32 %v3997, %v4007
      %v4013 = vadd.f32 %v3998, %v4007
      %v4014 = vadd.f32 %v3999, %v4007
      %v4015 = vadd.f32 %v4000, %v4007
      %v4016 = vadd.f32 %v4001, %v4007
      %v4017 = vmax.f32 %v4009, 0.0
      %v4018 = vmax.f32 %v4010, 0.0
      %v4019 = vmax.f32 %v4011, 0.0
      %v4020 = vmax.f32 %v4012, 0.0
      %v4021 = vmax.f32 %v4013, 0.0
      %v4022 = vmax.f32 %v4014, 0.0
      %v4023 = vmax.f32 %v4015, 0.0
      %v4024 = vmax.f32 %v4016, 0.0
      %4025 = vst.msk [vmem:[%s337] sm:$0xff] %vm2104, %v4017
      %4026 = vst.msk [vmem:[%s337 + $0x8] sm:$0xff] %vm2104, %v4018
      %4027 = vst.msk [vmem:[%s337 + $0x10] sm:$0xff] %vm2104, %v4019
      %4028 = vst.msk [vmem:[%s337 + $0x18] sm:$0xff] %vm2104, %v4020
      %4029 = vst.msk [vmem:[%s337 + $0x20] sm:$0xff] %vm2104, %v4021
      %4030 = vst.msk [vmem:[%s337 + $0x28] sm:$0xff] %vm2104, %v4022
      %4031 = vst.msk [vmem:[%s337 + $0x30] sm:$0xff] %vm2104, %v4023
      %4032 = vst.msk [vmem:[%s337 + $0x38] sm:$0xff] %vm2104, %v4024
      %p4033 = scmp.lt.s32.totalorder %s20, 1
      %s4034 = scalar_select %p4033, %s20, 1
      %s4035 = smul.addr %s4034, 8
      %s4036 = smul.addr %s4035, 8
      %s4037 = scalar_lea.vmem %s9, %s4036
      // Predicated region
      $region57: #{down_pallas.1} parent=55 // pred_check
        %p4038 = pneg %p232
      $region58: #{down_pallas.1} parent=55 // pred_check_branch
        %4040 = sbr.rel (%p4038) target = $region60
      $region59: #{down_pallas.1} parent=55 // pred_region
        _
      $region60: #{down_pallas.1} parent=55 // pred_fallthru
        _
    $region56: #{down_pallas.1} parent=5 // pred_fallthru
      _
    %p4041 = scmp.le.s32.totalorder 2, %s15
    // Predicated region
    $region61: #{down_pallas.1} parent=5 // pred_check
      %p4042 = pneg %p4041
    $region62: #{down_pallas.1} parent=5 // pred_check_branch
      %4044 = sbr.rel (%p4042) target = $region64
    $region63: #{down_pallas.1} parent=5 // pred_region
      %s4045 = ssub.s32 %s15, 2
      // Predicated region
      $region65: #{down_pallas.1} parent=63 // pred_check
        %p4046 = pneg %p238
      $region66: #{down_pallas.1} parent=63 // pred_check_branch
        %4048 = sbr.rel (%p4046) target = $region68
      $region67: #{down_pallas.1} parent=63 // pred_region
        %p4049 = scmp.lt.s32.totalorder %s21, 1
        %s4050 = scalar_select %p4049, %s21, 1
        %s4051 = smul.addr %s4050, 8
        %s4052 = smul.addr %s4051, 8
        %s4053 = scalar_lea.vmem %s9, %s4052
      $region68: #{down_pallas.1} parent=63 // pred_fallthru
        _
    $region64: #{down_pallas.1} parent=5 // pred_fallthru
      _
  $region6: #{down_pallas.1} parent=0 // loop_footer
    %s19 = sadd.s32 1, %s15
  $region7: #{down_pallas.1} parent=0 // loop_footer_branch
    %14 = sbr.rel target = $region3
  $region8: #{down_pallas.1} parent=0 // loop_exit
    _

</llo_original>
